<compile_context>
chip_gen: v7x
topology: tpu7x:2x2x1
jax: 0.10.0
libtpu: 0.0.40
codegen_flags: <defaults>
</compile_context>

<pallas_src>
import functools

import jax
import jax.numpy as jnp
from jax.experimental import pallas as pl
from jax.experimental.pallas import tpu as pltpu


# ----------------------------------------------------------------------------
# VMEM-budget helpers.
# ----------------------------------------------------------------------------
def _vmem_capacity_bytes():
    try:
        return int(pltpu.get_tpu_info().vmem_capacity_bytes)
    except Exception:
        return 64 * 1024 * 1024      # conservative fallback (v7x per-TC VMEM)


def _vmem_limit_bytes():
    # Raise the scoped-VMEM limit toward physical (default is 16 MiB on v5e,
    # 32 MiB on v6e/v7x); keep headroom for compiler-internal scratch.
    return int(min(_vmem_capacity_bytes() * 3 // 4, 100 * 1024 * 1024))


def _pick_time_block(T, B, D, H, cap=32):
    """Time steps per grid iteration: VMEM-budget bound, unroll-cap bound."""
    # Pipeline-resident bytes per time step: 2 bf16 input streams (B, D) and
    # 2 bf16 output streams (B, H), each double-buffered; account for
    # sublane(8)/lane(128) padding of the VMEM tiles.
    bp = -(-B // 8) * 8
    dp = -(-D // 128) * 128
    hp = -(-H // 128) * 128
    per_step = 2 * 2 * 2 * bp * (dp + hp)      # streams x buffers x bf16 bytes
    budget = _vmem_limit_bytes() // 4          # room for weights/scratch/etc.
    return int(max(1, min(T, cap, budget // max(per_step, 1))))


# ----------------------------------------------------------------------------
# Pallas kernel: fused bidirectional LSTM recurrence, TT time steps per grid
# iteration.  Gate order matches PyTorch: i, f, g, o.
# ----------------------------------------------------------------------------
def _bilstm_kernel(t_real, t_pad, xf_ref, xb_ref, wih_ref, whh_ref, b_ref,
                   out_f_ref, out_b_ref, h_scr, c_scr):
    # xf_ref : (TT, B, D)  bf16  layer input, forward-time block i
    # xb_ref : (TT, B, D)  bf16  layer input, mirrored block NB-1-i
    # wih_ref: (2, D, 4H)  bf16  input->gate weights [fwd, bwd] (VMEM resident)
    # whh_ref: (2H, 8H)    bf16  block-diagonal recurrent weights (resident)
    # b_ref  : (2, 1, 4H)  f32   combined biases b_ih + b_hh (resident)
    # out_*  : (TT, B, H)  bf16  hidden outputs (bwd written at its natural
    #                            forward-time position -> no output flip)
    # h_scr, c_scr: (B, 2H) f32  carries, [:, :H] = fwd, [:, H:] = bwd
    i = pl.program_id(0)

    @pl.when(i == 0)
    def _():
        h_scr[...] = jnp.zeros_like(h_scr)
        c_scr[...] = jnp.zeros_like(c_scr)

    TT, _, _ = xf_ref.shape
    H = out_f_ref.shape[2]
    G = 4 * H
    NB = t_pad // TT
    padded = t_pad != t_real          # static: masking traced only if needed

    # Hoist resident weight/bias loads out of the unrolled time loop.
    wih_f = wih_ref[0]
    wih_b = wih_ref[1]
    whh = whh_ref[...]                # (2H, 8H) block-diagonal
    b_f = b_ref[0]
    b_b = b_ref[1]

    # Register-resident carries across the block; scratch only bridges blocks.
    h_cat = h_scr[...]                # (B, 2H) f32
    c_cat = c_scr[...]
    c_f = c_cat[:, :H]
    c_b = c_cat[:, H:]

    def lstm_gates(g, c_prev):
        i_g = jax.nn.sigmoid(g[:, 0 * H:1 * H])
        f_g = jax.nn.sigmoid(g[:, 1 * H:2 * H])
        g_g = jnp.tanh(g[:, 2 * H:3 * H])
        o_g = jax.nn.sigmoid(g[:, 3 * H:4 * H])
        c_new = f_g * c_prev + i_g * g_g
        h_new = o_g * jnp.tanh(c_new)
        return h_new, c_new

    # Trace-time unrolled: static indices -> aligned, unmasked VMEM accesses.
    for s in range(TT):
        sb = TT - 1 - s

        # The ONLY op on the serial critical path: one fused recurrent matmul
        # for both directions.
        gates = jnp.dot(h_cat.astype(whh.dtype), whh,
                        preferred_element_type=jnp.float32)        # (B, 8H)

        # In-kernel input projection + folded bias: depends only on streamed
        # inputs, so the scheduler lifts it off the recurrent critical path.
        xp_f = jnp.dot(xf_ref[s], wih_f,
                       preferred_element_type=jnp.float32) + b_f   # (B, 4H)
        xp_b = jnp.dot(xb_ref[sb], wih_b,
                       preferred_element_type=jnp.float32) + b_b

        g_f = gates[:, :G] + xp_f
        g_b = gates[:, G:] + xp_b

        h_f, c_f = lstm_gates(g_f, c_f)
        h_b_new, c_b_new = lstm_gates(g_b, c_b)

        if padded:
            # Backward direction walks the end-of-time padding first; keep its
            # carry frozen (at zero) until it reaches the last real step.
            gb = (NB - 1 - i) * TT + sb        # global time of this bwd step
            valid = gb < t_real
            h_b = jnp.where(valid, h_b_new, h_cat[:, H:])
            c_b = jnp.where(valid, c_b_new, c_b)
        else:
            h_b, c_b = h_b_new, c_b_new

        out_f_ref[s] = h_f.astype(out_f_ref.dtype)
        out_b_ref[sb] = h_b.astype(out_b_ref.dtype)

        h_cat = jnp.concatenate([h_f, h_b], axis=-1)

    # Write carries back once per block (only needed across grid iterations).
    h_scr[...] = h_cat
    c_scr[...] = jnp.concatenate([c_f, c_b], axis=-1)


def run_bilstm_layer(x, wih, whh_blk, b):
    """x: (T, B, D) bf16; wih: (2, D, 4H) bf16; whh_blk: (2H, 8H) bf16;
    b: (2, 1, 4H) f32.  Returns (out_f, out_b), each (T, B, H) bf16, both in
    forward-time order."""
    T, B, D = x.shape
    G = wih.shape[2]
    H = G // 4

    TT = _pick_time_block(T, B, D, H)
    T_pad = -(-T // TT) * TT
    if T_pad != T:
        x = jnp.pad(x, ((0, T_pad - T), (0, 0), (0, 0)))
    NB = T_pad // TT

    kernel = functools.partial(_bilstm_kernel, T, T_pad)

    out_f, out_b = pl.pallas_call(
        kernel,
        out_shape=(jax.ShapeDtypeStruct((T_pad, B, H), jnp.bfloat16),
                   jax.ShapeDtypeStruct((T_pad, B, H), jnp.bfloat16)),
        grid_spec=pltpu.PrefetchScalarGridSpec(
            num_scalar_prefetch=0,
            grid=(NB,),
            in_specs=[
                pl.BlockSpec((TT, B, D), lambda i: (i, 0, 0)),           # x fwd
                pl.BlockSpec((TT, B, D), lambda i: (NB - 1 - i, 0, 0)),  # x bwd
                pl.BlockSpec((2, D, G), lambda i: (0, 0, 0)),            # W_ih
                pl.BlockSpec((2 * H, 2 * G), lambda i: (0, 0)),          # W_hh blkdiag
                pl.BlockSpec((2, 1, G), lambda i: (0, 0, 0)),            # bias
            ],
            out_specs=[
                pl.BlockSpec((TT, B, H), lambda i: (i, 0, 0)),           # fwd out
                pl.BlockSpec((TT, B, H), lambda i: (NB - 1 - i, 0, 0)),  # bwd out
            ],
            scratch_shapes=[
                pltpu.VMEM((B, 2 * H), jnp.float32),   # h carry [fwd | bwd]
                pltpu.VMEM((B, 2 * H), jnp.float32),   # c carry [fwd | bwd]
            ],
        ),
        compiler_params=pltpu.CompilerParams(
            dimension_semantics=("arbitrary",),        # time blocks carry state
            vmem_limit_bytes=_vmem_limit_bytes(),
        ),
    )(x, x, wih, whh_blk, b)

    if T_pad != T:
        out_f = out_f[:T]
        out_b = out_b[:T]
    return out_f, out_b


# ----------------------------------------------------------------------------
# Parameter init (deterministic, PyTorch-style uniform(-1/sqrt(H), 1/sqrt(H))).
# Weights pre-transposed / pre-fused for the kernel:
#   w_ih      : (2, D_in, 4H) bf16
#   w_hh_blk  : (2H, 8H)      bf16  block-diagonal [[W_f, 0], [0, W_b]]
#   b         : (2, 1, 4H)    f32   b_ih + b_hh
# ----------------------------------------------------------------------------
def init_params(key, input_size, hidden_size, num_layers, num_classes):
    H = hidden_size
    k = 1.0 / (hidden_size ** 0.5)
    layers = []
    for layer in range(num_layers):
        d_in = input_size if layer == 0 else 2 * hidden_size
        w_ih, w_hh, bias = [], [], []
        for _direction in range(2):   # forward, backward
            key, k1, k2, k3, k4 = jax.random.split(key, 5)
            w_ih.append(jax.random.uniform(k1, (d_in, 4 * H), jnp.float32, -k, k))
            w_hh.append(jax.random.uniform(k2, (H, 4 * H), jnp.float32, -k, k))
            b_ih = jax.random.uniform(k3, (4 * H,), jnp.float32, -k, k)
            b_hh = jax.random.uniform(k4, (4 * H,), jnp.float32, -k, k)
            bias.append((b_ih + b_hh)[None, :])
        zeros = jnp.zeros((H, 4 * H), jnp.float32)
        w_hh_blk = jnp.concatenate(
            [jnp.concatenate([w_hh[0], zeros], axis=1),
             jnp.concatenate([zeros, w_hh[1]], axis=1)], axis=0)
        layers.append({
            "w_ih": jnp.stack(w_ih).astype(jnp.bfloat16),     # (2, d_in, 4H)
            "w_hh_blk": w_hh_blk.astype(jnp.bfloat16),        # (2H, 8H)
            "b": jnp.stack(bias),                             # (2, 1, 4H) f32
        })

    key, k1, k2 = jax.random.split(key, 3)
    kd = 1.0 / ((2 * hidden_size) ** 0.5)
    dense_w = jax.random.uniform(k1, (2 * H, num_classes), jnp.float32, -kd, kd)
    dense_b = jax.random.uniform(k2, (1, num_classes), jnp.float32, -kd, kd)
    return {"layers": layers, "dense_w": dense_w, "dense_b": dense_b}


# ----------------------------------------------------------------------------
# Full BLSTM forward.
# ----------------------------------------------------------------------------
def blstm_forward(params, x_btd):
    # x_btd: (B, T, input_size)  [batch_first semantics]
    x = jnp.transpose(x_btd, (1, 0, 2)).astype(jnp.bfloat16)   # (T, B, D)

    out_f = out_b = None
    for layer in params["layers"]:
        if out_f is not None:
            # Next layer's input is concat(out_f, out_b); materialized once in
            # bf16 (far cheaper than the f32 xproj round trip it replaces).
            x = jnp.concatenate([out_f, out_b], axis=-1)       # (T, B, 2H) bf16
        out_f, out_b = run_bilstm_layer(x, layer["w_ih"], layer["w_hh_blk"],
                                        layer["b"])

    # output[:, -1, :] == [h_fwd(T-1), h_bwd(T-1)]; final Linear as a tiny
    # split matmul in plain XLA (no extra pallas_call, no concat).
    H = out_f.shape[-1]
    dense_w = params["dense_w"]
    logits = (jnp.dot(out_f[-1].astype(jnp.float32), dense_w[:H],
                      preferred_element_type=jnp.float32)
              + jnp.dot(out_b[-1].astype(jnp.float32), dense_w[H:],
                        preferred_element_type=jnp.float32)
              + params["dense_b"])
    return logits


if __name__ == "__main__":
    batch = 2
    seq = 8
    input_size = 16
    hidden_size = 32
    num_layers = 2
    num_classes = 4

    key = jax.random.PRNGKey(0)
    key, pkey, xkey = jax.random.split(key, 3)

    params = init_params(pkey, input_size, hidden_size, num_layers, num_classes)
    x = jax.random.normal(xkey, (batch, seq, input_size), jnp.float32)

    out = jax.jit(functools.partial(blstm_forward, params))(x)
    out = jax.block_until_ready(out)

    assert out.shape == (batch, num_classes), out.shape
    assert bool(jnp.all(jnp.isfinite(out)))
    print("KERNEL_OK")
</pallas_src>

<mosaic_0001>
module attributes {stable_mosaic.version = 11 : i64} {
  func.func @_bilstm_kernel(%arg0: i32, %arg1: memref<8x2x16xbf16, #tpu.memory_space<vmem>>, %arg2: memref<8x2x16xbf16, #tpu.memory_space<vmem>>, %arg3: memref<2x16x128xbf16, #tpu.memory_space<vmem>>, %arg4: memref<64x256xbf16, #tpu.memory_space<vmem>>, %arg5: memref<2x1x128xf32, #tpu.memory_space<vmem>>, %arg6: memref<8x2x32xbf16, #tpu.memory_space<vmem>>, %arg7: memref<8x2x32xbf16, #tpu.memory_space<vmem>>, %arg8: memref<2x64xf32, #tpu.memory_space<vmem>>, %arg9: memref<2x64xf32, #tpu.memory_space<vmem>>) attributes {dimension_semantics = [#tpu.dimension_semantics<arbitrary>], iteration_bounds = array<i64: 1>, scalar_prefetch = 0 : i64, scratch_operands = 2 : i64, tpu.core_type = #tpu.core_type<tc>, window_params = [{transform_indices = @transform_0, window_bounds = array<i64: 8, 2, 16>}, {transform_indices = @transform_1, window_bounds = array<i64: 8, 2, 16>}, {pipeline_mode = #tpu.pipeline_mode<synchronous>, transform_indices = @transform_2, window_bounds = array<i64: 2, 16, 128>}, {pipeline_mode = #tpu.pipeline_mode<synchronous>, transform_indices = @transform_3, window_bounds = array<i64: 64, 256>}, {pipeline_mode = #tpu.pipeline_mode<synchronous>, transform_indices = @transform_4, window_bounds = array<i64: 2, 1, 128>}, {transform_indices = @transform_5, window_bounds = array<i64: 8, 2, 32>}, {transform_indices = @transform_6, window_bounds = array<i64: 8, 2, 32>}]} {
    %c0_i32 = arith.constant 0 : i32
    %0 = arith.cmpi eq, %arg0, %c0_i32 : i32
    %1 = arith.extui %0 : i1 to i32
    %c0_i32_0 = arith.constant 0 : i32
    %2 = arith.cmpi ne, %1, %c0_i32_0 : i32
    scf.if %2 {
      %cst_182 = arith.constant 0.000000e+00 : f32
      %619 = vector.broadcast %cst_182 : f32 to vector<2x64xf32>
      %c0_183 = arith.constant 0 : index
      %c0_184 = arith.constant 0 : index
      %620 = vector.load %arg8[%c0_183, %c0_184] : memref<2x64xf32, #tpu.memory_space<vmem>>, vector<2x64xf32>
      tpu.vector_store %arg8[%c0_183, %c0_184], %619 {strides = array<i32>} : memref<2x64xf32, #tpu.memory_space<vmem>>, vector<2x64xf32>,
      %cst_185 = arith.constant 0.000000e+00 : f32
      %621 = vector.broadcast %cst_185 : f32 to vector<2x64xf32>
      %c0_186 = arith.constant 0 : index
      %c0_187 = arith.constant 0 : index
      %622 = vector.load %arg9[%c0_186, %c0_187] : memref<2x64xf32, #tpu.memory_space<vmem>>, vector<2x64xf32>
      tpu.vector_store %arg9[%c0_186, %c0_187], %621 {strides = array<i32>} : memref<2x64xf32, #tpu.memory_space<vmem>>, vector<2x64xf32>,
    } else {
    }
    %c0 = arith.constant 0 : index
    %c0_1 = arith.constant 0 : index
    %c0_2 = arith.constant 0 : index
    %3 = vector.load %arg3[%c0, %c0_1, %c0_2] : memref<2x16x128xbf16, #tpu.memory_space<vmem>>, vector<1x16x128xbf16>
    %4 = vector.shape_cast %3 : vector<1x16x128xbf16> to vector<16x128xbf16>
    %c1 = arith.constant 1 : index
    %c0_3 = arith.constant 0 : index
    %c0_4 = arith.constant 0 : index
    %5 = vector.load %arg3[%c1, %c0_3, %c0_4] : memref<2x16x128xbf16, #tpu.memory_space<vmem>>, vector<1x16x128xbf16>
    %6 = vector.shape_cast %5 : vector<1x16x128xbf16> to vector<16x128xbf16>
    %c0_5 = arith.constant 0 : index
    %c0_6 = arith.constant 0 : index
    %7 = vector.load %arg4[%c0_5, %c0_6] : memref<64x256xbf16, #tpu.memory_space<vmem>>, vector<64x256xbf16>
    %c0_7 = arith.constant 0 : index
    %c0_8 = arith.constant 0 : index
    %c0_9 = arith.constant 0 : index
    %8 = vector.load %arg5[%c0_7, %c0_8, %c0_9] : memref<2x1x128xf32, #tpu.memory_space<vmem>>, vector<1x1x128xf32>
    %9 = vector.shape_cast %8 : vector<1x1x128xf32> to vector<1x128xf32>
    %c1_10 = arith.constant 1 : index
    %c0_11 = arith.constant 0 : index
    %c0_12 = arith.constant 0 : index
    %10 = vector.load %arg5[%c1_10, %c0_11, %c0_12] : memref<2x1x128xf32, #tpu.memory_space<vmem>>, vector<1x1x128xf32>
    %11 = vector.shape_cast %10 : vector<1x1x128xf32> to vector<1x128xf32>
    %c0_13 = arith.constant 0 : index
    %c0_14 = arith.constant 0 : index
    %12 = vector.load %arg8[%c0_13, %c0_14] : memref<2x64xf32, #tpu.memory_space<vmem>>, vector<2x64xf32>
    %c0_15 = arith.constant 0 : index
    %c0_16 = arith.constant 0 : index
    %13 = vector.load %arg9[%c0_15, %c0_16] : memref<2x64xf32, #tpu.memory_space<vmem>>, vector<2x64xf32>
    %14 = vector.extract_strided_slice %13 {offsets = [0, 0], sizes = [2, 32], strides = [1, 1]} : vector<2x64xf32> to vector<2x32xf32>
    %15 = vector.extract_strided_slice %13 {offsets = [0, 32], sizes = [2, 32], strides = [1, 1]} : vector<2x64xf32> to vector<2x32xf32>
    %16 = arith.truncf %12 : vector<2x64xf32> to vector<2x64xbf16>
    %cst = arith.constant dense<0.000000e+00> : vector<2x256xf32>
    %17 = tpu.matmul %16, %7, %cst {dimension_numbers = #tpu.dot_dimension_numbers<[1], [0], [0], [1], [0, 0, 1, 1], [], []>} : vector<2x64xbf16>, vector<64x256xbf16>, vector<2x256xf32> -> vector<2x256xf32>
    %c0_17 = arith.constant 0 : index
    %c0_18 = arith.constant 0 : index
    %c0_19 = arith.constant 0 : index
    %18 = vector.load %arg1[%c0_17, %c0_18, %c0_19] : memref<8x2x16xbf16, #tpu.memory_space<vmem>>, vector<1x2x16xbf16>
    %19 = vector.shape_cast %18 : vector<1x2x16xbf16> to vector<2x16xbf16>
    %cst_20 = arith.constant dense<0.000000e+00> : vector<2x128xf32>
    %20 = tpu.matmul %19, %4, %cst_20 {dimension_numbers = #tpu.dot_dimension_numbers<[1], [0], [0], [1], [0, 0, 1, 1], [], []>} : vector<2x16xbf16>, vector<16x128xbf16>, vector<2x128xf32> -> vector<2x128xf32>
    %21 = vector.broadcast %9 : vector<1x128xf32> to vector<2x128xf32>
    %22 = arith.addf %20, %21 : vector<2x128xf32>
    %c7 = arith.constant 7 : index
    %c0_21 = arith.constant 0 : index
    %c0_22 = arith.constant 0 : index
    %23 = vector.load %arg2[%c7, %c0_21, %c0_22] : memref<8x2x16xbf16, #tpu.memory_space<vmem>>, vector<1x2x16xbf16>
    %24 = vector.shape_cast %23 : vector<1x2x16xbf16> to vector<2x16xbf16>
    %cst_23 = arith.constant dense<0.000000e+00> : vector<2x128xf32>
    %25 = tpu.matmul %24, %6, %cst_23 {dimension_numbers = #tpu.dot_dimension_numbers<[1], [0], [0], [1], [0, 0, 1, 1], [], []>} : vector<2x16xbf16>, vector<16x128xbf16>, vector<2x128xf32> -> vector<2x128xf32>
    %26 = vector.broadcast %11 : vector<1x128xf32> to vector<2x128xf32>
    %27 = arith.addf %25, %26 : vector<2x128xf32>
    %28 = vector.extract_strided_slice %17 {offsets = [0, 0], sizes = [2, 128], strides = [1, 1]} : vector<2x256xf32> to vector<2x128xf32>
    %29 = arith.addf %28, %22 : vector<2x128xf32>
    %30 = vector.extract_strided_slice %17 {offsets = [0, 128], sizes = [2, 128], strides = [1, 1]} : vector<2x256xf32> to vector<2x128xf32>
    %31 = arith.addf %30, %27 : vector<2x128xf32>
    %32 = vector.extract_strided_slice %29 {offsets = [0, 0], sizes = [2, 32], strides = [1, 1]} : vector<2x128xf32> to vector<2x32xf32>
    %33 = arith.negf %32 : vector<2x32xf32>
    %34 = math.exp %33 : vector<2x32xf32>
    %cst_24 = arith.constant 1.000000e+00 : f32
    %35 = vector.broadcast %cst_24 : f32 to vector<2x32xf32>
    %36 = arith.addf %35, %34 : vector<2x32xf32>
    %37 = arith.divf %35, %36 : vector<2x32xf32>
    %38 = vector.extract_strided_slice %29 {offsets = [0, 32], sizes = [2, 32], strides = [1, 1]} : vector<2x128xf32> to vector<2x32xf32>
    %39 = arith.negf %38 : vector<2x32xf32>
    %40 = math.exp %39 : vector<2x32xf32>
    %cst_25 = arith.constant 1.000000e+00 : f32
    %41 = vector.broadcast %cst_25 : f32 to vector<2x32xf32>
    %42 = arith.addf %41, %40 : vector<2x32xf32>
    %43 = arith.divf %41, %42 : vector<2x32xf32>
    %44 = vector.extract_strided_slice %29 {offsets = [0, 64], sizes = [2, 32], strides = [1, 1]} : vector<2x128xf32> to vector<2x32xf32>
    %45 = math.tanh %44 : vector<2x32xf32>
    %46 = vector.extract_strided_slice %29 {offsets = [0, 96], sizes = [2, 32], strides = [1, 1]} : vector<2x128xf32> to vector<2x32xf32>
    %47 = arith.negf %46 : vector<2x32xf32>
    %48 = math.exp %47 : vector<2x32xf32>
    %cst_26 = arith.constant 1.000000e+00 : f32
    %49 = vector.broadcast %cst_26 : f32 to vector<2x32xf32>
    %50 = arith.addf %49, %48 : vector<2x32xf32>
    %51 = arith.divf %49, %50 : vector<2x32xf32>
    %52 = arith.mulf %43, %14 : vector<2x32xf32>
    %53 = arith.mulf %37, %45 : vector<2x32xf32>
    %54 = arith.addf %52, %53 : vector<2x32xf32>
    %55 = math.tanh %54 : vector<2x32xf32>
    %56 = arith.mulf %51, %55 : vector<2x32xf32>
    %57 = vector.extract_strided_slice %31 {offsets = [0, 0], sizes = [2, 32], strides = [1, 1]} : vector<2x128xf32> to vector<2x32xf32>
    %58 = arith.negf %57 : vector<2x32xf32>
    %59 = math.exp %58 : vector<2x32xf32>
    %cst_27 = arith.constant 1.000000e+00 : f32
    %60 = vector.broadcast %cst_27 : f32 to vector<2x32xf32>
    %61 = arith.addf %60, %59 : vector<2x32xf32>
    %62 = arith.divf %60, %61 : vector<2x32xf32>
    %63 = vector.extract_strided_slice %31 {offsets = [0, 32], sizes = [2, 32], strides = [1, 1]} : vector<2x128xf32> to vector<2x32xf32>
    %64 = arith.negf %63 : vector<2x32xf32>
    %65 = math.exp %64 : vector<2x32xf32>
    %cst_28 = arith.constant 1.000000e+00 : f32
    %66 = vector.broadcast %cst_28 : f32 to vector<2x32xf32>
    %67 = arith.addf %66, %65 : vector<2x32xf32>
    %68 = arith.divf %66, %67 : vector<2x32xf32>
    %69 = vector.extract_strided_slice %31 {offsets = [0, 64], sizes = [2, 32], strides = [1, 1]} : vector<2x128xf32> to vector<2x32xf32>
    %70 = math.tanh %69 : vector<2x32xf32>
    %71 = vector.extract_strided_slice %31 {offsets = [0, 96], sizes = [2, 32], strides = [1, 1]} : vector<2x128xf32> to vector<2x32xf32>
    %72 = arith.negf %71 : vector<2x32xf32>
    %73 = math.exp %72 : vector<2x32xf32>
    %cst_29 = arith.constant 1.000000e+00 : f32
    %74 = vector.broadcast %cst_29 : f32 to vector<2x32xf32>
    %75 = arith.addf %74, %73 : vector<2x32xf32>
    %76 = arith.divf %74, %75 : vector<2x32xf32>
    %77 = arith.mulf %68, %15 : vector<2x32xf32>
    %78 = arith.mulf %62, %70 : vector<2x32xf32>
    %79 = arith.addf %77, %78 : vector<2x32xf32>
    %80 = math.tanh %79 : vector<2x32xf32>
    %81 = arith.mulf %76, %80 : vector<2x32xf32>
    %82 = arith.truncf %56 : vector<2x32xf32> to vector<2x32xbf16>
    %c0_30 = arith.constant 0 : index
    %c0_31 = arith.constant 0 : index
    %c0_32 = arith.constant 0 : index
    %83 = vector.load %arg6[%c0_30, %c0_31, %c0_32] : memref<8x2x32xbf16, #tpu.memory_space<vmem>>, vector<1x2x32xbf16>
    %84 = vector.shape_cast %83 : vector<1x2x32xbf16> to vector<2x32xbf16>
    %85 = vector.shape_cast %82 : vector<2x32xbf16> to vector<1x2x32xbf16>
    tpu.vector_store %arg6[%c0_30, %c0_31, %c0_32], %85 {strides = array<i32>} : memref<8x2x32xbf16, #tpu.memory_space<vmem>>, vector<1x2x32xbf16>,
    %86 = arith.truncf %81 : vector<2x32xf32> to vector<2x32xbf16>
    %c7_33 = arith.constant 7 : index
    %c0_34 = arith.constant 0 : index
    %c0_35 = arith.constant 0 : index
    %87 = vector.load %arg7[%c7_33, %c0_34, %c0_35] : memref<8x2x32xbf16, #tpu.memory_space<vmem>>, vector<1x2x32xbf16>
    %88 = vector.shape_cast %87 : vector<1x2x32xbf16> to vector<2x32xbf16>
    %89 = vector.shape_cast %86 : vector<2x32xbf16> to vector<1x2x32xbf16>
    tpu.vector_store %arg7[%c7_33, %c0_34, %c0_35], %89 {strides = array<i32>} : memref<8x2x32xbf16, #tpu.memory_space<vmem>>, vector<1x2x32xbf16>,
    %90 = tpu.concatenate %56, %81 in 1 : vector<2x32xf32>, vector<2x32xf32> -> vector<2x64xf32>
    %91 = arith.truncf %90 : vector<2x64xf32> to vector<2x64xbf16>
    %cst_36 = arith.constant dense<0.000000e+00> : vector<2x256xf32>
    %92 = tpu.matmul %91, %7, %cst_36 {dimension_numbers = #tpu.dot_dimension_numbers<[1], [0], [0], [1], [0, 0, 1, 1], [], []>} : vector<2x64xbf16>, vector<64x256xbf16>, vector<2x256xf32> -> vector<2x256xf32>
    %c1_37 = arith.constant 1 : index
    %c0_38 = arith.constant 0 : index
    %c0_39 = arith.constant 0 : index
    %93 = vector.load %arg1[%c1_37, %c0_38, %c0_39] : memref<8x2x16xbf16, #tpu.memory_space<vmem>>, vector<1x2x16xbf16>
    %94 = vector.shape_cast %93 : vector<1x2x16xbf16> to vector<2x16xbf16>
    %cst_40 = arith.constant dense<0.000000e+00> : vector<2x128xf32>
    %95 = tpu.matmul %94, %4, %cst_40 {dimension_numbers = #tpu.dot_dimension_numbers<[1], [0], [0], [1], [0, 0, 1, 1], [], []>} : vector<2x16xbf16>, vector<16x128xbf16>, vector<2x128xf32> -> vector<2x128xf32>
    %96 = vector.broadcast %9 : vector<1x128xf32> to vector<2x128xf32>
    %97 = arith.addf %95, %96 : vector<2x128xf32>
    %c6 = arith.constant 6 : index
    %c0_41 = arith.constant 0 : index
    %c0_42 = arith.constant 0 : index
    %98 = vector.load %arg2[%c6, %c0_41, %c0_42] : memref<8x2x16xbf16, #tpu.memory_space<vmem>>, vector<1x2x16xbf16>
    %99 = vector.shape_cast %98 : vector<1x2x16xbf16> to vector<2x16xbf16>
    %cst_43 = arith.constant dense<0.000000e+00> : vector<2x128xf32>
    %100 = tpu.matmul %99, %6, %cst_43 {dimension_numbers = #tpu.dot_dimension_numbers<[1], [0], [0], [1], [0, 0, 1, 1], [], []>} : vector<2x16xbf16>, vector<16x128xbf16>, vector<2x128xf32> -> vector<2x128xf32>
    %101 = vector.broadcast %11 : vector<1x128xf32> to vector<2x128xf32>
    %102 = arith.addf %100, %101 : vector<2x128xf32>
    %103 = vector.extract_strided_slice %92 {offsets = [0, 0], sizes = [2, 128], strides = [1, 1]} : vector<2x256xf32> to vector<2x128xf32>
    %104 = arith.addf %103, %97 : vector<2x128xf32>
    %105 = vector.extract_strided_slice %92 {offsets = [0, 128], sizes = [2, 128], strides = [1, 1]} : vector<2x256xf32> to vector<2x128xf32>
    %106 = arith.addf %105, %102 : vector<2x128xf32>
    %107 = vector.extract_strided_slice %104 {offsets = [0, 0], sizes = [2, 32], strides = [1, 1]} : vector<2x128xf32> to vector<2x32xf32>
    %108 = arith.negf %107 : vector<2x32xf32>
    %109 = math.exp %108 : vector<2x32xf32>
    %cst_44 = arith.constant 1.000000e+00 : f32
    %110 = vector.broadcast %cst_44 : f32 to vector<2x32xf32>
    %111 = arith.addf %110, %109 : vector<2x32xf32>
    %112 = arith.divf %110, %111 : vector<2x32xf32>
    %113 = vector.extract_strided_slice %104 {offsets = [0, 32], sizes = [2, 32], strides = [1, 1]} : vector<2x128xf32> to vector<2x32xf32>
    %114 = arith.negf %113 : vector<2x32xf32>
    %115 = math.exp %114 : vector<2x32xf32>
    %cst_45 = arith.constant 1.000000e+00 : f32
    %116 = vector.broadcast %cst_45 : f32 to vector<2x32xf32>
    %117 = arith.addf %116, %115 : vector<2x32xf32>
    %118 = arith.divf %116, %117 : vector<2x32xf32>
    %119 = vector.extract_strided_slice %104 {offsets = [0, 64], sizes = [2, 32], strides = [1, 1]} : vector<2x128xf32> to vector<2x32xf32>
    %120 = math.tanh %119 : vector<2x32xf32>
    %121 = vector.extract_strided_slice %104 {offsets = [0, 96], sizes = [2, 32], strides = [1, 1]} : vector<2x128xf32> to vector<2x32xf32>
    %122 = arith.negf %121 : vector<2x32xf32>
    %123 = math.exp %122 : vector<2x32xf32>
    %cst_46 = arith.constant 1.000000e+00 : f32
    %124 = vector.broadcast %cst_46 : f32 to vector<2x32xf32>
    %125 = arith.addf %124, %123 : vector<2x32xf32>
    %126 = arith.divf %124, %125 : vector<2x32xf32>
    %127 = arith.mulf %118, %54 : vector<2x32xf32>
    %128 = arith.mulf %112, %120 : vector<2x32xf32>
    %129 = arith.addf %127, %128 : vector<2x32xf32>
    %130 = math.tanh %129 : vector<2x32xf32>
    %131 = arith.mulf %126, %130 : vector<2x32xf32>
    %132 = vector.extract_strided_slice %106 {offsets = [0, 0], sizes = [2, 32], strides = [1, 1]} : vector<2x128xf32> to vector<2x32xf32>
    %133 = arith.negf %132 : vector<2x32xf32>
    %134 = math.exp %133 : vector<2x32xf32>
    %cst_47 = arith.constant 1.000000e+00 : f32
    %135 = vector.broadcast %cst_47 : f32 to vector<2x32xf32>
    %136 = arith.addf %135, %134 : vector<2x32xf32>
    %137 = arith.divf %135, %136 : vector<2x32xf32>
    %138 = vector.extract_strided_slice %106 {offsets = [0, 32], sizes = [2, 32], strides = [1, 1]} : vector<2x128xf32> to vector<2x32xf32>
    %139 = arith.negf %138 : vector<2x32xf32>
    %140 = math.exp %139 : vector<2x32xf32>
    %cst_48 = arith.constant 1.000000e+00 : f32
    %141 = vector.broadcast %cst_48 : f32 to vector<2x32xf32>
    %142 = arith.addf %141, %140 : vector<2x32xf32>
    %143 = arith.divf %141, %142 : vector<2x32xf32>
    %144 = vector.extract_strided_slice %106 {offsets = [0, 64], sizes = [2, 32], strides = [1, 1]} : vector<2x128xf32> to vector<2x32xf32>
    %145 = math.tanh %144 : vector<2x32xf32>
    %146 = vector.extract_strided_slice %106 {offsets = [0, 96], sizes = [2, 32], strides = [1, 1]} : vector<2x128xf32> to vector<2x32xf32>
    %147 = arith.negf %146 : vector<2x32xf32>
    %148 = math.exp %147 : vector<2x32xf32>
    %cst_49 = arith.constant 1.000000e+00 : f32
    %149 = vector.broadcast %cst_49 : f32 to vector<2x32xf32>
    %150 = arith.addf %149, %148 : vector<2x32xf32>
    %151 = arith.divf %149, %150 : vector<2x32xf32>
    %152 = arith.mulf %143, %79 : vector<2x32xf32>
    %153 = arith.mulf %137, %145 : vector<2x32xf32>
    %154 = arith.addf %152, %153 : vector<2x32xf32>
    %155 = math.tanh %154 : vector<2x32xf32>
    %156 = arith.mulf %151, %155 : vector<2x32xf32>
    %157 = arith.truncf %131 : vector<2x32xf32> to vector<2x32xbf16>
    %c1_50 = arith.constant 1 : index
    %c0_51 = arith.constant 0 : index
    %c0_52 = arith.constant 0 : index
    %158 = vector.load %arg6[%c1_50, %c0_51, %c0_52] : memref<8x2x32xbf16, #tpu.memory_space<vmem>>, vector<1x2x32xbf16>
    %159 = vector.shape_cast %158 : vector<1x2x32xbf16> to vector<2x32xbf16>
    %160 = vector.shape_cast %157 : vector<2x32xbf16> to vector<1x2x32xbf16>
    tpu.vector_store %arg6[%c1_50, %c0_51, %c0_52], %160 {strides = array<i32>} : memref<8x2x32xbf16, #tpu.memory_space<vmem>>, vector<1x2x32xbf16>,
    %161 = arith.truncf %156 : vector<2x32xf32> to vector<2x32xbf16>
    %c6_53 = arith.constant 6 : index
    %c0_54 = arith.constant 0 : index
    %c0_55 = arith.constant 0 : index
    %162 = vector.load %arg7[%c6_53, %c0_54, %c0_55] : memref<8x2x32xbf16, #tpu.memory_space<vmem>>, vector<1x2x32xbf16>
    %163 = vector.shape_cast %162 : vector<1x2x32xbf16> to vector<2x32xbf16>
    %164 = vector.shape_cast %161 : vector<2x32xbf16> to vector<1x2x32xbf16>
    tpu.vector_store %arg7[%c6_53, %c0_54, %c0_55], %164 {strides = array<i32>} : memref<8x2x32xbf16, #tpu.memory_space<vmem>>, vector<1x2x32xbf16>,
    %165 = tpu.concatenate %131, %156 in 1 : vector<2x32xf32>, vector<2x32xf32> -> vector<2x64xf32>
    %166 = arith.truncf %165 : vector<2x64xf32> to vector<2x64xbf16>
    %cst_56 = arith.constant dense<0.000000e+00> : vector<2x256xf32>
    %167 = tpu.matmul %166, %7, %cst_56 {dimension_numbers = #tpu.dot_dimension_numbers<[1], [0], [0], [1], [0, 0, 1, 1], [], []>} : vector<2x64xbf16>, vector<64x256xbf16>, vector<2x256xf32> -> vector<2x256xf32>
    %c2 = arith.constant 2 : index
    %c0_57 = arith.constant 0 : index
    %c0_58 = arith.constant 0 : index
    %168 = vector.load %arg1[%c2, %c0_57, %c0_58] : memref<8x2x16xbf16, #tpu.memory_space<vmem>>, vector<1x2x16xbf16>
    %169 = vector.shape_cast %168 : vector<1x2x16xbf16> to vector<2x16xbf16>
    %cst_59 = arith.constant dense<0.000000e+00> : vector<2x128xf32>
    %170 = tpu.matmul %169, %4, %cst_59 {dimension_numbers = #tpu.dot_dimension_numbers<[1], [0], [0], [1], [0, 0, 1, 1], [], []>} : vector<2x16xbf16>, vector<16x128xbf16>, vector<2x128xf32> -> vector<2x128xf32>
    %171 = vector.broadcast %9 : vector<1x128xf32> to vector<2x128xf32>
    %172 = arith.addf %170, %171 : vector<2x128xf32>
    %c5 = arith.constant 5 : index
    %c0_60 = arith.constant 0 : index
    %c0_61 = arith.constant 0 : index
    %173 = vector.load %arg2[%c5, %c0_60, %c0_61] : memref<8x2x16xbf16, #tpu.memory_space<vmem>>, vector<1x2x16xbf16>
    %174 = vector.shape_cast %173 : vector<1x2x16xbf16> to vector<2x16xbf16>
    %cst_62 = arith.constant dense<0.000000e+00> : vector<2x128xf32>
    %175 = tpu.matmul %174, %6, %cst_62 {dimension_numbers = #tpu.dot_dimension_numbers<[1], [0], [0], [1], [0, 0, 1, 1], [], []>} : vector<2x16xbf16>, vector<16x128xbf16>, vector<2x128xf32> -> vector<2x128xf32>
    %176 = vector.broadcast %11 : vector<1x128xf32> to vector<2x128xf32>
    %177 = arith.addf %175, %176 : vector<2x128xf32>
    %178 = vector.extract_strided_slice %167 {offsets = [0, 0], sizes = [2, 128], strides = [1, 1]} : vector<2x256xf32> to vector<2x128xf32>
    %179 = arith.addf %178, %172 : vector<2x128xf32>
    %180 = vector.extract_strided_slice %167 {offsets = [0, 128], sizes = [2, 128], strides = [1, 1]} : vector<2x256xf32> to vector<2x128xf32>
    %181 = arith.addf %180, %177 : vector<2x128xf32>
    %182 = vector.extract_strided_slice %179 {offsets = [0, 0], sizes = [2, 32], strides = [1, 1]} : vector<2x128xf32> to vector<2x32xf32>
    %183 = arith.negf %182 : vector<2x32xf32>
    %184 = math.exp %183 : vector<2x32xf32>
    %cst_63 = arith.constant 1.000000e+00 : f32
    %185 = vector.broadcast %cst_63 : f32 to vector<2x32xf32>
    %186 = arith.addf %185, %184 : vector<2x32xf32>
    %187 = arith.divf %185, %186 : vector<2x32xf32>
    %188 = vector.extract_strided_slice %179 {offsets = [0, 32], sizes = [2, 32], strides = [1, 1]} : vector<2x128xf32> to vector<2x32xf32>
    %189 = arith.negf %188 : vector<2x32xf32>
    %190 = math.exp %189 : vector<2x32xf32>
    %cst_64 = arith.constant 1.000000e+00 : f32
    %191 = vector.broadcast %cst_64 : f32 to vector<2x32xf32>
    %192 = arith.addf %191, %190 : vector<2x32xf32>
    %193 = arith.divf %191, %192 : vector<2x32xf32>
    %194 = vector.extract_strided_slice %179 {offsets = [0, 64], sizes = [2, 32], strides = [1, 1]} : vector<2x128xf32> to vector<2x32xf32>
    %195 = math.tanh %194 : vector<2x32xf32>
    %196 = vector.extract_strided_slice %179 {offsets = [0, 96], sizes = [2, 32], strides = [1, 1]} : vector<2x128xf32> to vector<2x32xf32>
    %197 = arith.negf %196 : vector<2x32xf32>
    %198 = math.exp %197 : vector<2x32xf32>
    %cst_65 = arith.constant 1.000000e+00 : f32
    %199 = vector.broadcast %cst_65 : f32 to vector<2x32xf32>
    %200 = arith.addf %199, %198 : vector<2x32xf32>
    %201 = arith.divf %199, %200 : vector<2x32xf32>
    %202 = arith.mulf %193, %129 : vector<2x32xf32>
    %203 = arith.mulf %187, %195 : vector<2x32xf32>
    %204 = arith.addf %202, %203 : vector<2x32xf32>
    %205 = math.tanh %204 : vector<2x32xf32>
    %206 = arith.mulf %201, %205 : vector<2x32xf32>
    %207 = vector.extract_strided_slice %181 {offsets = [0, 0], sizes = [2, 32], strides = [1, 1]} : vector<2x128xf32> to vector<2x32xf32>
    %208 = arith.negf %207 : vector<2x32xf32>
    %209 = math.exp %208 : vector<2x32xf32>
    %cst_66 = arith.constant 1.000000e+00 : f32
    %210 = vector.broadcast %cst_66 : f32 to vector<2x32xf32>
    %211 = arith.addf %210, %209 : vector<2x32xf32>
    %212 = arith.divf %210, %211 : vector<2x32xf32>
    %213 = vector.extract_strided_slice %181 {offsets = [0, 32], sizes = [2, 32], strides = [1, 1]} : vector<2x128xf32> to vector<2x32xf32>
    %214 = arith.negf %213 : vector<2x32xf32>
    %215 = math.exp %214 : vector<2x32xf32>
    %cst_67 = arith.constant 1.000000e+00 : f32
    %216 = vector.broadcast %cst_67 : f32 to vector<2x32xf32>
    %217 = arith.addf %216, %215 : vector<2x32xf32>
    %218 = arith.divf %216, %217 : vector<2x32xf32>
    %219 = vector.extract_strided_slice %181 {offsets = [0, 64], sizes = [2, 32], strides = [1, 1]} : vector<2x128xf32> to vector<2x32xf32>
    %220 = math.tanh %219 : vector<2x32xf32>
    %221 = vector.extract_strided_slice %181 {offsets = [0, 96], sizes = [2, 32], strides = [1, 1]} : vector<2x128xf32> to vector<2x32xf32>
    %222 = arith.negf %221 : vector<2x32xf32>
    %223 = math.exp %222 : vector<2x32xf32>
    %cst_68 = arith.constant 1.000000e+00 : f32
    %224 = vector.broadcast %cst_68 : f32 to vector<2x32xf32>
    %225 = arith.addf %224, %223 : vector<2x32xf32>
    %226 = arith.divf %224, %225 : vector<2x32xf32>
    %227 = arith.mulf %218, %154 : vector<2x32xf32>
    %228 = arith.mulf %212, %220 : vector<2x32xf32>
    %229 = arith.addf %227, %228 : vector<2x32xf32>
    %230 = math.tanh %229 : vector<2x32xf32>
    %231 = arith.mulf %226, %230 : vector<2x32xf32>
    %232 = arith.truncf %206 : vector<2x32xf32> to vector<2x32xbf16>
    %c2_69 = arith.constant 2 : index
    %c0_70 = arith.constant 0 : index
    %c0_71 = arith.constant 0 : index
    %233 = vector.load %arg6[%c2_69, %c0_70, %c0_71] : memref<8x2x32xbf16, #tpu.memory_space<vmem>>, vector<1x2x32xbf16>
    %234 = vector.shape_cast %233 : vector<1x2x32xbf16> to vector<2x32xbf16>
    %235 = vector.shape_cast %232 : vector<2x32xbf16> to vector<1x2x32xbf16>
    tpu.vector_store %arg6[%c2_69, %c0_70, %c0_71], %235 {strides = array<i32>} : memref<8x2x32xbf16, #tpu.memory_space<vmem>>, vector<1x2x32xbf16>,
    %236 = arith.truncf %231 : vector<2x32xf32> to vector<2x32xbf16>
    %c5_72 = arith.constant 5 : index
    %c0_73 = arith.constant 0 : index
    %c0_74 = arith.constant 0 : index
    %237 = vector.load %arg7[%c5_72, %c0_73, %c0_74] : memref<8x2x32xbf16, #tpu.memory_space<vmem>>, vector<1x2x32xbf16>
    %238 = vector.shape_cast %237 : vector<1x2x32xbf16> to vector<2x32xbf16>
    %239 = vector.shape_cast %236 : vector<2x32xbf16> to vector<1x2x32xbf16>
    tpu.vector_store %arg7[%c5_72, %c0_73, %c0_74], %239 {strides = array<i32>} : memref<8x2x32xbf16, #tpu.memory_space<vmem>>, vector<1x2x32xbf16>,
    %240 = tpu.concatenate %206, %231 in 1 : vector<2x32xf32>, vector<2x32xf32> -> vector<2x64xf32>
    %241 = arith.truncf %240 : vector<2x64xf32> to vector<2x64xbf16>
    %cst_75 = arith.constant dense<0.000000e+00> : vector<2x256xf32>
    %242 = tpu.matmul %241, %7, %cst_75 {dimension_numbers = #tpu.dot_dimension_numbers<[1], [0], [0], [1], [0, 0, 1, 1], [], []>} : vector<2x64xbf16>, vector<64x256xbf16>, vector<2x256xf32> -> vector<2x256xf32>
    %c3 = arith.constant 3 : index
    %c0_76 = arith.constant 0 : index
    %c0_77 = arith.constant 0 : index
    %243 = vector.load %arg1[%c3, %c0_76, %c0_77] : memref<8x2x16xbf16, #tpu.memory_space<vmem>>, vector<1x2x16xbf16>
    %244 = vector.shape_cast %243 : vector<1x2x16xbf16> to vector<2x16xbf16>
    %cst_78 = arith.constant dense<0.000000e+00> : vector<2x128xf32>
    %245 = tpu.matmul %244, %4, %cst_78 {dimension_numbers = #tpu.dot_dimension_numbers<[1], [0], [0], [1], [0, 0, 1, 1], [], []>} : vector<2x16xbf16>, vector<16x128xbf16>, vector<2x128xf32> -> vector<2x128xf32>
    %246 = vector.broadcast %9 : vector<1x128xf32> to vector<2x128xf32>
    %247 = arith.addf %245, %246 : vector<2x128xf32>
    %c4 = arith.constant 4 : index
    %c0_79 = arith.constant 0 : index
    %c0_80 = arith.constant 0 : index
    %248 = vector.load %arg2[%c4, %c0_79, %c0_80] : memref<8x2x16xbf16, #tpu.memory_space<vmem>>, vector<1x2x16xbf16>
    %249 = vector.shape_cast %248 : vector<1x2x16xbf16> to vector<2x16xbf16>
    %cst_81 = arith.constant dense<0.000000e+00> : vector<2x128xf32>
    %250 = tpu.matmul %249, %6, %cst_81 {dimension_numbers = #tpu.dot_dimension_numbers<[1], [0], [0], [1], [0, 0, 1, 1], [], []>} : vector<2x16xbf16>, vector<16x128xbf16>, vector<2x128xf32> -> vector<2x128xf32>
    %251 = vector.broadcast %11 : vector<1x128xf32> to vector<2x128xf32>
    %252 = arith.addf %250, %251 : vector<2x128xf32>
    %253 = vector.extract_strided_slice %242 {offsets = [0, 0], sizes = [2, 128], strides = [1, 1]} : vector<2x256xf32> to vector<2x128xf32>
    %254 = arith.addf %253, %247 : vector<2x128xf32>
    %255 = vector.extract_strided_slice %242 {offsets = [0, 128], sizes = [2, 128], strides = [1, 1]} : vector<2x256xf32> to vector<2x128xf32>
    %256 = arith.addf %255, %252 : vector<2x128xf32>
    %257 = vector.extract_strided_slice %254 {offsets = [0, 0], sizes = [2, 32], strides = [1, 1]} : vector<2x128xf32> to vector<2x32xf32>
    %258 = arith.negf %257 : vector<2x32xf32>
    %259 = math.exp %258 : vector<2x32xf32>
    %cst_82 = arith.constant 1.000000e+00 : f32
    %260 = vector.broadcast %cst_82 : f32 to vector<2x32xf32>
    %261 = arith.addf %260, %259 : vector<2x32xf32>
    %262 = arith.divf %260, %261 : vector<2x32xf32>
    %263 = vector.extract_strided_slice %254 {offsets = [0, 32], sizes = [2, 32], strides = [1, 1]} : vector<2x128xf32> to vector<2x32xf32>
    %264 = arith.negf %263 : vector<2x32xf32>
    %265 = math.exp %264 : vector<2x32xf32>
    %cst_83 = arith.constant 1.000000e+00 : f32
    %266 = vector.broadcast %cst_83 : f32 to vector<2x32xf32>
    %267 = arith.addf %266, %265 : vector<2x32xf32>
    %268 = arith.divf %266, %267 : vector<2x32xf32>
    %269 = vector.extract_strided_slice %254 {offsets = [0, 64], sizes = [2, 32], strides = [1, 1]} : vector<2x128xf32> to vector<2x32xf32>
    %270 = math.tanh %269 : vector<2x32xf32>
    %271 = vector.extract_strided_slice %254 {offsets = [0, 96], sizes = [2, 32], strides = [1, 1]} : vector<2x128xf32> to vector<2x32xf32>
    %272 = arith.negf %271 : vector<2x32xf32>
    %273 = math.exp %272 : vector<2x32xf32>
    %cst_84 = arith.constant 1.000000e+00 : f32
    %274 = vector.broadcast %cst_84 : f32 to vector<2x32xf32>
    %275 = arith.addf %274, %273 : vector<2x32xf32>
    %276 = arith.divf %274, %275 : vector<2x32xf32>
    %277 = arith.mulf %268, %204 : vector<2x32xf32>
    %278 = arith.mulf %262, %270 : vector<2x32xf32>
    %279 = arith.addf %277, %278 : vector<2x32xf32>
    %280 = math.tanh %279 : vector<2x32xf32>
    %281 = arith.mulf %276, %280 : vector<2x32xf32>
    %282 = vector.extract_strided_slice %256 {offsets = [0, 0], sizes = [2, 32], strides = [1, 1]} : vector<2x128xf32> to vector<2x32xf32>
    %283 = arith.negf %282 : vector<2x32xf32>
    %284 = math.exp %283 : vector<2x32xf32>
    %cst_85 = arith.constant 1.000000e+00 : f32
    %285 = vector.broadcast %cst_85 : f32 to vector<2x32xf32>
    %286 = arith.addf %285, %284 : vector<2x32xf32>
    %287 = arith.divf %285, %286 : vector<2x32xf32>
    %288 = vector.extract_strided_slice %256 {offsets = [0, 32], sizes = [2, 32], strides = [1, 1]} : vector<2x128xf32> to vector<2x32xf32>
    %289 = arith.negf %288 : vector<2x32xf32>
    %290 = math.exp %289 : vector<2x32xf32>
    %cst_86 = arith.constant 1.000000e+00 : f32
    %291 = vector.broadcast %cst_86 : f32 to vector<2x32xf32>
    %292 = arith.addf %291, %290 : vector<2x32xf32>
    %293 = arith.divf %291, %292 : vector<2x32xf32>
    %294 = vector.extract_strided_slice %256 {offsets = [0, 64], sizes = [2, 32], strides = [1, 1]} : vector<2x128xf32> to vector<2x32xf32>
    %295 = math.tanh %294 : vector<2x32xf32>
    %296 = vector.extract_strided_slice %256 {offsets = [0, 96], sizes = [2, 32], strides = [1, 1]} : vector<2x128xf32> to vector<2x32xf32>
    %297 = arith.negf %296 : vector<2x32xf32>
    %298 = math.exp %297 : vector<2x32xf32>
    %cst_87 = arith.constant 1.000000e+00 : f32
    %299 = vector.broadcast %cst_87 : f32 to vector<2x32xf32>
    %300 = arith.addf %299, %298 : vector<2x32xf32>
    %301 = arith.divf %299, %300 : vector<2x32xf32>
    %302 = arith.mulf %293, %229 : vector<2x32xf32>
    %303 = arith.mulf %287, %295 : vector<2x32xf32>
    %304 = arith.addf %302, %303 : vector<2x32xf32>
    %305 = math.tanh %304 : vector<2x32xf32>
    %306 = arith.mulf %301, %305 : vector<2x32xf32>
    %307 = arith.truncf %281 : vector<2x32xf32> to vector<2x32xbf16>
    %c3_88 = arith.constant 3 : index
    %c0_89 = arith.constant 0 : index
    %c0_90 = arith.constant 0 : index
    %308 = vector.load %arg6[%c3_88, %c0_89, %c0_90] : memref<8x2x32xbf16, #tpu.memory_space<vmem>>, vector<1x2x32xbf16>
    %309 = vector.shape_cast %308 : vector<1x2x32xbf16> to vector<2x32xbf16>
    %310 = vector.shape_cast %307 : vector<2x32xbf16> to vector<1x2x32xbf16>
    tpu.vector_store %arg6[%c3_88, %c0_89, %c0_90], %310 {strides = array<i32>} : memref<8x2x32xbf16, #tpu.memory_space<vmem>>, vector<1x2x32xbf16>,
    %311 = arith.truncf %306 : vector<2x32xf32> to vector<2x32xbf16>
    %c4_91 = arith.constant 4 : index
    %c0_92 = arith.constant 0 : index
    %c0_93 = arith.constant 0 : index
    %312 = vector.load %arg7[%c4_91, %c0_92, %c0_93] : memref<8x2x32xbf16, #tpu.memory_space<vmem>>, vector<1x2x32xbf16>
    %313 = vector.shape_cast %312 : vector<1x2x32xbf16> to vector<2x32xbf16>
    %314 = vector.shape_cast %311 : vector<2x32xbf16> to vector<1x2x32xbf16>
    tpu.vector_store %arg7[%c4_91, %c0_92, %c0_93], %314 {strides = array<i32>} : memref<8x2x32xbf16, #tpu.memory_space<vmem>>, vector<1x2x32xbf16>,
    %315 = tpu.concatenate %281, %306 in 1 : vector<2x32xf32>, vector<2x32xf32> -> vector<2x64xf32>
    %316 = arith.truncf %315 : vector<2x64xf32> to vector<2x64xbf16>
    %cst_94 = arith.constant dense<0.000000e+00> : vector<2x256xf32>
    %317 = tpu.matmul %316, %7, %cst_94 {dimension_numbers = #tpu.dot_dimension_numbers<[1], [0], [0], [1], [0, 0, 1, 1], [], []>} : vector<2x64xbf16>, vector<64x256xbf16>, vector<2x256xf32> -> vector<2x256xf32>
    %c4_95 = arith.constant 4 : index
    %c0_96 = arith.constant 0 : index
    %c0_97 = arith.constant 0 : index
    %318 = vector.load %arg1[%c4_95, %c0_96, %c0_97] : memref<8x2x16xbf16, #tpu.memory_space<vmem>>, vector<1x2x16xbf16>
    %319 = vector.shape_cast %318 : vector<1x2x16xbf16> to vector<2x16xbf16>
    %cst_98 = arith.constant dense<0.000000e+00> : vector<2x128xf32>
    %320 = tpu.matmul %319, %4, %cst_98 {dimension_numbers = #tpu.dot_dimension_numbers<[1], [0], [0], [1], [0, 0, 1, 1], [], []>} : vector<2x16xbf16>, vector<16x128xbf16>, vector<2x128xf32> -> vector<2x128xf32>
    %321 = vector.broadcast %9 : vector<1x128xf32> to vector<2x128xf32>
    %322 = arith.addf %320, %321 : vector<2x128xf32>
    %c3_99 = arith.constant 3 : index
    %c0_100 = arith.constant 0 : index
    %c0_101 = arith.constant 0 : index
    %323 = vector.load %arg2[%c3_99, %c0_100, %c0_101] : memref<8x2x16xbf16, #tpu.memory_space<vmem>>, vector<1x2x16xbf16>
    %324 = vector.shape_cast %323 : vector<1x2x16xbf16> to vector<2x16xbf16>
    %cst_102 = arith.constant dense<0.000000e+00> : vector<2x128xf32>
    %325 = tpu.matmul %324, %6, %cst_102 {dimension_numbers = #tpu.dot_dimension_numbers<[1], [0], [0], [1], [0, 0, 1, 1], [], []>} : vector<2x16xbf16>, vector<16x128xbf16>, vector<2x128xf32> -> vector<2x128xf32>
    %326 = vector.broadcast %11 : vector<1x128xf32> to vector<2x128xf32>
    %327 = arith.addf %325, %326 : vector<2x128xf32>
    %328 = vector.extract_strided_slice %317 {offsets = [0, 0], sizes = [2, 128], strides = [1, 1]} : vector<2x256xf32> to vector<2x128xf32>
    %329 = arith.addf %328, %322 : vector<2x128xf32>
    %330 = vector.extract_strided_slice %317 {offsets = [0, 128], sizes = [2, 128], strides = [1, 1]} : vector<2x256xf32> to vector<2x128xf32>
    %331 = arith.addf %330, %327 : vector<2x128xf32>
    %332 = vector.extract_strided_slice %329 {offsets = [0, 0], sizes = [2, 32], strides = [1, 1]} : vector<2x128xf32> to vector<2x32xf32>
    %333 = arith.negf %332 : vector<2x32xf32>
    %334 = math.exp %333 : vector<2x32xf32>
    %cst_103 = arith.constant 1.000000e+00 : f32
    %335 = vector.broadcast %cst_103 : f32 to vector<2x32xf32>
    %336 = arith.addf %335, %334 : vector<2x32xf32>
    %337 = arith.divf %335, %336 : vector<2x32xf32>
    %338 = vector.extract_strided_slice %329 {offsets = [0, 32], sizes = [2, 32], strides = [1, 1]} : vector<2x128xf32> to vector<2x32xf32>
    %339 = arith.negf %338 : vector<2x32xf32>
    %340 = math.exp %339 : vector<2x32xf32>
    %cst_104 = arith.constant 1.000000e+00 : f32
    %341 = vector.broadcast %cst_104 : f32 to vector<2x32xf32>
    %342 = arith.addf %341, %340 : vector<2x32xf32>
    %343 = arith.divf %341, %342 : vector<2x32xf32>
    %344 = vector.extract_strided_slice %329 {offsets = [0, 64], sizes = [2, 32], strides = [1, 1]} : vector<2x128xf32> to vector<2x32xf32>
    %345 = math.tanh %344 : vector<2x32xf32>
    %346 = vector.extract_strided_slice %329 {offsets = [0, 96], sizes = [2, 32], strides = [1, 1]} : vector<2x128xf32> to vector<2x32xf32>
    %347 = arith.negf %346 : vector<2x32xf32>
    %348 = math.exp %347 : vector<2x32xf32>
    %cst_105 = arith.constant 1.000000e+00 : f32
    %349 = vector.broadcast %cst_105 : f32 to vector<2x32xf32>
    %350 = arith.addf %349, %348 : vector<2x32xf32>
    %351 = arith.divf %349, %350 : vector<2x32xf32>
    %352 = arith.mulf %343, %279 : vector<2x32xf32>
    %353 = arith.mulf %337, %345 : vector<2x32xf32>
    %354 = arith.addf %352, %353 : vector<2x32xf32>
    %355 = math.tanh %354 : vector<2x32xf32>
    %356 = arith.mulf %351, %355 : vector<2x32xf32>
    %357 = vector.extract_strided_slice %331 {offsets = [0, 0], sizes = [2, 32], strides = [1, 1]} : vector<2x128xf32> to vector<2x32xf32>
    %358 = arith.negf %357 : vector<2x32xf32>
    %359 = math.exp %358 : vector<2x32xf32>
    %cst_106 = arith.constant 1.000000e+00 : f32
    %360 = vector.broadcast %cst_106 : f32 to vector<2x32xf32>
    %361 = arith.addf %360, %359 : vector<2x32xf32>
    %362 = arith.divf %360, %361 : vector<2x32xf32>
    %363 = vector.extract_strided_slice %331 {offsets = [0, 32], sizes = [2, 32], strides = [1, 1]} : vector<2x128xf32> to vector<2x32xf32>
    %364 = arith.negf %363 : vector<2x32xf32>
    %365 = math.exp %364 : vector<2x32xf32>
    %cst_107 = arith.constant 1.000000e+00 : f32
    %366 = vector.broadcast %cst_107 : f32 to vector<2x32xf32>
    %367 = arith.addf %366, %365 : vector<2x32xf32>
    %368 = arith.divf %366, %367 : vector<2x32xf32>
    %369 = vector.extract_strided_slice %331 {offsets = [0, 64], sizes = [2, 32], strides = [1, 1]} : vector<2x128xf32> to vector<2x32xf32>
    %370 = math.tanh %369 : vector<2x32xf32>
    %371 = vector.extract_strided_slice %331 {offsets = [0, 96], sizes = [2, 32], strides = [1, 1]} : vector<2x128xf32> to vector<2x32xf32>
    %372 = arith.negf %371 : vector<2x32xf32>
    %373 = math.exp %372 : vector<2x32xf32>
    %cst_108 = arith.constant 1.000000e+00 : f32
    %374 = vector.broadcast %cst_108 : f32 to vector<2x32xf32>
    %375 = arith.addf %374, %373 : vector<2x32xf32>
    %376 = arith.divf %374, %375 : vector<2x32xf32>
    %377 = arith.mulf %368, %304 : vector<2x32xf32>
    %378 = arith.mulf %362, %370 : vector<2x32xf32>
    %379 = arith.addf %377, %378 : vector<2x32xf32>
    %380 = math.tanh %379 : vector<2x32xf32>
    %381 = arith.mulf %376, %380 : vector<2x32xf32>
    %382 = arith.truncf %356 : vector<2x32xf32> to vector<2x32xbf16>
    %c4_109 = arith.constant 4 : index
    %c0_110 = arith.constant 0 : index
    %c0_111 = arith.constant 0 : index
    %383 = vector.load %arg6[%c4_109, %c0_110, %c0_111] : memref<8x2x32xbf16, #tpu.memory_space<vmem>>, vector<1x2x32xbf16>
    %384 = vector.shape_cast %383 : vector<1x2x32xbf16> to vector<2x32xbf16>
    %385 = vector.shape_cast %382 : vector<2x32xbf16> to vector<1x2x32xbf16>
    tpu.vector_store %arg6[%c4_109, %c0_110, %c0_111], %385 {strides = array<i32>} : memref<8x2x32xbf16, #tpu.memory_space<vmem>>, vector<1x2x32xbf16>,
    %386 = arith.truncf %381 : vector<2x32xf32> to vector<2x32xbf16>
    %c3_112 = arith.constant 3 : index
    %c0_113 = arith.constant 0 : index
    %c0_114 = arith.constant 0 : index
    %387 = vector.load %arg7[%c3_112, %c0_113, %c0_114] : memref<8x2x32xbf16, #tpu.memory_space<vmem>>, vector<1x2x32xbf16>
    %388 = vector.shape_cast %387 : vector<1x2x32xbf16> to vector<2x32xbf16>
    %389 = vector.shape_cast %386 : vector<2x32xbf16> to vector<1x2x32xbf16>
    tpu.vector_store %arg7[%c3_112, %c0_113, %c0_114], %389 {strides = array<i32>} : memref<8x2x32xbf16, #tpu.memory_space<vmem>>, vector<1x2x32xbf16>,
    %390 = tpu.concatenate %356, %381 in 1 : vector<2x32xf32>, vector<2x32xf32> -> vector<2x64xf32>
    %391 = arith.truncf %390 : vector<2x64xf32> to vector<2x64xbf16>
    %cst_115 = arith.constant dense<0.000000e+00> : vector<2x256xf32>
    %392 = tpu.matmul %391, %7, %cst_115 {dimension_numbers = #tpu.dot_dimension_numbers<[1], [0], [0], [1], [0, 0, 1, 1], [], []>} : vector<2x64xbf16>, vector<64x256xbf16>, vector<2x256xf32> -> vector<2x256xf32>
    %c5_116 = arith.constant 5 : index
    %c0_117 = arith.constant 0 : index
    %c0_118 = arith.constant 0 : index
    %393 = vector.load %arg1[%c5_116, %c0_117, %c0_118] : memref<8x2x16xbf16, #tpu.memory_space<vmem>>, vector<1x2x16xbf16>
    %394 = vector.shape_cast %393 : vector<1x2x16xbf16> to vector<2x16xbf16>
    %cst_119 = arith.constant dense<0.000000e+00> : vector<2x128xf32>
    %395 = tpu.matmul %394, %4, %cst_119 {dimension_numbers = #tpu.dot_dimension_numbers<[1], [0], [0], [1], [0, 0, 1, 1], [], []>} : vector<2x16xbf16>, vector<16x128xbf16>, vector<2x128xf32> -> vector<2x128xf32>
    %396 = vector.broadcast %9 : vector<1x128xf32> to vector<2x128xf32>
    %397 = arith.addf %395, %396 : vector<2x128xf32>
    %c2_120 = arith.constant 2 : index
    %c0_121 = arith.constant 0 : index
    %c0_122 = arith.constant 0 : index
    %398 = vector.load %arg2[%c2_120, %c0_121, %c0_122] : memref<8x2x16xbf16, #tpu.memory_space<vmem>>, vector<1x2x16xbf16>
    %399 = vector.shape_cast %398 : vector<1x2x16xbf16> to vector<2x16xbf16>
    %cst_123 = arith.constant dense<0.000000e+00> : vector<2x128xf32>
    %400 = tpu.matmul %399, %6, %cst_123 {dimension_numbers = #tpu.dot_dimension_numbers<[1], [0], [0], [1], [0, 0, 1, 1], [], []>} : vector<2x16xbf16>, vector<16x128xbf16>, vector<2x128xf32> -> vector<2x128xf32>
    %401 = vector.broadcast %11 : vector<1x128xf32> to vector<2x128xf32>
    %402 = arith.addf %400, %401 : vector<2x128xf32>
    %403 = vector.extract_strided_slice %392 {offsets = [0, 0], sizes = [2, 128], strides = [1, 1]} : vector<2x256xf32> to vector<2x128xf32>
    %404 = arith.addf %403, %397 : vector<2x128xf32>
    %405 = vector.extract_strided_slice %392 {offsets = [0, 128], sizes = [2, 128], strides = [1, 1]} : vector<2x256xf32> to vector<2x128xf32>
    %406 = arith.addf %405, %402 : vector<2x128xf32>
    %407 = vector.extract_strided_slice %404 {offsets = [0, 0], sizes = [2, 32], strides = [1, 1]} : vector<2x128xf32> to vector<2x32xf32>
    %408 = arith.negf %407 : vector<2x32xf32>
    %409 = math.exp %408 : vector<2x32xf32>
    %cst_124 = arith.constant 1.000000e+00 : f32
    %410 = vector.broadcast %cst_124 : f32 to vector<2x32xf32>
    %411 = arith.addf %410, %409 : vector<2x32xf32>
    %412 = arith.divf %410, %411 : vector<2x32xf32>
    %413 = vector.extract_strided_slice %404 {offsets = [0, 32], sizes = [2, 32], strides = [1, 1]} : vector<2x128xf32> to vector<2x32xf32>
    %414 = arith.negf %413 : vector<2x32xf32>
    %415 = math.exp %414 : vector<2x32xf32>
    %cst_125 = arith.constant 1.000000e+00 : f32
    %416 = vector.broadcast %cst_125 : f32 to vector<2x32xf32>
    %417 = arith.addf %416, %415 : vector<2x32xf32>
    %418 = arith.divf %416, %417 : vector<2x32xf32>
    %419 = vector.extract_strided_slice %404 {offsets = [0, 64], sizes = [2, 32], strides = [1, 1]} : vector<2x128xf32> to vector<2x32xf32>
    %420 = math.tanh %419 : vector<2x32xf32>
    %421 = vector.extract_strided_slice %404 {offsets = [0, 96], sizes = [2, 32], strides = [1, 1]} : vector<2x128xf32> to vector<2x32xf32>
    %422 = arith.negf %421 : vector<2x32xf32>
    %423 = math.exp %422 : vector<2x32xf32>
    %cst_126 = arith.constant 1.000000e+00 : f32
    %424 = vector.broadcast %cst_126 : f32 to vector<2x32xf32>
    %425 = arith.addf %424, %423 : vector<2x32xf32>
    %426 = arith.divf %424, %425 : vector<2x32xf32>
    %427 = arith.mulf %418, %354 : vector<2x32xf32>
    %428 = arith.mulf %412, %420 : vector<2x32xf32>
    %429 = arith.addf %427, %428 : vector<2x32xf32>
    %430 = math.tanh %429 : vector<2x32xf32>
    %431 = arith.mulf %426, %430 : vector<2x32xf32>
    %432 = vector.extract_strided_slice %406 {offsets = [0, 0], sizes = [2, 32], strides = [1, 1]} : vector<2x128xf32> to vector<2x32xf32>
    %433 = arith.negf %432 : vector<2x32xf32>
    %434 = math.exp %433 : vector<2x32xf32>
    %cst_127 = arith.constant 1.000000e+00 : f32
    %435 = vector.broadcast %cst_127 : f32 to vector<2x32xf32>
    %436 = arith.addf %435, %434 : vector<2x32xf32>
    %437 = arith.divf %435, %436 : vector<2x32xf32>
    %438 = vector.extract_strided_slice %406 {offsets = [0, 32], sizes = [2, 32], strides = [1, 1]} : vector<2x128xf32> to vector<2x32xf32>
    %439 = arith.negf %438 : vector<2x32xf32>
    %440 = math.exp %439 : vector<2x32xf32>
    %cst_128 = arith.constant 1.000000e+00 : f32
    %441 = vector.broadcast %cst_128 : f32 to vector<2x32xf32>
    %442 = arith.addf %441, %440 : vector<2x32xf32>
    %443 = arith.divf %441, %442 : vector<2x32xf32>
    %444 = vector.extract_strided_slice %406 {offsets = [0, 64], sizes = [2, 32], strides = [1, 1]} : vector<2x128xf32> to vector<2x32xf32>
    %445 = math.tanh %444 : vector<2x32xf32>
    %446 = vector.extract_strided_slice %406 {offsets = [0, 96], sizes = [2, 32], strides = [1, 1]} : vector<2x128xf32> to vector<2x32xf32>
    %447 = arith.negf %446 : vector<2x32xf32>
    %448 = math.exp %447 : vector<2x32xf32>
    %cst_129 = arith.constant 1.000000e+00 : f32
    %449 = vector.broadcast %cst_129 : f32 to vector<2x32xf32>
    %450 = arith.addf %449, %448 : vector<2x32xf32>
    %451 = arith.divf %449, %450 : vector<2x32xf32>
    %452 = arith.mulf %443, %379 : vector<2x32xf32>
    %453 = arith.mulf %437, %445 : vector<2x32xf32>
    %454 = arith.addf %452, %453 : vector<2x32xf32>
    %455 = math.tanh %454 : vector<2x32xf32>
    %456 = arith.mulf %451, %455 : vector<2x32xf32>
    %457 = arith.truncf %431 : vector<2x32xf32> to vector<2x32xbf16>
    %c5_130 = arith.constant 5 : index
    %c0_131 = arith.constant 0 : index
    %c0_132 = arith.constant 0 : index
    %458 = vector.load %arg6[%c5_130, %c0_131, %c0_132] : memref<8x2x32xbf16, #tpu.memory_space<vmem>>, vector<1x2x32xbf16>
    %459 = vector.shape_cast %458 : vector<1x2x32xbf16> to vector<2x32xbf16>
    %460 = vector.shape_cast %457 : vector<2x32xbf16> to vector<1x2x32xbf16>
    tpu.vector_store %arg6[%c5_130, %c0_131, %c0_132], %460 {strides = array<i32>} : memref<8x2x32xbf16, #tpu.memory_space<vmem>>, vector<1x2x32xbf16>,
    %461 = arith.truncf %456 : vector<2x32xf32> to vector<2x32xbf16>
    %c2_133 = arith.constant 2 : index
    %c0_134 = arith.constant 0 : index
    %c0_135 = arith.constant 0 : index
    %462 = vector.load %arg7[%c2_133, %c0_134, %c0_135] : memref<8x2x32xbf16, #tpu.memory_space<vmem>>, vector<1x2x32xbf16>
    %463 = vector.shape_cast %462 : vector<1x2x32xbf16> to vector<2x32xbf16>
    %464 = vector.shape_cast %461 : vector<2x32xbf16> to vector<1x2x32xbf16>
    tpu.vector_store %arg7[%c2_133, %c0_134, %c0_135], %464 {strides = array<i32>} : memref<8x2x32xbf16, #tpu.memory_space<vmem>>, vector<1x2x32xbf16>,
    %465 = tpu.concatenate %431, %456 in 1 : vector<2x32xf32>, vector<2x32xf32> -> vector<2x64xf32>
    %466 = arith.truncf %465 : vector<2x64xf32> to vector<2x64xbf16>
    %cst_136 = arith.constant dense<0.000000e+00> : vector<2x256xf32>
    %467 = tpu.matmul %466, %7, %cst_136 {dimension_numbers = #tpu.dot_dimension_numbers<[1], [0], [0], [1], [0, 0, 1, 1], [], []>} : vector<2x64xbf16>, vector<64x256xbf16>, vector<2x256xf32> -> vector<2x256xf32>
    %c6_137 = arith.constant 6 : index
    %c0_138 = arith.constant 0 : index
    %c0_139 = arith.constant 0 : index
    %468 = vector.load %arg1[%c6_137, %c0_138, %c0_139] : memref<8x2x16xbf16, #tpu.memory_space<vmem>>, vector<1x2x16xbf16>
    %469 = vector.shape_cast %468 : vector<1x2x16xbf16> to vector<2x16xbf16>
    %cst_140 = arith.constant dense<0.000000e+00> : vector<2x128xf32>
    %470 = tpu.matmul %469, %4, %cst_140 {dimension_numbers = #tpu.dot_dimension_numbers<[1], [0], [0], [1], [0, 0, 1, 1], [], []>} : vector<2x16xbf16>, vector<16x128xbf16>, vector<2x128xf32> -> vector<2x128xf32>
    %471 = vector.broadcast %9 : vector<1x128xf32> to vector<2x128xf32>
    %472 = arith.addf %470, %471 : vector<2x128xf32>
    %c1_141 = arith.constant 1 : index
    %c0_142 = arith.constant 0 : index
    %c0_143 = arith.constant 0 : index
    %473 = vector.load %arg2[%c1_141, %c0_142, %c0_143] : memref<8x2x16xbf16, #tpu.memory_space<vmem>>, vector<1x2x16xbf16>
    %474 = vector.shape_cast %473 : vector<1x2x16xbf16> to vector<2x16xbf16>
    %cst_144 = arith.constant dense<0.000000e+00> : vector<2x128xf32>
    %475 = tpu.matmul %474, %6, %cst_144 {dimension_numbers = #tpu.dot_dimension_numbers<[1], [0], [0], [1], [0, 0, 1, 1], [], []>} : vector<2x16xbf16>, vector<16x128xbf16>, vector<2x128xf32> -> vector<2x128xf32>
    %476 = vector.broadcast %11 : vector<1x128xf32> to vector<2x128xf32>
    %477 = arith.addf %475, %476 : vector<2x128xf32>
    %478 = vector.extract_strided_slice %467 {offsets = [0, 0], sizes = [2, 128], strides = [1, 1]} : vector<2x256xf32> to vector<2x128xf32>
    %479 = arith.addf %478, %472 : vector<2x128xf32>
    %480 = vector.extract_strided_slice %467 {offsets = [0, 128], sizes = [2, 128], strides = [1, 1]} : vector<2x256xf32> to vector<2x128xf32>
    %481 = arith.addf %480, %477 : vector<2x128xf32>
    %482 = vector.extract_strided_slice %479 {offsets = [0, 0], sizes = [2, 32], strides = [1, 1]} : vector<2x128xf32> to vector<2x32xf32>
    %483 = arith.negf %482 : vector<2x32xf32>
    %484 = math.exp %483 : vector<2x32xf32>
    %cst_145 = arith.constant 1.000000e+00 : f32
    %485 = vector.broadcast %cst_145 : f32 to vector<2x32xf32>
    %486 = arith.addf %485, %484 : vector<2x32xf32>
    %487 = arith.divf %485, %486 : vector<2x32xf32>
    %488 = vector.extract_strided_slice %479 {offsets = [0, 32], sizes = [2, 32], strides = [1, 1]} : vector<2x128xf32> to vector<2x32xf32>
    %489 = arith.negf %488 : vector<2x32xf32>
    %490 = math.exp %489 : vector<2x32xf32>
    %cst_146 = arith.constant 1.000000e+00 : f32
    %491 = vector.broadcast %cst_146 : f32 to vector<2x32xf32>
    %492 = arith.addf %491, %490 : vector<2x32xf32>
    %493 = arith.divf %491, %492 : vector<2x32xf32>
    %494 = vector.extract_strided_slice %479 {offsets = [0, 64], sizes = [2, 32], strides = [1, 1]} : vector<2x128xf32> to vector<2x32xf32>
    %495 = math.tanh %494 : vector<2x32xf32>
    %496 = vector.extract_strided_slice %479 {offsets = [0, 96], sizes = [2, 32], strides = [1, 1]} : vector<2x128xf32> to vector<2x32xf32>
    %497 = arith.negf %496 : vector<2x32xf32>
    %498 = math.exp %497 : vector<2x32xf32>
    %cst_147 = arith.constant 1.000000e+00 : f32
    %499 = vector.broadcast %cst_147 : f32 to vector<2x32xf32>
    %500 = arith.addf %499, %498 : vector<2x32xf32>
    %501 = arith.divf %499, %500 : vector<2x32xf32>
    %502 = arith.mulf %493, %429 : vector<2x32xf32>
    %503 = arith.mulf %487, %495 : vector<2x32xf32>
    %504 = arith.addf %502, %503 : vector<2x32xf32>
    %505 = math.tanh %504 : vector<2x32xf32>
    %506 = arith.mulf %501, %505 : vector<2x32xf32>
    %507 = vector.extract_strided_slice %481 {offsets = [0, 0], sizes = [2, 32], strides = [1, 1]} : vector<2x128xf32> to vector<2x32xf32>
    %508 = arith.negf %507 : vector<2x32xf32>
    %509 = math.exp %508 : vector<2x32xf32>
    %cst_148 = arith.constant 1.000000e+00 : f32
    %510 = vector.broadcast %cst_148 : f32 to vector<2x32xf32>
    %511 = arith.addf %510, %509 : vector<2x32xf32>
    %512 = arith.divf %510, %511 : vector<2x32xf32>
    %513 = vector.extract_strided_slice %481 {offsets = [0, 32], sizes = [2, 32], strides = [1, 1]} : vector<2x128xf32> to vector<2x32xf32>
    %514 = arith.negf %513 : vector<2x32xf32>
    %515 = math.exp %514 : vector<2x32xf32>
    %cst_149 = arith.constant 1.000000e+00 : f32
    %516 = vector.broadcast %cst_149 : f32 to vector<2x32xf32>
    %517 = arith.addf %516, %515 : vector<2x32xf32>
    %518 = arith.divf %516, %517 : vector<2x32xf32>
    %519 = vector.extract_strided_slice %481 {offsets = [0, 64], sizes = [2, 32], strides = [1, 1]} : vector<2x128xf32> to vector<2x32xf32>
    %520 = math.tanh %519 : vector<2x32xf32>
    %521 = vector.extract_strided_slice %481 {offsets = [0, 96], sizes = [2, 32], strides = [1, 1]} : vector<2x128xf32> to vector<2x32xf32>
    %522 = arith.negf %521 : vector<2x32xf32>
    %523 = math.exp %522 : vector<2x32xf32>
    %cst_150 = arith.constant 1.000000e+00 : f32
    %524 = vector.broadcast %cst_150 : f32 to vector<2x32xf32>
    %525 = arith.addf %524, %523 : vector<2x32xf32>
    %526 = arith.divf %524, %525 : vector<2x32xf32>
    %527 = arith.mulf %518, %454 : vector<2x32xf32>
    %528 = arith.mulf %512, %520 : vector<2x32xf32>
    %529 = arith.addf %527, %528 : vector<2x32xf32>
    %530 = math.tanh %529 : vector<2x32xf32>
    %531 = arith.mulf %526, %530 : vector<2x32xf32>
    %532 = arith.truncf %506 : vector<2x32xf32> to vector<2x32xbf16>
    %c6_151 = arith.constant 6 : index
    %c0_152 = arith.constant 0 : index
    %c0_153 = arith.constant 0 : index
    %533 = vector.load %arg6[%c6_151, %c0_152, %c0_153] : memref<8x2x32xbf16, #tpu.memory_space<vmem>>, vector<1x2x32xbf16>
    %534 = vector.shape_cast %533 : vector<1x2x32xbf16> to vector<2x32xbf16>
    %535 = vector.shape_cast %532 : vector<2x32xbf16> to vector<1x2x32xbf16>
    tpu.vector_store %arg6[%c6_151, %c0_152, %c0_153], %535 {strides = array<i32>} : memref<8x2x32xbf16, #tpu.memory_space<vmem>>, vector<1x2x32xbf16>,
    %536 = arith.truncf %531 : vector<2x32xf32> to vector<2x32xbf16>
    %c1_154 = arith.constant 1 : index
    %c0_155 = arith.constant 0 : index
    %c0_156 = arith.constant 0 : index
    %537 = vector.load %arg7[%c1_154, %c0_155, %c0_156] : memref<8x2x32xbf16, #tpu.memory_space<vmem>>, vector<1x2x32xbf16>
    %538 = vector.shape_cast %537 : vector<1x2x32xbf16> to vector<2x32xbf16>
    %539 = vector.shape_cast %536 : vector<2x32xbf16> to vector<1x2x32xbf16>
    tpu.vector_store %arg7[%c1_154, %c0_155, %c0_156], %539 {strides = array<i32>} : memref<8x2x32xbf16, #tpu.memory_space<vmem>>, vector<1x2x32xbf16>,
    %540 = tpu.concatenate %506, %531 in 1 : vector<2x32xf32>, vector<2x32xf32> -> vector<2x64xf32>
    %541 = arith.truncf %540 : vector<2x64xf32> to vector<2x64xbf16>
    %cst_157 = arith.constant dense<0.000000e+00> : vector<2x256xf32>
    %542 = tpu.matmul %541, %7, %cst_157 {dimension_numbers = #tpu.dot_dimension_numbers<[1], [0], [0], [1], [0, 0, 1, 1], [], []>} : vector<2x64xbf16>, vector<64x256xbf16>, vector<2x256xf32> -> vector<2x256xf32>
    %c7_158 = arith.constant 7 : index
    %c0_159 = arith.constant 0 : index
    %c0_160 = arith.constant 0 : index
    %543 = vector.load %arg1[%c7_158, %c0_159, %c0_160] : memref<8x2x16xbf16, #tpu.memory_space<vmem>>, vector<1x2x16xbf16>
    %544 = vector.shape_cast %543 : vector<1x2x16xbf16> to vector<2x16xbf16>
    %cst_161 = arith.constant dense<0.000000e+00> : vector<2x128xf32>
    %545 = tpu.matmul %544, %4, %cst_161 {dimension_numbers = #tpu.dot_dimension_numbers<[1], [0], [0], [1], [0, 0, 1, 1], [], []>} : vector<2x16xbf16>, vector<16x128xbf16>, vector<2x128xf32> -> vector<2x128xf32>
    %546 = vector.broadcast %9 : vector<1x128xf32> to vector<2x128xf32>
    %547 = arith.addf %545, %546 : vector<2x128xf32>
    %c0_162 = arith.constant 0 : index
    %c0_163 = arith.constant 0 : index
    %c0_164 = arith.constant 0 : index
    %548 = vector.load %arg2[%c0_162, %c0_163, %c0_164] : memref<8x2x16xbf16, #tpu.memory_space<vmem>>, vector<1x2x16xbf16>
    %549 = vector.shape_cast %548 : vector<1x2x16xbf16> to vector<2x16xbf16>
    %cst_165 = arith.constant dense<0.000000e+00> : vector<2x128xf32>
    %550 = tpu.matmul %549, %6, %cst_165 {dimension_numbers = #tpu.dot_dimension_numbers<[1], [0], [0], [1], [0, 0, 1, 1], [], []>} : vector<2x16xbf16>, vector<16x128xbf16>, vector<2x128xf32> -> vector<2x128xf32>
    %551 = vector.broadcast %11 : vector<1x128xf32> to vector<2x128xf32>
    %552 = arith.addf %550, %551 : vector<2x128xf32>
    %553 = vector.extract_strided_slice %542 {offsets = [0, 0], sizes = [2, 128], strides = [1, 1]} : vector<2x256xf32> to vector<2x128xf32>
    %554 = arith.addf %553, %547 : vector<2x128xf32>
    %555 = vector.extract_strided_slice %542 {offsets = [0, 128], sizes = [2, 128], strides = [1, 1]} : vector<2x256xf32> to vector<2x128xf32>
    %556 = arith.addf %555, %552 : vector<2x128xf32>
    %557 = vector.extract_strided_slice %554 {offsets = [0, 0], sizes = [2, 32], strides = [1, 1]} : vector<2x128xf32> to vector<2x32xf32>
    %558 = arith.negf %557 : vector<2x32xf32>
    %559 = math.exp %558 : vector<2x32xf32>
    %cst_166 = arith.constant 1.000000e+00 : f32
    %560 = vector.broadcast %cst_166 : f32 to vector<2x32xf32>
    %561 = arith.addf %560, %559 : vector<2x32xf32>
    %562 = arith.divf %560, %561 : vector<2x32xf32>
    %563 = vector.extract_strided_slice %554 {offsets = [0, 32], sizes = [2, 32], strides = [1, 1]} : vector<2x128xf32> to vector<2x32xf32>
    %564 = arith.negf %563 : vector<2x32xf32>
    %565 = math.exp %564 : vector<2x32xf32>
    %cst_167 = arith.constant 1.000000e+00 : f32
    %566 = vector.broadcast %cst_167 : f32 to vector<2x32xf32>
    %567 = arith.addf %566, %565 : vector<2x32xf32>
    %568 = arith.divf %566, %567 : vector<2x32xf32>
    %569 = vector.extract_strided_slice %554 {offsets = [0, 64], sizes = [2, 32], strides = [1, 1]} : vector<2x128xf32> to vector<2x32xf32>
    %570 = math.tanh %569 : vector<2x32xf32>
    %571 = vector.extract_strided_slice %554 {offsets = [0, 96], sizes = [2, 32], strides = [1, 1]} : vector<2x128xf32> to vector<2x32xf32>
    %572 = arith.negf %571 : vector<2x32xf32>
    %573 = math.exp %572 : vector<2x32xf32>
    %cst_168 = arith.constant 1.000000e+00 : f32
    %574 = vector.broadcast %cst_168 : f32 to vector<2x32xf32>
    %575 = arith.addf %574, %573 : vector<2x32xf32>
    %576 = arith.divf %574, %575 : vector<2x32xf32>
    %577 = arith.mulf %568, %504 : vector<2x32xf32>
    %578 = arith.mulf %562, %570 : vector<2x32xf32>
    %579 = arith.addf %577, %578 : vector<2x32xf32>
    %580 = math.tanh %579 : vector<2x32xf32>
    %581 = arith.mulf %576, %580 : vector<2x32xf32>
    %582 = vector.extract_strided_slice %556 {offsets = [0, 0], sizes = [2, 32], strides = [1, 1]} : vector<2x128xf32> to vector<2x32xf32>
    %583 = arith.negf %582 : vector<2x32xf32>
    %584 = math.exp %583 : vector<2x32xf32>
    %cst_169 = arith.constant 1.000000e+00 : f32
    %585 = vector.broadcast %cst_169 : f32 to vector<2x32xf32>
    %586 = arith.addf %585, %584 : vector<2x32xf32>
    %587 = arith.divf %585, %586 : vector<2x32xf32>
    %588 = vector.extract_strided_slice %556 {offsets = [0, 32], sizes = [2, 32], strides = [1, 1]} : vector<2x128xf32> to vector<2x32xf32>
    %589 = arith.negf %588 : vector<2x32xf32>
    %590 = math.exp %589 : vector<2x32xf32>
    %cst_170 = arith.constant 1.000000e+00 : f32
    %591 = vector.broadcast %cst_170 : f32 to vector<2x32xf32>
    %592 = arith.addf %591, %590 : vector<2x32xf32>
    %593 = arith.divf %591, %592 : vector<2x32xf32>
    %594 = vector.extract_strided_slice %556 {offsets = [0, 64], sizes = [2, 32], strides = [1, 1]} : vector<2x128xf32> to vector<2x32xf32>
    %595 = math.tanh %594 : vector<2x32xf32>
    %596 = vector.extract_strided_slice %556 {offsets = [0, 96], sizes = [2, 32], strides = [1, 1]} : vector<2x128xf32> to vector<2x32xf32>
    %597 = arith.negf %596 : vector<2x32xf32>
    %598 = math.exp %597 : vector<2x32xf32>
    %cst_171 = arith.constant 1.000000e+00 : f32
    %599 = vector.broadcast %cst_171 : f32 to vector<2x32xf32>
    %600 = arith.addf %599, %598 : vector<2x32xf32>
    %601 = arith.divf %599, %600 : vector<2x32xf32>
    %602 = arith.mulf %593, %529 : vector<2x32xf32>
    %603 = arith.mulf %587, %595 : vector<2x32xf32>
    %604 = arith.addf %602, %603 : vector<2x32xf32>
    %605 = math.tanh %604 : vector<2x32xf32>
    %606 = arith.mulf %601, %605 : vector<2x32xf32>
    %607 = arith.truncf %581 : vector<2x32xf32> to vector<2x32xbf16>
    %c7_172 = arith.constant 7 : index
    %c0_173 = arith.constant 0 : index
    %c0_174 = arith.constant 0 : index
    %608 = vector.load %arg6[%c7_172, %c0_173, %c0_174] : memref<8x2x32xbf16, #tpu.memory_space<vmem>>, vector<1x2x32xbf16>
    %609 = vector.shape_cast %608 : vector<1x2x32xbf16> to vector<2x32xbf16>
    %610 = vector.shape_cast %607 : vector<2x32xbf16> to vector<1x2x32xbf16>
    tpu.vector_store %arg6[%c7_172, %c0_173, %c0_174], %610 {strides = array<i32>} : memref<8x2x32xbf16, #tpu.memory_space<vmem>>, vector<1x2x32xbf16>,
    %611 = arith.truncf %606 : vector<2x32xf32> to vector<2x32xbf16>
    %c0_175 = arith.constant 0 : index
    %c0_176 = arith.constant 0 : index
    %c0_177 = arith.constant 0 : index
    %612 = vector.load %arg7[%c0_175, %c0_176, %c0_177] : memref<8x2x32xbf16, #tpu.memory_space<vmem>>, vector<1x2x32xbf16>
    %613 = vector.shape_cast %612 : vector<1x2x32xbf16> to vector<2x32xbf16>
    %614 = vector.shape_cast %611 : vector<2x32xbf16> to vector<1x2x32xbf16>
    tpu.vector_store %arg7[%c0_175, %c0_176, %c0_177], %614 {strides = array<i32>} : memref<8x2x32xbf16, #tpu.memory_space<vmem>>, vector<1x2x32xbf16>,
    %615 = tpu.concatenate %581, %606 in 1 : vector<2x32xf32>, vector<2x32xf32> -> vector<2x64xf32>
    %c0_178 = arith.constant 0 : index
    %c0_179 = arith.constant 0 : index
    %616 = vector.load %arg8[%c0_178, %c0_179] : memref<2x64xf32, #tpu.memory_space<vmem>>, vector<2x64xf32>
    tpu.vector_store %arg8[%c0_178, %c0_179], %615 {strides = array<i32>} : memref<2x64xf32, #tpu.memory_space<vmem>>, vector<2x64xf32>,
    %617 = tpu.concatenate %579, %604 in 1 : vector<2x32xf32>, vector<2x32xf32> -> vector<2x64xf32>
    %c0_180 = arith.constant 0 : index
    %c0_181 = arith.constant 0 : index
    %618 = vector.load %arg9[%c0_180, %c0_181] : memref<2x64xf32, #tpu.memory_space<vmem>>, vector<2x64xf32>
    tpu.vector_store %arg9[%c0_180, %c0_181], %617 {strides = array<i32>} : memref<2x64xf32, #tpu.memory_space<vmem>>, vector<2x64xf32>,
    return
  }
  func.func @transform_0(%arg0: i32) -> (i32, i32, i32) {
    %c0_i32 = arith.constant 0 : i32
    %c0_i32_0 = arith.constant 0 : i32
    %c0_i32_1 = arith.constant 0 : i32
    return %arg0, %c0_i32, %c0_i32_0 : i32, i32, i32
  }
  func.func @transform_1(%arg0: i32) -> (i32, i32, i32) {
    %c0_i32 = arith.constant 0 : i32
    %0 = arith.subi %c0_i32, %arg0 : i32
    %c0_i32_0 = arith.constant 0 : i32
    %c0_i32_1 = arith.constant 0 : i32
    %c0_i32_2 = arith.constant 0 : i32
    return %0, %c0_i32_0, %c0_i32_1 : i32, i32, i32
  }
  func.func @transform_2(%arg0: i32) -> (i32, i32, i32) {
    %c0_i32 = arith.constant 0 : i32
    %c0_i32_0 = arith.constant 0 : i32
    %c0_i32_1 = arith.constant 0 : i32
    %c0_i32_2 = arith.constant 0 : i32
    return %c0_i32, %c0_i32_0, %c0_i32_1 : i32, i32, i32
  }
  func.func @transform_3(%arg0: i32) -> (i32, i32) {
    %c0_i32 = arith.constant 0 : i32
    %c0_i32_0 = arith.constant 0 : i32
    %c0_i32_1 = arith.constant 0 : i32
    return %c0_i32, %c0_i32_0 : i32, i32
  }
  func.func @transform_4(%arg0: i32) -> (i32, i32, i32) {
    %c0_i32 = arith.constant 0 : i32
    %c0_i32_0 = arith.constant 0 : i32
    %c0_i32_1 = arith.constant 0 : i32
    %c0_i32_2 = arith.constant 0 : i32
    return %c0_i32, %c0_i32_0, %c0_i32_1 : i32, i32, i32
  }
  func.func @transform_5(%arg0: i32) -> (i32, i32, i32) {
    %c0_i32 = arith.constant 0 : i32
    %c0_i32_0 = arith.constant 0 : i32
    %c0_i32_1 = arith.constant 0 : i32
    return %arg0, %c0_i32, %c0_i32_0 : i32, i32, i32
  }
  func.func @transform_6(%arg0: i32) -> (i32, i32, i32) {
    %c0_i32 = arith.constant 0 : i32
    %0 = arith.subi %c0_i32, %arg0 : i32
    %c0_i32_0 = arith.constant 0 : i32
    %c0_i32_1 = arith.constant 0 : i32
    %c0_i32_2 = arith.constant 0 : i32
    return %0, %c0_i32_0, %c0_i32_1 : i32, i32, i32
  }
}

module attributes {stable_mosaic.version = 11 : i64} {
  func.func @_bilstm_kernel(%arg0: i32, %arg1: memref<8x2x64xbf16, #tpu.memory_space<vmem>>, %arg2: memref<8x2x64xbf16, #tpu.memory_space<vmem>>, %arg3: memref<2x64x128xbf16, #tpu.memory_space<vmem>>, %arg4: memref<64x256xbf16, #tpu.memory_space<vmem>>, %arg5: memref<2x1x128xf32, #tpu.memory_space<vmem>>, %arg6: memref<8x2x32xbf16, #tpu.memory_space<vmem>>, %arg7: memref<8x2x32xbf16, #tpu.memory_space<vmem>>, %arg8: memref<2x64xf32, #tpu.memory_space<vmem>>, %arg9: memref<2x64xf32, #tpu.memory_space<vmem>>) attributes {dimension_semantics = [#tpu.dimension_semantics<arbitrary>], iteration_bounds = array<i64: 1>, scalar_prefetch = 0 : i64, scratch_operands = 2 : i64, tpu.core_type = #tpu.core_type<tc>, window_params = [{transform_indices = @transform_0, window_bounds = array<i64: 8, 2, 64>}, {transform_indices = @transform_1, window_bounds = array<i64: 8, 2, 64>}, {pipeline_mode = #tpu.pipeline_mode<synchronous>, transform_indices = @transform_2, window_bounds = array<i64: 2, 64, 128>}, {pipeline_mode = #tpu.pipeline_mode<synchronous>, transform_indices = @transform_3, window_bounds = array<i64: 64, 256>}, {pipeline_mode = #tpu.pipeline_mode<synchronous>, transform_indices = @transform_4, window_bounds = array<i64: 2, 1, 128>}, {transform_indices = @transform_5, window_bounds = array<i64: 8, 2, 32>}, {transform_indices = @transform_6, window_bounds = array<i64: 8, 2, 32>}]} {
    %c0_i32 = arith.constant 0 : i32
    %0 = arith.cmpi eq, %arg0, %c0_i32 : i32
    %1 = arith.extui %0 : i1 to i32
    %c0_i32_0 = arith.constant 0 : i32
    %2 = arith.cmpi ne, %1, %c0_i32_0 : i32
    scf.if %2 {
      %cst_182 = arith.constant 0.000000e+00 : f32
      %619 = vector.broadcast %cst_182 : f32 to vector<2x64xf32>
      %c0_183 = arith.constant 0 : index
      %c0_184 = arith.constant 0 : index
      %620 = vector.load %arg8[%c0_183, %c0_184] : memref<2x64xf32, #tpu.memory_space<vmem>>, vector<2x64xf32>
      tpu.vector_store %arg8[%c0_183, %c0_184], %619 {strides = array<i32>} : memref<2x64xf32, #tpu.memory_space<vmem>>, vector<2x64xf32>,
      %cst_185 = arith.constant 0.000000e+00 : f32
      %621 = vector.broadcast %cst_185 : f32 to vector<2x64xf32>
      %c0_186 = arith.constant 0 : index
      %c0_187 = arith.constant 0 : index
      %622 = vector.load %arg9[%c0_186, %c0_187] : memref<2x64xf32, #tpu.memory_space<vmem>>, vector<2x64xf32>
      tpu.vector_store %arg9[%c0_186, %c0_187], %621 {strides = array<i32>} : memref<2x64xf32, #tpu.memory_space<vmem>>, vector<2x64xf32>,
    } else {
    }
    %c0 = arith.constant 0 : index
    %c0_1 = arith.constant 0 : index
    %c0_2 = arith.constant 0 : index
    %3 = vector.load %arg3[%c0, %c0_1, %c0_2] : memref<2x64x128xbf16, #tpu.memory_space<vmem>>, vector<1x64x128xbf16>
    %4 = vector.shape_cast %3 : vector<1x64x128xbf16> to vector<64x128xbf16>
    %c1 = arith.constant 1 : index
    %c0_3 = arith.constant 0 : index
    %c0_4 = arith.constant 0 : index
    %5 = vector.load %arg3[%c1, %c0_3, %c0_4] : memref<2x64x128xbf16, #tpu.memory_space<vmem>>, vector<1x64x128xbf16>
    %6 = vector.shape_cast %5 : vector<1x64x128xbf16> to vector<64x128xbf16>
    %c0_5 = arith.constant 0 : index
    %c0_6 = arith.constant 0 : index
    %7 = vector.load %arg4[%c0_5, %c0_6] : memref<64x256xbf16, #tpu.memory_space<vmem>>, vector<64x256xbf16>
    %c0_7 = arith.constant 0 : index
    %c0_8 = arith.constant 0 : index
    %c0_9 = arith.constant 0 : index
    %8 = vector.load %arg5[%c0_7, %c0_8, %c0_9] : memref<2x1x128xf32, #tpu.memory_space<vmem>>, vector<1x1x128xf32>
    %9 = vector.shape_cast %8 : vector<1x1x128xf32> to vector<1x128xf32>
    %c1_10 = arith.constant 1 : index
    %c0_11 = arith.constant 0 : index
    %c0_12 = arith.constant 0 : index
    %10 = vector.load %arg5[%c1_10, %c0_11, %c0_12] : memref<2x1x128xf32, #tpu.memory_space<vmem>>, vector<1x1x128xf32>
    %11 = vector.shape_cast %10 : vector<1x1x128xf32> to vector<1x128xf32>
    %c0_13 = arith.constant 0 : index
    %c0_14 = arith.constant 0 : index
    %12 = vector.load %arg8[%c0_13, %c0_14] : memref<2x64xf32, #tpu.memory_space<vmem>>, vector<2x64xf32>
    %c0_15 = arith.constant 0 : index
    %c0_16 = arith.constant 0 : index
    %13 = vector.load %arg9[%c0_15, %c0_16] : memref<2x64xf32, #tpu.memory_space<vmem>>, vector<2x64xf32>
    %14 = vector.extract_strided_slice %13 {offsets = [0, 0], sizes = [2, 32], strides = [1, 1]} : vector<2x64xf32> to vector<2x32xf32>
    %15 = vector.extract_strided_slice %13 {offsets = [0, 32], sizes = [2, 32], strides = [1, 1]} : vector<2x64xf32> to vector<2x32xf32>
    %16 = arith.truncf %12 : vector<2x64xf32> to vector<2x64xbf16>
    %cst = arith.constant dense<0.000000e+00> : vector<2x256xf32>
    %17 = tpu.matmul %16, %7, %cst {dimension_numbers = #tpu.dot_dimension_numbers<[1], [0], [0], [1], [0, 0, 1, 1], [], []>} : vector<2x64xbf16>, vector<64x256xbf16>, vector<2x256xf32> -> vector<2x256xf32>
    %c0_17 = arith.constant 0 : index
    %c0_18 = arith.constant 0 : index
    %c0_19 = arith.constant 0 : index
    %18 = vector.load %arg1[%c0_17, %c0_18, %c0_19] : memref<8x2x64xbf16, #tpu.memory_space<vmem>>, vector<1x2x64xbf16>
    %19 = vector.shape_cast %18 : vector<1x2x64xbf16> to vector<2x64xbf16>
    %cst_20 = arith.constant dense<0.000000e+00> : vector<2x128xf32>
    %20 = tpu.matmul %19, %4, %cst_20 {dimension_numbers = #tpu.dot_dimension_numbers<[1], [0], [0], [1], [0, 0, 1, 1], [], []>} : vector<2x64xbf16>, vector<64x128xbf16>, vector<2x128xf32> -> vector<2x128xf32>
    %21 = vector.broadcast %9 : vector<1x128xf32> to vector<2x128xf32>
    %22 = arith.addf %20, %21 : vector<2x128xf32>
    %c7 = arith.constant 7 : index
    %c0_21 = arith.constant 0 : index
    %c0_22 = arith.constant 0 : index
    %23 = vector.load %arg2[%c7, %c0_21, %c0_22] : memref<8x2x64xbf16, #tpu.memory_space<vmem>>, vector<1x2x64xbf16>
    %24 = vector.shape_cast %23 : vector<1x2x64xbf16> to vector<2x64xbf16>
    %cst_23 = arith.constant dense<0.000000e+00> : vector<2x128xf32>
    %25 = tpu.matmul %24, %6, %cst_23 {dimension_numbers = #tpu.dot_dimension_numbers<[1], [0], [0], [1], [0, 0, 1, 1], [], []>} : vector<2x64xbf16>, vector<64x128xbf16>, vector<2x128xf32> -> vector<2x128xf32>
    %26 = vector.broadcast %11 : vector<1x128xf32> to vector<2x128xf32>
    %27 = arith.addf %25, %26 : vector<2x128xf32>
    %28 = vector.extract_strided_slice %17 {offsets = [0, 0], sizes = [2, 128], strides = [1, 1]} : vector<2x256xf32> to vector<2x128xf32>
    %29 = arith.addf %28, %22 : vector<2x128xf32>
    %30 = vector.extract_strided_slice %17 {offsets = [0, 128], sizes = [2, 128], strides = [1, 1]} : vector<2x256xf32> to vector<2x128xf32>
    %31 = arith.addf %30, %27 : vector<2x128xf32>
    %32 = vector.extract_strided_slice %29 {offsets = [0, 0], sizes = [2, 32], strides = [1, 1]} : vector<2x128xf32> to vector<2x32xf32>
    %33 = arith.negf %32 : vector<2x32xf32>
    %34 = math.exp %33 : vector<2x32xf32>
    %cst_24 = arith.constant 1.000000e+00 : f32
    %35 = vector.broadcast %cst_24 : f32 to vector<2x32xf32>
    %36 = arith.addf %35, %34 : vector<2x32xf32>
    %37 = arith.divf %35, %36 : vector<2x32xf32>
    %38 = vector.extract_strided_slice %29 {offsets = [0, 32], sizes = [2, 32], strides = [1, 1]} : vector<2x128xf32> to vector<2x32xf32>
    %39 = arith.negf %38 : vector<2x32xf32>
    %40 = math.exp %39 : vector<2x32xf32>
    %cst_25 = arith.constant 1.000000e+00 : f32
    %41 = vector.broadcast %cst_25 : f32 to vector<2x32xf32>
    %42 = arith.addf %41, %40 : vector<2x32xf32>
    %43 = arith.divf %41, %42 : vector<2x32xf32>
    %44 = vector.extract_strided_slice %29 {offsets = [0, 64], sizes = [2, 32], strides = [1, 1]} : vector<2x128xf32> to vector<2x32xf32>
    %45 = math.tanh %44 : vector<2x32xf32>
    %46 = vector.extract_strided_slice %29 {offsets = [0, 96], sizes = [2, 32], strides = [1, 1]} : vector<2x128xf32> to vector<2x32xf32>
    %47 = arith.negf %46 : vector<2x32xf32>
    %48 = math.exp %47 : vector<2x32xf32>
    %cst_26 = arith.constant 1.000000e+00 : f32
    %49 = vector.broadcast %cst_26 : f32 to vector<2x32xf32>
    %50 = arith.addf %49, %48 : vector<2x32xf32>
    %51 = arith.divf %49, %50 : vector<2x32xf32>
    %52 = arith.mulf %43, %14 : vector<2x32xf32>
    %53 = arith.mulf %37, %45 : vector<2x32xf32>
    %54 = arith.addf %52, %53 : vector<2x32xf32>
    %55 = math.tanh %54 : vector<2x32xf32>
    %56 = arith.mulf %51, %55 : vector<2x32xf32>
    %57 = vector.extract_strided_slice %31 {offsets = [0, 0], sizes = [2, 32], strides = [1, 1]} : vector<2x128xf32> to vector<2x32xf32>
    %58 = arith.negf %57 : vector<2x32xf32>
    %59 = math.exp %58 : vector<2x32xf32>
    %cst_27 = arith.constant 1.000000e+00 : f32
    %60 = vector.broadcast %cst_27 : f32 to vector<2x32xf32>
    %61 = arith.addf %60, %59 : vector<2x32xf32>
    %62 = arith.divf %60, %61 : vector<2x32xf32>
    %63 = vector.extract_strided_slice %31 {offsets = [0, 32], sizes = [2, 32], strides = [1, 1]} : vector<2x128xf32> to vector<2x32xf32>
    %64 = arith.negf %63 : vector<2x32xf32>
    %65 = math.exp %64 : vector<2x32xf32>
    %cst_28 = arith.constant 1.000000e+00 : f32
    %66 = vector.broadcast %cst_28 : f32 to vector<2x32xf32>
    %67 = arith.addf %66, %65 : vector<2x32xf32>
    %68 = arith.divf %66, %67 : vector<2x32xf32>
    %69 = vector.extract_strided_slice %31 {offsets = [0, 64], sizes = [2, 32], strides = [1, 1]} : vector<2x128xf32> to vector<2x32xf32>
    %70 = math.tanh %69 : vector<2x32xf32>
    %71 = vector.extract_strided_slice %31 {offsets = [0, 96], sizes = [2, 32], strides = [1, 1]} : vector<2x128xf32> to vector<2x32xf32>
    %72 = arith.negf %71 : vector<2x32xf32>
    %73 = math.exp %72 : vector<2x32xf32>
    %cst_29 = arith.constant 1.000000e+00 : f32
    %74 = vector.broadcast %cst_29 : f32 to vector<2x32xf32>
    %75 = arith.addf %74, %73 : vector<2x32xf32>
    %76 = arith.divf %74, %75 : vector<2x32xf32>
    %77 = arith.mulf %68, %15 : vector<2x32xf32>
    %78 = arith.mulf %62, %70 : vector<2x32xf32>
    %79 = arith.addf %77, %78 : vector<2x32xf32>
    %80 = math.tanh %79 : vector<2x32xf32>
    %81 = arith.mulf %76, %80 : vector<2x32xf32>
    %82 = arith.truncf %56 : vector<2x32xf32> to vector<2x32xbf16>
    %c0_30 = arith.constant 0 : index
    %c0_31 = arith.constant 0 : index
    %c0_32 = arith.constant 0 : index
    %83 = vector.load %arg6[%c0_30, %c0_31, %c0_32] : memref<8x2x32xbf16, #tpu.memory_space<vmem>>, vector<1x2x32xbf16>
    %84 = vector.shape_cast %83 : vector<1x2x32xbf16> to vector<2x32xbf16>
    %85 = vector.shape_cast %82 : vector<2x32xbf16> to vector<1x2x32xbf16>
    tpu.vector_store %arg6[%c0_30, %c0_31, %c0_32], %85 {strides = array<i32>} : memref<8x2x32xbf16, #tpu.memory_space<vmem>>, vector<1x2x32xbf16>,
    %86 = arith.truncf %81 : vector<2x32xf32> to vector<2x32xbf16>
    %c7_33 = arith.constant 7 : index
    %c0_34 = arith.constant 0 : index
    %c0_35 = arith.constant 0 : index
    %87 = vector.load %arg7[%c7_33, %c0_34, %c0_35] : memref<8x2x32xbf16, #tpu.memory_space<vmem>>, vector<1x2x32xbf16>
    %88 = vector.shape_cast %87 : vector<1x2x32xbf16> to vector<2x32xbf16>
    %89 = vector.shape_cast %86 : vector<2x32xbf16> to vector<1x2x32xbf16>
    tpu.vector_store %arg7[%c7_33, %c0_34, %c0_35], %89 {strides = array<i32>} : memref<8x2x32xbf16, #tpu.memory_space<vmem>>, vector<1x2x32xbf16>,
    %90 = tpu.concatenate %56, %81 in 1 : vector<2x32xf32>, vector<2x32xf32> -> vector<2x64xf32>
    %91 = arith.truncf %90 : vector<2x64xf32> to vector<2x64xbf16>
    %cst_36 = arith.constant dense<0.000000e+00> : vector<2x256xf32>
    %92 = tpu.matmul %91, %7, %cst_36 {dimension_numbers = #tpu.dot_dimension_numbers<[1], [0], [0], [1], [0, 0, 1, 1], [], []>} : vector<2x64xbf16>, vector<64x256xbf16>, vector<2x256xf32> -> vector<2x256xf32>
    %c1_37 = arith.constant 1 : index
    %c0_38 = arith.constant 0 : index
    %c0_39 = arith.constant 0 : index
    %93 = vector.load %arg1[%c1_37, %c0_38, %c0_39] : memref<8x2x64xbf16, #tpu.memory_space<vmem>>, vector<1x2x64xbf16>
    %94 = vector.shape_cast %93 : vector<1x2x64xbf16> to vector<2x64xbf16>
    %cst_40 = arith.constant dense<0.000000e+00> : vector<2x128xf32>
    %95 = tpu.matmul %94, %4, %cst_40 {dimension_numbers = #tpu.dot_dimension_numbers<[1], [0], [0], [1], [0, 0, 1, 1], [], []>} : vector<2x64xbf16>, vector<64x128xbf16>, vector<2x128xf32> -> vector<2x128xf32>
    %96 = vector.broadcast %9 : vector<1x128xf32> to vector<2x128xf32>
    %97 = arith.addf %95, %96 : vector<2x128xf32>
    %c6 = arith.constant 6 : index
    %c0_41 = arith.constant 0 : index
    %c0_42 = arith.constant 0 : index
    %98 = vector.load %arg2[%c6, %c0_41, %c0_42] : memref<8x2x64xbf16, #tpu.memory_space<vmem>>, vector<1x2x64xbf16>
    %99 = vector.shape_cast %98 : vector<1x2x64xbf16> to vector<2x64xbf16>
    %cst_43 = arith.constant dense<0.000000e+00> : vector<2x128xf32>
    %100 = tpu.matmul %99, %6, %cst_43 {dimension_numbers = #tpu.dot_dimension_numbers<[1], [0], [0], [1], [0, 0, 1, 1], [], []>} : vector<2x64xbf16>, vector<64x128xbf16>, vector<2x128xf32> -> vector<2x128xf32>
    %101 = vector.broadcast %11 : vector<1x128xf32> to vector<2x128xf32>
    %102 = arith.addf %100, %101 : vector<2x128xf32>
    %103 = vector.extract_strided_slice %92 {offsets = [0, 0], sizes = [2, 128], strides = [1, 1]} : vector<2x256xf32> to vector<2x128xf32>
    %104 = arith.addf %103, %97 : vector<2x128xf32>
    %105 = vector.extract_strided_slice %92 {offsets = [0, 128], sizes = [2, 128], strides = [1, 1]} : vector<2x256xf32> to vector<2x128xf32>
    %106 = arith.addf %105, %102 : vector<2x128xf32>
    %107 = vector.extract_strided_slice %104 {offsets = [0, 0], sizes = [2, 32], strides = [1, 1]} : vector<2x128xf32> to vector<2x32xf32>
    %108 = arith.negf %107 : vector<2x32xf32>
    %109 = math.exp %108 : vector<2x32xf32>
    %cst_44 = arith.constant 1.000000e+00 : f32
    %110 = vector.broadcast %cst_44 : f32 to vector<2x32xf32>
    %111 = arith.addf %110, %109 : vector<2x32xf32>
    %112 = arith.divf %110, %111 : vector<2x32xf32>
    %113 = vector.extract_strided_slice %104 {offsets = [0, 32], sizes = [2, 32], strides = [1, 1]} : vector<2x128xf32> to vector<2x32xf32>
    %114 = arith.negf %113 : vector<2x32xf32>
    %115 = math.exp %114 : vector<2x32xf32>
    %cst_45 = arith.constant 1.000000e+00 : f32
    %116 = vector.broadcast %cst_45 : f32 to vector<2x32xf32>
    %117 = arith.addf %116, %115 : vector<2x32xf32>
    %118 = arith.divf %116, %117 : vector<2x32xf32>
    %119 = vector.extract_strided_slice %104 {offsets = [0, 64], sizes = [2, 32], strides = [1, 1]} : vector<2x128xf32> to vector<2x32xf32>
    %120 = math.tanh %119 : vector<2x32xf32>
    %121 = vector.extract_strided_slice %104 {offsets = [0, 96], sizes = [2, 32], strides = [1, 1]} : vector<2x128xf32> to vector<2x32xf32>
    %122 = arith.negf %121 : vector<2x32xf32>
    %123 = math.exp %122 : vector<2x32xf32>
    %cst_46 = arith.constant 1.000000e+00 : f32
    %124 = vector.broadcast %cst_46 : f32 to vector<2x32xf32>
    %125 = arith.addf %124, %123 : vector<2x32xf32>
    %126 = arith.divf %124, %125 : vector<2x32xf32>
    %127 = arith.mulf %118, %54 : vector<2x32xf32>
    %128 = arith.mulf %112, %120 : vector<2x32xf32>
    %129 = arith.addf %127, %128 : vector<2x32xf32>
    %130 = math.tanh %129 : vector<2x32xf32>
    %131 = arith.mulf %126, %130 : vector<2x32xf32>
    %132 = vector.extract_strided_slice %106 {offsets = [0, 0], sizes = [2, 32], strides = [1, 1]} : vector<2x128xf32> to vector<2x32xf32>
    %133 = arith.negf %132 : vector<2x32xf32>
    %134 = math.exp %133 : vector<2x32xf32>
    %cst_47 = arith.constant 1.000000e+00 : f32
    %135 = vector.broadcast %cst_47 : f32 to vector<2x32xf32>
    %136 = arith.addf %135, %134 : vector<2x32xf32>
    %137 = arith.divf %135, %136 : vector<2x32xf32>
    %138 = vector.extract_strided_slice %106 {offsets = [0, 32], sizes = [2, 32], strides = [1, 1]} : vector<2x128xf32> to vector<2x32xf32>
    %139 = arith.negf %138 : vector<2x32xf32>
    %140 = math.exp %139 : vector<2x32xf32>
    %cst_48 = arith.constant 1.000000e+00 : f32
    %141 = vector.broadcast %cst_48 : f32 to vector<2x32xf32>
    %142 = arith.addf %141, %140 : vector<2x32xf32>
    %143 = arith.divf %141, %142 : vector<2x32xf32>
    %144 = vector.extract_strided_slice %106 {offsets = [0, 64], sizes = [2, 32], strides = [1, 1]} : vector<2x128xf32> to vector<2x32xf32>
    %145 = math.tanh %144 : vector<2x32xf32>
    %146 = vector.extract_strided_slice %106 {offsets = [0, 96], sizes = [2, 32], strides = [1, 1]} : vector<2x128xf32> to vector<2x32xf32>
    %147 = arith.negf %146 : vector<2x32xf32>
    %148 = math.exp %147 : vector<2x32xf32>
    %cst_49 = arith.constant 1.000000e+00 : f32
    %149 = vector.broadcast %cst_49 : f32 to vector<2x32xf32>
    %150 = arith.addf %149, %148 : vector<2x32xf32>
    %151 = arith.divf %149, %150 : vector<2x32xf32>
    %152 = arith.mulf %143, %79 : vector<2x32xf32>
    %153 = arith.mulf %137, %145 : vector<2x32xf32>
    %154 = arith.addf %152, %153 : vector<2x32xf32>
    %155 = math.tanh %154 : vector<2x32xf32>
    %156 = arith.mulf %151, %155 : vector<2x32xf32>
    %157 = arith.truncf %131 : vector<2x32xf32> to vector<2x32xbf16>
    %c1_50 = arith.constant 1 : index
    %c0_51 = arith.constant 0 : index
    %c0_52 = arith.constant 0 : index
    %158 = vector.load %arg6[%c1_50, %c0_51, %c0_52] : memref<8x2x32xbf16, #tpu.memory_space<vmem>>, vector<1x2x32xbf16>
    %159 = vector.shape_cast %158 : vector<1x2x32xbf16> to vector<2x32xbf16>
    %160 = vector.shape_cast %157 : vector<2x32xbf16> to vector<1x2x32xbf16>
    tpu.vector_store %arg6[%c1_50, %c0_51, %c0_52], %160 {strides = array<i32>} : memref<8x2x32xbf16, #tpu.memory_space<vmem>>, vector<1x2x32xbf16>,
    %161 = arith.truncf %156 : vector<2x32xf32> to vector<2x32xbf16>
    %c6_53 = arith.constant 6 : index
    %c0_54 = arith.constant 0 : index
    %c0_55 = arith.constant 0 : index
    %162 = vector.load %arg7[%c6_53, %c0_54, %c0_55] : memref<8x2x32xbf16, #tpu.memory_space<vmem>>, vector<1x2x32xbf16>
    %163 = vector.shape_cast %162 : vector<1x2x32xbf16> to vector<2x32xbf16>
    %164 = vector.shape_cast %161 : vector<2x32xbf16> to vector<1x2x32xbf16>
    tpu.vector_store %arg7[%c6_53, %c0_54, %c0_55], %164 {strides = array<i32>} : memref<8x2x32xbf16, #tpu.memory_space<vmem>>, vector<1x2x32xbf16>,
    %165 = tpu.concatenate %131, %156 in 1 : vector<2x32xf32>, vector<2x32xf32> -> vector<2x64xf32>
    %166 = arith.truncf %165 : vector<2x64xf32> to vector<2x64xbf16>
    %cst_56 = arith.constant dense<0.000000e+00> : vector<2x256xf32>
    %167 = tpu.matmul %166, %7, %cst_56 {dimension_numbers = #tpu.dot_dimension_numbers<[1], [0], [0], [1], [0, 0, 1, 1], [], []>} : vector<2x64xbf16>, vector<64x256xbf16>, vector<2x256xf32> -> vector<2x256xf32>
    %c2 = arith.constant 2 : index
    %c0_57 = arith.constant 0 : index
    %c0_58 = arith.constant 0 : index
    %168 = vector.load %arg1[%c2, %c0_57, %c0_58] : memref<8x2x64xbf16, #tpu.memory_space<vmem>>, vector<1x2x64xbf16>
    %169 = vector.shape_cast %168 : vector<1x2x64xbf16> to vector<2x64xbf16>
    %cst_59 = arith.constant dense<0.000000e+00> : vector<2x128xf32>
    %170 = tpu.matmul %169, %4, %cst_59 {dimension_numbers = #tpu.dot_dimension_numbers<[1], [0], [0], [1], [0, 0, 1, 1], [], []>} : vector<2x64xbf16>, vector<64x128xbf16>, vector<2x128xf32> -> vector<2x128xf32>
    %171 = vector.broadcast %9 : vector<1x128xf32> to vector<2x128xf32>
    %172 = arith.addf %170, %171 : vector<2x128xf32>
    %c5 = arith.constant 5 : index
    %c0_60 = arith.constant 0 : index
    %c0_61 = arith.constant 0 : index
    %173 = vector.load %arg2[%c5, %c0_60, %c0_61] : memref<8x2x64xbf16, #tpu.memory_space<vmem>>, vector<1x2x64xbf16>
    %174 = vector.shape_cast %173 : vector<1x2x64xbf16> to vector<2x64xbf16>
    %cst_62 = arith.constant dense<0.000000e+00> : vector<2x128xf32>
    %175 = tpu.matmul %174, %6, %cst_62 {dimension_numbers = #tpu.dot_dimension_numbers<[1], [0], [0], [1], [0, 0, 1, 1], [], []>} : vector<2x64xbf16>, vector<64x128xbf16>, vector<2x128xf32> -> vector<2x128xf32>
    %176 = vector.broadcast %11 : vector<1x128xf32> to vector<2x128xf32>
    %177 = arith.addf %175, %176 : vector<2x128xf32>
    %178 = vector.extract_strided_slice %167 {offsets = [0, 0], sizes = [2, 128], strides = [1, 1]} : vector<2x256xf32> to vector<2x128xf32>
    %179 = arith.addf %178, %172 : vector<2x128xf32>
    %180 = vector.extract_strided_slice %167 {offsets = [0, 128], sizes = [2, 128], strides = [1, 1]} : vector<2x256xf32> to vector<2x128xf32>
    %181 = arith.addf %180, %177 : vector<2x128xf32>
    %182 = vector.extract_strided_slice %179 {offsets = [0, 0], sizes = [2, 32], strides = [1, 1]} : vector<2x128xf32> to vector<2x32xf32>
    %183 = arith.negf %182 : vector<2x32xf32>
    %184 = math.exp %183 : vector<2x32xf32>
    %cst_63 = arith.constant 1.000000e+00 : f32
    %185 = vector.broadcast %cst_63 : f32 to vector<2x32xf32>
    %186 = arith.addf %185, %184 : vector<2x32xf32>
    %187 = arith.divf %185, %186 : vector<2x32xf32>
    %188 = vector.extract_strided_slice %179 {offsets = [0, 32], sizes = [2, 32], strides = [1, 1]} : vector<2x128xf32> to vector<2x32xf32>
    %189 = arith.negf %188 : vector<2x32xf32>
    %190 = math.exp %189 : vector<2x32xf32>
    %cst_64 = arith.constant 1.000000e+00 : f32
    %191 = vector.broadcast %cst_64 : f32 to vector<2x32xf32>
    %192 = arith.addf %191, %190 : vector<2x32xf32>
    %193 = arith.divf %191, %192 : vector<2x32xf32>
    %194 = vector.extract_strided_slice %179 {offsets = [0, 64], sizes = [2, 32], strides = [1, 1]} : vector<2x128xf32> to vector<2x32xf32>
    %195 = math.tanh %194 : vector<2x32xf32>
    %196 = vector.extract_strided_slice %179 {offsets = [0, 96], sizes = [2, 32], strides = [1, 1]} : vector<2x128xf32> to vector<2x32xf32>
    %197 = arith.negf %196 : vector<2x32xf32>
    %198 = math.exp %197 : vector<2x32xf32>
    %cst_65 = arith.constant 1.000000e+00 : f32
    %199 = vector.broadcast %cst_65 : f32 to vector<2x32xf32>
    %200 = arith.addf %199, %198 : vector<2x32xf32>
    %201 = arith.divf %199, %200 : vector<2x32xf32>
    %202 = arith.mulf %193, %129 : vector<2x32xf32>
    %203 = arith.mulf %187, %195 : vector<2x32xf32>
    %204 = arith.addf %202, %203 : vector<2x32xf32>
    %205 = math.tanh %204 : vector<2x32xf32>
    %206 = arith.mulf %201, %205 : vector<2x32xf32>
    %207 = vector.extract_strided_slice %181 {offsets = [0, 0], sizes = [2, 32], strides = [1, 1]} : vector<2x128xf32> to vector<2x32xf32>
    %208 = arith.negf %207 : vector<2x32xf32>
    %209 = math.exp %208 : vector<2x32xf32>
    %cst_66 = arith.constant 1.000000e+00 : f32
    %210 = vector.broadcast %cst_66 : f32 to vector<2x32xf32>
    %211 = arith.addf %210, %209 : vector<2x32xf32>
    %212 = arith.divf %210, %211 : vector<2x32xf32>
    %213 = vector.extract_strided_slice %181 {offsets = [0, 32], sizes = [2, 32], strides = [1, 1]} : vector<2x128xf32> to vector<2x32xf32>
    %214 = arith.negf %213 : vector<2x32xf32>
    %215 = math.exp %214 : vector<2x32xf32>
    %cst_67 = arith.constant 1.000000e+00 : f32
    %216 = vector.broadcast %cst_67 : f32 to vector<2x32xf32>
    %217 = arith.addf %216, %215 : vector<2x32xf32>
    %218 = arith.divf %216, %217 : vector<2x32xf32>
    %219 = vector.extract_strided_slice %181 {offsets = [0, 64], sizes = [2, 32], strides = [1, 1]} : vector<2x128xf32> to vector<2x32xf32>
    %220 = math.tanh %219 : vector<2x32xf32>
    %221 = vector.extract_strided_slice %181 {offsets = [0, 96], sizes = [2, 32], strides = [1, 1]} : vector<2x128xf32> to vector<2x32xf32>
    %222 = arith.negf %221 : vector<2x32xf32>
    %223 = math.exp %222 : vector<2x32xf32>
    %cst_68 = arith.constant 1.000000e+00 : f32
    %224 = vector.broadcast %cst_68 : f32 to vector<2x32xf32>
    %225 = arith.addf %224, %223 : vector<2x32xf32>
    %226 = arith.divf %224, %225 : vector<2x32xf32>
    %227 = arith.mulf %218, %154 : vector<2x32xf32>
    %228 = arith.mulf %212, %220 : vector<2x32xf32>
    %229 = arith.addf %227, %228 : vector<2x32xf32>
    %230 = math.tanh %229 : vector<2x32xf32>
    %231 = arith.mulf %226, %230 : vector<2x32xf32>
    %232 = arith.truncf %206 : vector<2x32xf32> to vector<2x32xbf16>
    %c2_69 = arith.constant 2 : index
    %c0_70 = arith.constant 0 : index
    %c0_71 = arith.constant 0 : index
    %233 = vector.load %arg6[%c2_69, %c0_70, %c0_71] : memref<8x2x32xbf16, #tpu.memory_space<vmem>>, vector<1x2x32xbf16>
    %234 = vector.shape_cast %233 : vector<1x2x32xbf16> to vector<2x32xbf16>
    %235 = vector.shape_cast %232 : vector<2x32xbf16> to vector<1x2x32xbf16>
    tpu.vector_store %arg6[%c2_69, %c0_70, %c0_71], %235 {strides = array<i32>} : memref<8x2x32xbf16, #tpu.memory_space<vmem>>, vector<1x2x32xbf16>,
    %236 = arith.truncf %231 : vector<2x32xf32> to vector<2x32xbf16>
    %c5_72 = arith.constant 5 : index
    %c0_73 = arith.constant 0 : index
    %c0_74 = arith.constant 0 : index
    %237 = vector.load %arg7[%c5_72, %c0_73, %c0_74] : memref<8x2x32xbf16, #tpu.memory_space<vmem>>, vector<1x2x32xbf16>
    %238 = vector.shape_cast %237 : vector<1x2x32xbf16> to vector<2x32xbf16>
    %239 = vector.shape_cast %236 : vector<2x32xbf16> to vector<1x2x32xbf16>
    tpu.vector_store %arg7[%c5_72, %c0_73, %c0_74], %239 {strides = array<i32>} : memref<8x2x32xbf16, #tpu.memory_space<vmem>>, vector<1x2x32xbf16>,
    %240 = tpu.concatenate %206, %231 in 1 : vector<2x32xf32>, vector<2x32xf32> -> vector<2x64xf32>
    %241 = arith.truncf %240 : vector<2x64xf32> to vector<2x64xbf16>
    %cst_75 = arith.constant dense<0.000000e+00> : vector<2x256xf32>
    %242 = tpu.matmul %241, %7, %cst_75 {dimension_numbers = #tpu.dot_dimension_numbers<[1], [0], [0], [1], [0, 0, 1, 1], [], []>} : vector<2x64xbf16>, vector<64x256xbf16>, vector<2x256xf32> -> vector<2x256xf32>
    %c3 = arith.constant 3 : index
    %c0_76 = arith.constant 0 : index
    %c0_77 = arith.constant 0 : index
    %243 = vector.load %arg1[%c3, %c0_76, %c0_77] : memref<8x2x64xbf16, #tpu.memory_space<vmem>>, vector<1x2x64xbf16>
    %244 = vector.shape_cast %243 : vector<1x2x64xbf16> to vector<2x64xbf16>
    %cst_78 = arith.constant dense<0.000000e+00> : vector<2x128xf32>
    %245 = tpu.matmul %244, %4, %cst_78 {dimension_numbers = #tpu.dot_dimension_numbers<[1], [0], [0], [1], [0, 0, 1, 1], [], []>} : vector<2x64xbf16>, vector<64x128xbf16>, vector<2x128xf32> -> vector<2x128xf32>
    %246 = vector.broadcast %9 : vector<1x128xf32> to vector<2x128xf32>
    %247 = arith.addf %245, %246 : vector<2x128xf32>
    %c4 = arith.constant 4 : index
    %c0_79 = arith.constant 0 : index
    %c0_80 = arith.constant 0 : index
    %248 = vector.load %arg2[%c4, %c0_79, %c0_80] : memref<8x2x64xbf16, #tpu.memory_space<vmem>>, vector<1x2x64xbf16>
    %249 = vector.shape_cast %248 : vector<1x2x64xbf16> to vector<2x64xbf16>
    %cst_81 = arith.constant dense<0.000000e+00> : vector<2x128xf32>
    %250 = tpu.matmul %249, %6, %cst_81 {dimension_numbers = #tpu.dot_dimension_numbers<[1], [0], [0], [1], [0, 0, 1, 1], [], []>} : vector<2x64xbf16>, vector<64x128xbf16>, vector<2x128xf32> -> vector<2x128xf32>
    %251 = vector.broadcast %11 : vector<1x128xf32> to vector<2x128xf32>
    %252 = arith.addf %250, %251 : vector<2x128xf32>
    %253 = vector.extract_strided_slice %242 {offsets = [0, 0], sizes = [2, 128], strides = [1, 1]} : vector<2x256xf32> to vector<2x128xf32>
    %254 = arith.addf %253, %247 : vector<2x128xf32>
    %255 = vector.extract_strided_slice %242 {offsets = [0, 128], sizes = [2, 128], strides = [1, 1]} : vector<2x256xf32> to vector<2x128xf32>
    %256 = arith.addf %255, %252 : vector<2x128xf32>
    %257 = vector.extract_strided_slice %254 {offsets = [0, 0], sizes = [2, 32], strides = [1, 1]} : vector<2x128xf32> to vector<2x32xf32>
    %258 = arith.negf %257 : vector<2x32xf32>
    %259 = math.exp %258 : vector<2x32xf32>
    %cst_82 = arith.constant 1.000000e+00 : f32
    %260 = vector.broadcast %cst_82 : f32 to vector<2x32xf32>
    %261 = arith.addf %260, %259 : vector<2x32xf32>
    %262 = arith.divf %260, %261 : vector<2x32xf32>
    %263 = vector.extract_strided_slice %254 {offsets = [0, 32], sizes = [2, 32], strides = [1, 1]} : vector<2x128xf32> to vector<2x32xf32>
    %264 = arith.negf %263 : vector<2x32xf32>
    %265 = math.exp %264 : vector<2x32xf32>
    %cst_83 = arith.constant 1.000000e+00 : f32
    %266 = vector.broadcast %cst_83 : f32 to vector<2x32xf32>
    %267 = arith.addf %266, %265 : vector<2x32xf32>
    %268 = arith.divf %266, %267 : vector<2x32xf32>
    %269 = vector.extract_strided_slice %254 {offsets = [0, 64], sizes = [2, 32], strides = [1, 1]} : vector<2x128xf32> to vector<2x32xf32>
    %270 = math.tanh %269 : vector<2x32xf32>
    %271 = vector.extract_strided_slice %254 {offsets = [0, 96], sizes = [2, 32], strides = [1, 1]} : vector<2x128xf32> to vector<2x32xf32>
    %272 = arith.negf %271 : vector<2x32xf32>
    %273 = math.exp %272 : vector<2x32xf32>
    %cst_84 = arith.constant 1.000000e+00 : f32
    %274 = vector.broadcast %cst_84 : f32 to vector<2x32xf32>
    %275 = arith.addf %274, %273 : vector<2x32xf32>
    %276 = arith.divf %274, %275 : vector<2x32xf32>
    %277 = arith.mulf %268, %204 : vector<2x32xf32>
    %278 = arith.mulf %262, %270 : vector<2x32xf32>
    %279 = arith.addf %277, %278 : vector<2x32xf32>
    %280 = math.tanh %279 : vector<2x32xf32>
    %281 = arith.mulf %276, %280 : vector<2x32xf32>
    %282 = vector.extract_strided_slice %256 {offsets = [0, 0], sizes = [2, 32], strides = [1, 1]} : vector<2x128xf32> to vector<2x32xf32>
    %283 = arith.negf %282 : vector<2x32xf32>
    %284 = math.exp %283 : vector<2x32xf32>
    %cst_85 = arith.constant 1.000000e+00 : f32
    %285 = vector.broadcast %cst_85 : f32 to vector<2x32xf32>
    %286 = arith.addf %285, %284 : vector<2x32xf32>
    %287 = arith.divf %285, %286 : vector<2x32xf32>
    %288 = vector.extract_strided_slice %256 {offsets = [0, 32], sizes = [2, 32], strides = [1, 1]} : vector<2x128xf32> to vector<2x32xf32>
    %289 = arith.negf %288 : vector<2x32xf32>
    %290 = math.exp %289 : vector<2x32xf32>
    %cst_86 = arith.constant 1.000000e+00 : f32
    %291 = vector.broadcast %cst_86 : f32 to vector<2x32xf32>
    %292 = arith.addf %291, %290 : vector<2x32xf32>
    %293 = arith.divf %291, %292 : vector<2x32xf32>
    %294 = vector.extract_strided_slice %256 {offsets = [0, 64], sizes = [2, 32], strides = [1, 1]} : vector<2x128xf32> to vector<2x32xf32>
    %295 = math.tanh %294 : vector<2x32xf32>
    %296 = vector.extract_strided_slice %256 {offsets = [0, 96], sizes = [2, 32], strides = [1, 1]} : vector<2x128xf32> to vector<2x32xf32>
    %297 = arith.negf %296 : vector<2x32xf32>
    %298 = math.exp %297 : vector<2x32xf32>
    %cst_87 = arith.constant 1.000000e+00 : f32
    %299 = vector.broadcast %cst_87 : f32 to vector<2x32xf32>
    %300 = arith.addf %299, %298 : vector<2x32xf32>
    %301 = arith.divf %299, %300 : vector<2x32xf32>
    %302 = arith.mulf %293, %229 : vector<2x32xf32>
    %303 = arith.mulf %287, %295 : vector<2x32xf32>
    %304 = arith.addf %302, %303 : vector<2x32xf32>
    %305 = math.tanh %304 : vector<2x32xf32>
    %306 = arith.mulf %301, %305 : vector<2x32xf32>
    %307 = arith.truncf %281 : vector<2x32xf32> to vector<2x32xbf16>
    %c3_88 = arith.constant 3 : index
    %c0_89 = arith.constant 0 : index
    %c0_90 = arith.constant 0 : index
    %308 = vector.load %arg6[%c3_88, %c0_89, %c0_90] : memref<8x2x32xbf16, #tpu.memory_space<vmem>>, vector<1x2x32xbf16>
    %309 = vector.shape_cast %308 : vector<1x2x32xbf16> to vector<2x32xbf16>
    %310 = vector.shape_cast %307 : vector<2x32xbf16> to vector<1x2x32xbf16>
    tpu.vector_store %arg6[%c3_88, %c0_89, %c0_90], %310 {strides = array<i32>} : memref<8x2x32xbf16, #tpu.memory_space<vmem>>, vector<1x2x32xbf16>,
    %311 = arith.truncf %306 : vector<2x32xf32> to vector<2x32xbf16>
    %c4_91 = arith.constant 4 : index
    %c0_92 = arith.constant 0 : index
    %c0_93 = arith.constant 0 : index
    %312 = vector.load %arg7[%c4_91, %c0_92, %c0_93] : memref<8x2x32xbf16, #tpu.memory_space<vmem>>, vector<1x2x32xbf16>
    %313 = vector.shape_cast %312 : vector<1x2x32xbf16> to vector<2x32xbf16>
    %314 = vector.shape_cast %311 : vector<2x32xbf16> to vector<1x2x32xbf16>
    tpu.vector_store %arg7[%c4_91, %c0_92, %c0_93], %314 {strides = array<i32>} : memref<8x2x32xbf16, #tpu.memory_space<vmem>>, vector<1x2x32xbf16>,
    %315 = tpu.concatenate %281, %306 in 1 : vector<2x32xf32>, vector<2x32xf32> -> vector<2x64xf32>
    %316 = arith.truncf %315 : vector<2x64xf32> to vector<2x64xbf16>
    %cst_94 = arith.constant dense<0.000000e+00> : vector<2x256xf32>
    %317 = tpu.matmul %316, %7, %cst_94 {dimension_numbers = #tpu.dot_dimension_numbers<[1], [0], [0], [1], [0, 0, 1, 1], [], []>} : vector<2x64xbf16>, vector<64x256xbf16>, vector<2x256xf32> -> vector<2x256xf32>
    %c4_95 = arith.constant 4 : index
    %c0_96 = arith.constant 0 : index
    %c0_97 = arith.constant 0 : index
    %318 = vector.load %arg1[%c4_95, %c0_96, %c0_97] : memref<8x2x64xbf16, #tpu.memory_space<vmem>>, vector<1x2x64xbf16>
    %319 = vector.shape_cast %318 : vector<1x2x64xbf16> to vector<2x64xbf16>
    %cst_98 = arith.constant dense<0.000000e+00> : vector<2x128xf32>
    %320 = tpu.matmul %319, %4, %cst_98 {dimension_numbers = #tpu.dot_dimension_numbers<[1], [0], [0], [1], [0, 0, 1, 1], [], []>} : vector<2x64xbf16>, vector<64x128xbf16>, vector<2x128xf32> -> vector<2x128xf32>
    %321 = vector.broadcast %9 : vector<1x128xf32> to vector<2x128xf32>
    %322 = arith.addf %320, %321 : vector<2x128xf32>
    %c3_99 = arith.constant 3 : index
    %c0_100 = arith.constant 0 : index
    %c0_101 = arith.constant 0 : index
    %323 = vector.load %arg2[%c3_99, %c0_100, %c0_101] : memref<8x2x64xbf16, #tpu.memory_space<vmem>>, vector<1x2x64xbf16>
    %324 = vector.shape_cast %323 : vector<1x2x64xbf16> to vector<2x64xbf16>
    %cst_102 = arith.constant dense<0.000000e+00> : vector<2x128xf32>
    %325 = tpu.matmul %324, %6, %cst_102 {dimension_numbers = #tpu.dot_dimension_numbers<[1], [0], [0], [1], [0, 0, 1, 1], [], []>} : vector<2x64xbf16>, vector<64x128xbf16>, vector<2x128xf32> -> vector<2x128xf32>
    %326 = vector.broadcast %11 : vector<1x128xf32> to vector<2x128xf32>
    %327 = arith.addf %325, %326 : vector<2x128xf32>
    %328 = vector.extract_strided_slice %317 {offsets = [0, 0], sizes = [2, 128], strides = [1, 1]} : vector<2x256xf32> to vector<2x128xf32>
    %329 = arith.addf %328, %322 : vector<2x128xf32>
    %330 = vector.extract_strided_slice %317 {offsets = [0, 128], sizes = [2, 128], strides = [1, 1]} : vector<2x256xf32> to vector<2x128xf32>
    %331 = arith.addf %330, %327 : vector<2x128xf32>
    %332 = vector.extract_strided_slice %329 {offsets = [0, 0], sizes = [2, 32], strides = [1, 1]} : vector<2x128xf32> to vector<2x32xf32>
    %333 = arith.negf %332 : vector<2x32xf32>
    %334 = math.exp %333 : vector<2x32xf32>
    %cst_103 = arith.constant 1.000000e+00 : f32
    %335 = vector.broadcast %cst_103 : f32 to vector<2x32xf32>
    %336 = arith.addf %335, %334 : vector<2x32xf32>
    %337 = arith.divf %335, %336 : vector<2x32xf32>
    %338 = vector.extract_strided_slice %329 {offsets = [0, 32], sizes = [2, 32], strides = [1, 1]} : vector<2x128xf32> to vector<2x32xf32>
    %339 = arith.negf %338 : vector<2x32xf32>
    %340 = math.exp %339 : vector<2x32xf32>
    %cst_104 = arith.constant 1.000000e+00 : f32
    %341 = vector.broadcast %cst_104 : f32 to vector<2x32xf32>
    %342 = arith.addf %341, %340 : vector<2x32xf32>
    %343 = arith.divf %341, %342 : vector<2x32xf32>
    %344 = vector.extract_strided_slice %329 {offsets = [0, 64], sizes = [2, 32], strides = [1, 1]} : vector<2x128xf32> to vector<2x32xf32>
    %345 = math.tanh %344 : vector<2x32xf32>
    %346 = vector.extract_strided_slice %329 {offsets = [0, 96], sizes = [2, 32], strides = [1, 1]} : vector<2x128xf32> to vector<2x32xf32>
    %347 = arith.negf %346 : vector<2x32xf32>
    %348 = math.exp %347 : vector<2x32xf32>
    %cst_105 = arith.constant 1.000000e+00 : f32
    %349 = vector.broadcast %cst_105 : f32 to vector<2x32xf32>
    %350 = arith.addf %349, %348 : vector<2x32xf32>
    %351 = arith.divf %349, %350 : vector<2x32xf32>
    %352 = arith.mulf %343, %279 : vector<2x32xf32>
    %353 = arith.mulf %337, %345 : vector<2x32xf32>
    %354 = arith.addf %352, %353 : vector<2x32xf32>
    %355 = math.tanh %354 : vector<2x32xf32>
    %356 = arith.mulf %351, %355 : vector<2x32xf32>
    %357 = vector.extract_strided_slice %331 {offsets = [0, 0], sizes = [2, 32], strides = [1, 1]} : vector<2x128xf32> to vector<2x32xf32>
    %358 = arith.negf %357 : vector<2x32xf32>
    %359 = math.exp %358 : vector<2x32xf32>
    %cst_106 = arith.constant 1.000000e+00 : f32
    %360 = vector.broadcast %cst_106 : f32 to vector<2x32xf32>
    %361 = arith.addf %360, %359 : vector<2x32xf32>
    %362 = arith.divf %360, %361 : vector<2x32xf32>
    %363 = vector.extract_strided_slice %331 {offsets = [0, 32], sizes = [2, 32], strides = [1, 1]} : vector<2x128xf32> to vector<2x32xf32>
    %364 = arith.negf %363 : vector<2x32xf32>
    %365 = math.exp %364 : vector<2x32xf32>
    %cst_107 = arith.constant 1.000000e+00 : f32
    %366 = vector.broadcast %cst_107 : f32 to vector<2x32xf32>
    %367 = arith.addf %366, %365 : vector<2x32xf32>
    %368 = arith.divf %366, %367 : vector<2x32xf32>
    %369 = vector.extract_strided_slice %331 {offsets = [0, 64], sizes = [2, 32], strides = [1, 1]} : vector<2x128xf32> to vector<2x32xf32>
    %370 = math.tanh %369 : vector<2x32xf32>
    %371 = vector.extract_strided_slice %331 {offsets = [0, 96], sizes = [2, 32], strides = [1, 1]} : vector<2x128xf32> to vector<2x32xf32>
    %372 = arith.negf %371 : vector<2x32xf32>
    %373 = math.exp %372 : vector<2x32xf32>
    %cst_108 = arith.constant 1.000000e+00 : f32
    %374 = vector.broadcast %cst_108 : f32 to vector<2x32xf32>
    %375 = arith.addf %374, %373 : vector<2x32xf32>
    %376 = arith.divf %374, %375 : vector<2x32xf32>
    %377 = arith.mulf %368, %304 : vector<2x32xf32>
    %378 = arith.mulf %362, %370 : vector<2x32xf32>
    %379 = arith.addf %377, %378 : vector<2x32xf32>
    %380 = math.tanh %379 : vector<2x32xf32>
    %381 = arith.mulf %376, %380 : vector<2x32xf32>
    %382 = arith.truncf %356 : vector<2x32xf32> to vector<2x32xbf16>
    %c4_109 = arith.constant 4 : index
    %c0_110 = arith.constant 0 : index
    %c0_111 = arith.constant 0 : index
    %383 = vector.load %arg6[%c4_109, %c0_110, %c0_111] : memref<8x2x32xbf16, #tpu.memory_space<vmem>>, vector<1x2x32xbf16>
    %384 = vector.shape_cast %383 : vector<1x2x32xbf16> to vector<2x32xbf16>
    %385 = vector.shape_cast %382 : vector<2x32xbf16> to vector<1x2x32xbf16>
    tpu.vector_store %arg6[%c4_109, %c0_110, %c0_111], %385 {strides = array<i32>} : memref<8x2x32xbf16, #tpu.memory_space<vmem>>, vector<1x2x32xbf16>,
    %386 = arith.truncf %381 : vector<2x32xf32> to vector<2x32xbf16>
    %c3_112 = arith.constant 3 : index
    %c0_113 = arith.constant 0 : index
    %c0_114 = arith.constant 0 : index
    %387 = vector.load %arg7[%c3_112, %c0_113, %c0_114] : memref<8x2x32xbf16, #tpu.memory_space<vmem>>, vector<1x2x32xbf16>
    %388 = vector.shape_cast %387 : vector<1x2x32xbf16> to vector<2x32xbf16>
    %389 = vector.shape_cast %386 : vector<2x32xbf16> to vector<1x2x32xbf16>
    tpu.vector_store %arg7[%c3_112, %c0_113, %c0_114], %389 {strides = array<i32>} : memref<8x2x32xbf16, #tpu.memory_space<vmem>>, vector<1x2x32xbf16>,
    %390 = tpu.concatenate %356, %381 in 1 : vector<2x32xf32>, vector<2x32xf32> -> vector<2x64xf32>
    %391 = arith.truncf %390 : vector<2x64xf32> to vector<2x64xbf16>
    %cst_115 = arith.constant dense<0.000000e+00> : vector<2x256xf32>
    %392 = tpu.matmul %391, %7, %cst_115 {dimension_numbers = #tpu.dot_dimension_numbers<[1], [0], [0], [1], [0, 0, 1, 1], [], []>} : vector<2x64xbf16>, vector<64x256xbf16>, vector<2x256xf32> -> vector<2x256xf32>
    %c5_116 = arith.constant 5 : index
    %c0_117 = arith.constant 0 : index
    %c0_118 = arith.constant 0 : index
    %393 = vector.load %arg1[%c5_116, %c0_117, %c0_118] : memref<8x2x64xbf16, #tpu.memory_space<vmem>>, vector<1x2x64xbf16>
    %394 = vector.shape_cast %393 : vector<1x2x64xbf16> to vector<2x64xbf16>
    %cst_119 = arith.constant dense<0.000000e+00> : vector<2x128xf32>
    %395 = tpu.matmul %394, %4, %cst_119 {dimension_numbers = #tpu.dot_dimension_numbers<[1], [0], [0], [1], [0, 0, 1, 1], [], []>} : vector<2x64xbf16>, vector<64x128xbf16>, vector<2x128xf32> -> vector<2x128xf32>
    %396 = vector.broadcast %9 : vector<1x128xf32> to vector<2x128xf32>
    %397 = arith.addf %395, %396 : vector<2x128xf32>
    %c2_120 = arith.constant 2 : index
    %c0_121 = arith.constant 0 : index
    %c0_122 = arith.constant 0 : index
    %398 = vector.load %arg2[%c2_120, %c0_121, %c0_122] : memref<8x2x64xbf16, #tpu.memory_space<vmem>>, vector<1x2x64xbf16>
    %399 = vector.shape_cast %398 : vector<1x2x64xbf16> to vector<2x64xbf16>
    %cst_123 = arith.constant dense<0.000000e+00> : vector<2x128xf32>
    %400 = tpu.matmul %399, %6, %cst_123 {dimension_numbers = #tpu.dot_dimension_numbers<[1], [0], [0], [1], [0, 0, 1, 1], [], []>} : vector<2x64xbf16>, vector<64x128xbf16>, vector<2x128xf32> -> vector<2x128xf32>
    %401 = vector.broadcast %11 : vector<1x128xf32> to vector<2x128xf32>
    %402 = arith.addf %400, %401 : vector<2x128xf32>
    %403 = vector.extract_strided_slice %392 {offsets = [0, 0], sizes = [2, 128], strides = [1, 1]} : vector<2x256xf32> to vector<2x128xf32>
    %404 = arith.addf %403, %397 : vector<2x128xf32>
    %405 = vector.extract_strided_slice %392 {offsets = [0, 128], sizes = [2, 128], strides = [1, 1]} : vector<2x256xf32> to vector<2x128xf32>
    %406 = arith.addf %405, %402 : vector<2x128xf32>
    %407 = vector.extract_strided_slice %404 {offsets = [0, 0], sizes = [2, 32], strides = [1, 1]} : vector<2x128xf32> to vector<2x32xf32>
    %408 = arith.negf %407 : vector<2x32xf32>
    %409 = math.exp %408 : vector<2x32xf32>
    %cst_124 = arith.constant 1.000000e+00 : f32
    %410 = vector.broadcast %cst_124 : f32 to vector<2x32xf32>
    %411 = arith.addf %410, %409 : vector<2x32xf32>
    %412 = arith.divf %410, %411 : vector<2x32xf32>
    %413 = vector.extract_strided_slice %404 {offsets = [0, 32], sizes = [2, 32], strides = [1, 1]} : vector<2x128xf32> to vector<2x32xf32>
    %414 = arith.negf %413 : vector<2x32xf32>
    %415 = math.exp %414 : vector<2x32xf32>
    %cst_125 = arith.constant 1.000000e+00 : f32
    %416 = vector.broadcast %cst_125 : f32 to vector<2x32xf32>
    %417 = arith.addf %416, %415 : vector<2x32xf32>
    %418 = arith.divf %416, %417 : vector<2x32xf32>
    %419 = vector.extract_strided_slice %404 {offsets = [0, 64], sizes = [2, 32], strides = [1, 1]} : vector<2x128xf32> to vector<2x32xf32>
    %420 = math.tanh %419 : vector<2x32xf32>
    %421 = vector.extract_strided_slice %404 {offsets = [0, 96], sizes = [2, 32], strides = [1, 1]} : vector<2x128xf32> to vector<2x32xf32>
    %422 = arith.negf %421 : vector<2x32xf32>
    %423 = math.exp %422 : vector<2x32xf32>
    %cst_126 = arith.constant 1.000000e+00 : f32
    %424 = vector.broadcast %cst_126 : f32 to vector<2x32xf32>
    %425 = arith.addf %424, %423 : vector<2x32xf32>
    %426 = arith.divf %424, %425 : vector<2x32xf32>
    %427 = arith.mulf %418, %354 : vector<2x32xf32>
    %428 = arith.mulf %412, %420 : vector<2x32xf32>
    %429 = arith.addf %427, %428 : vector<2x32xf32>
    %430 = math.tanh %429 : vector<2x32xf32>
    %431 = arith.mulf %426, %430 : vector<2x32xf32>
    %432 = vector.extract_strided_slice %406 {offsets = [0, 0], sizes = [2, 32], strides = [1, 1]} : vector<2x128xf32> to vector<2x32xf32>
    %433 = arith.negf %432 : vector<2x32xf32>
    %434 = math.exp %433 : vector<2x32xf32>
    %cst_127 = arith.constant 1.000000e+00 : f32
    %435 = vector.broadcast %cst_127 : f32 to vector<2x32xf32>
    %436 = arith.addf %435, %434 : vector<2x32xf32>
    %437 = arith.divf %435, %436 : vector<2x32xf32>
    %438 = vector.extract_strided_slice %406 {offsets = [0, 32], sizes = [2, 32], strides = [1, 1]} : vector<2x128xf32> to vector<2x32xf32>
    %439 = arith.negf %438 : vector<2x32xf32>
    %440 = math.exp %439 : vector<2x32xf32>
    %cst_128 = arith.constant 1.000000e+00 : f32
    %441 = vector.broadcast %cst_128 : f32 to vector<2x32xf32>
    %442 = arith.addf %441, %440 : vector<2x32xf32>
    %443 = arith.divf %441, %442 : vector<2x32xf32>
    %444 = vector.extract_strided_slice %406 {offsets = [0, 64], sizes = [2, 32], strides = [1, 1]} : vector<2x128xf32> to vector<2x32xf32>
    %445 = math.tanh %444 : vector<2x32xf32>
    %446 = vector.extract_strided_slice %406 {offsets = [0, 96], sizes = [2, 32], strides = [1, 1]} : vector<2x128xf32> to vector<2x32xf32>
    %447 = arith.negf %446 : vector<2x32xf32>
    %448 = math.exp %447 : vector<2x32xf32>
    %cst_129 = arith.constant 1.000000e+00 : f32
    %449 = vector.broadcast %cst_129 : f32 to vector<2x32xf32>
    %450 = arith.addf %449, %448 : vector<2x32xf32>
    %451 = arith.divf %449, %450 : vector<2x32xf32>
    %452 = arith.mulf %443, %379 : vector<2x32xf32>
    %453 = arith.mulf %437, %445 : vector<2x32xf32>
    %454 = arith.addf %452, %453 : vector<2x32xf32>
    %455 = math.tanh %454 : vector<2x32xf32>
    %456 = arith.mulf %451, %455 : vector<2x32xf32>
    %457 = arith.truncf %431 : vector<2x32xf32> to vector<2x32xbf16>
    %c5_130 = arith.constant 5 : index
    %c0_131 = arith.constant 0 : index
    %c0_132 = arith.constant 0 : index
    %458 = vector.load %arg6[%c5_130, %c0_131, %c0_132] : memref<8x2x32xbf16, #tpu.memory_space<vmem>>, vector<1x2x32xbf16>
    %459 = vector.shape_cast %458 : vector<1x2x32xbf16> to vector<2x32xbf16>
    %460 = vector.shape_cast %457 : vector<2x32xbf16> to vector<1x2x32xbf16>
    tpu.vector_store %arg6[%c5_130, %c0_131, %c0_132], %460 {strides = array<i32>} : memref<8x2x32xbf16, #tpu.memory_space<vmem>>, vector<1x2x32xbf16>,
    %461 = arith.truncf %456 : vector<2x32xf32> to vector<2x32xbf16>
    %c2_133 = arith.constant 2 : index
    %c0_134 = arith.constant 0 : index
    %c0_135 = arith.constant 0 : index
    %462 = vector.load %arg7[%c2_133, %c0_134, %c0_135] : memref<8x2x32xbf16, #tpu.memory_space<vmem>>, vector<1x2x32xbf16>
    %463 = vector.shape_cast %462 : vector<1x2x32xbf16> to vector<2x32xbf16>
    %464 = vector.shape_cast %461 : vector<2x32xbf16> to vector<1x2x32xbf16>
    tpu.vector_store %arg7[%c2_133, %c0_134, %c0_135], %464 {strides = array<i32>} : memref<8x2x32xbf16, #tpu.memory_space<vmem>>, vector<1x2x32xbf16>,
    %465 = tpu.concatenate %431, %456 in 1 : vector<2x32xf32>, vector<2x32xf32> -> vector<2x64xf32>
    %466 = arith.truncf %465 : vector<2x64xf32> to vector<2x64xbf16>
    %cst_136 = arith.constant dense<0.000000e+00> : vector<2x256xf32>
    %467 = tpu.matmul %466, %7, %cst_136 {dimension_numbers = #tpu.dot_dimension_numbers<[1], [0], [0], [1], [0, 0, 1, 1], [], []>} : vector<2x64xbf16>, vector<64x256xbf16>, vector<2x256xf32> -> vector<2x256xf32>
    %c6_137 = arith.constant 6 : index
    %c0_138 = arith.constant 0 : index
    %c0_139 = arith.constant 0 : index
    %468 = vector.load %arg1[%c6_137, %c0_138, %c0_139] : memref<8x2x64xbf16, #tpu.memory_space<vmem>>, vector<1x2x64xbf16>
    %469 = vector.shape_cast %468 : vector<1x2x64xbf16> to vector<2x64xbf16>
    %cst_140 = arith.constant dense<0.000000e+00> : vector<2x128xf32>
    %470 = tpu.matmul %469, %4, %cst_140 {dimension_numbers = #tpu.dot_dimension_numbers<[1], [0], [0], [1], [0, 0, 1, 1], [], []>} : vector<2x64xbf16>, vector<64x128xbf16>, vector<2x128xf32> -> vector<2x128xf32>
    %471 = vector.broadcast %9 : vector<1x128xf32> to vector<2x128xf32>
    %472 = arith.addf %470, %471 : vector<2x128xf32>
    %c1_141 = arith.constant 1 : index
    %c0_142 = arith.constant 0 : index
    %c0_143 = arith.constant 0 : index
    %473 = vector.load %arg2[%c1_141, %c0_142, %c0_143] : memref<8x2x64xbf16, #tpu.memory_space<vmem>>, vector<1x2x64xbf16>
    %474 = vector.shape_cast %473 : vector<1x2x64xbf16> to vector<2x64xbf16>
    %cst_144 = arith.constant dense<0.000000e+00> : vector<2x128xf32>
    %475 = tpu.matmul %474, %6, %cst_144 {dimension_numbers = #tpu.dot_dimension_numbers<[1], [0], [0], [1], [0, 0, 1, 1], [], []>} : vector<2x64xbf16>, vector<64x128xbf16>, vector<2x128xf32> -> vector<2x128xf32>
    %476 = vector.broadcast %11 : vector<1x128xf32> to vector<2x128xf32>
    %477 = arith.addf %475, %476 : vector<2x128xf32>
    %478 = vector.extract_strided_slice %467 {offsets = [0, 0], sizes = [2, 128], strides = [1, 1]} : vector<2x256xf32> to vector<2x128xf32>
    %479 = arith.addf %478, %472 : vector<2x128xf32>
    %480 = vector.extract_strided_slice %467 {offsets = [0, 128], sizes = [2, 128], strides = [1, 1]} : vector<2x256xf32> to vector<2x128xf32>
    %481 = arith.addf %480, %477 : vector<2x128xf32>
    %482 = vector.extract_strided_slice %479 {offsets = [0, 0], sizes = [2, 32], strides = [1, 1]} : vector<2x128xf32> to vector<2x32xf32>
    %483 = arith.negf %482 : vector<2x32xf32>
    %484 = math.exp %483 : vector<2x32xf32>
    %cst_145 = arith.constant 1.000000e+00 : f32
    %485 = vector.broadcast %cst_145 : f32 to vector<2x32xf32>
    %486 = arith.addf %485, %484 : vector<2x32xf32>
    %487 = arith.divf %485, %486 : vector<2x32xf32>
    %488 = vector.extract_strided_slice %479 {offsets = [0, 32], sizes = [2, 32], strides = [1, 1]} : vector<2x128xf32> to vector<2x32xf32>
    %489 = arith.negf %488 : vector<2x32xf32>
    %490 = math.exp %489 : vector<2x32xf32>
    %cst_146 = arith.constant 1.000000e+00 : f32
    %491 = vector.broadcast %cst_146 : f32 to vector<2x32xf32>
    %492 = arith.addf %491, %490 : vector<2x32xf32>
    %493 = arith.divf %491, %492 : vector<2x32xf32>
    %494 = vector.extract_strided_slice %479 {offsets = [0, 64], sizes = [2, 32], strides = [1, 1]} : vector<2x128xf32> to vector<2x32xf32>
    %495 = math.tanh %494 : vector<2x32xf32>
    %496 = vector.extract_strided_slice %479 {offsets = [0, 96], sizes = [2, 32], strides = [1, 1]} : vector<2x128xf32> to vector<2x32xf32>
    %497 = arith.negf %496 : vector<2x32xf32>
    %498 = math.exp %497 : vector<2x32xf32>
    %cst_147 = arith.constant 1.000000e+00 : f32
    %499 = vector.broadcast %cst_147 : f32 to vector<2x32xf32>
    %500 = arith.addf %499, %498 : vector<2x32xf32>
    %501 = arith.divf %499, %500 : vector<2x32xf32>
    %502 = arith.mulf %493, %429 : vector<2x32xf32>
    %503 = arith.mulf %487, %495 : vector<2x32xf32>
    %504 = arith.addf %502, %503 : vector<2x32xf32>
    %505 = math.tanh %504 : vector<2x32xf32>
    %506 = arith.mulf %501, %505 : vector<2x32xf32>
    %507 = vector.extract_strided_slice %481 {offsets = [0, 0], sizes = [2, 32], strides = [1, 1]} : vector<2x128xf32> to vector<2x32xf32>
    %508 = arith.negf %507 : vector<2x32xf32>
    %509 = math.exp %508 : vector<2x32xf32>
    %cst_148 = arith.constant 1.000000e+00 : f32
    %510 = vector.broadcast %cst_148 : f32 to vector<2x32xf32>
    %511 = arith.addf %510, %509 : vector<2x32xf32>
    %512 = arith.divf %510, %511 : vector<2x32xf32>
    %513 = vector.extract_strided_slice %481 {offsets = [0, 32], sizes = [2, 32], strides = [1, 1]} : vector<2x128xf32> to vector<2x32xf32>
    %514 = arith.negf %513 : vector<2x32xf32>
    %515 = math.exp %514 : vector<2x32xf32>
    %cst_149 = arith.constant 1.000000e+00 : f32
    %516 = vector.broadcast %cst_149 : f32 to vector<2x32xf32>
    %517 = arith.addf %516, %515 : vector<2x32xf32>
    %518 = arith.divf %516, %517 : vector<2x32xf32>
    %519 = vector.extract_strided_slice %481 {offsets = [0, 64], sizes = [2, 32], strides = [1, 1]} : vector<2x128xf32> to vector<2x32xf32>
    %520 = math.tanh %519 : vector<2x32xf32>
    %521 = vector.extract_strided_slice %481 {offsets = [0, 96], sizes = [2, 32], strides = [1, 1]} : vector<2x128xf32> to vector<2x32xf32>
    %522 = arith.negf %521 : vector<2x32xf32>
    %523 = math.exp %522 : vector<2x32xf32>
    %cst_150 = arith.constant 1.000000e+00 : f32
    %524 = vector.broadcast %cst_150 : f32 to vector<2x32xf32>
    %525 = arith.addf %524, %523 : vector<2x32xf32>
    %526 = arith.divf %524, %525 : vector<2x32xf32>
    %527 = arith.mulf %518, %454 : vector<2x32xf32>
    %528 = arith.mulf %512, %520 : vector<2x32xf32>
    %529 = arith.addf %527, %528 : vector<2x32xf32>
    %530 = math.tanh %529 : vector<2x32xf32>
    %531 = arith.mulf %526, %530 : vector<2x32xf32>
    %532 = arith.truncf %506 : vector<2x32xf32> to vector<2x32xbf16>
    %c6_151 = arith.constant 6 : index
    %c0_152 = arith.constant 0 : index
    %c0_153 = arith.constant 0 : index
    %533 = vector.load %arg6[%c6_151, %c0_152, %c0_153] : memref<8x2x32xbf16, #tpu.memory_space<vmem>>, vector<1x2x32xbf16>
    %534 = vector.shape_cast %533 : vector<1x2x32xbf16> to vector<2x32xbf16>
    %535 = vector.shape_cast %532 : vector<2x32xbf16> to vector<1x2x32xbf16>
    tpu.vector_store %arg6[%c6_151, %c0_152, %c0_153], %535 {strides = array<i32>} : memref<8x2x32xbf16, #tpu.memory_space<vmem>>, vector<1x2x32xbf16>,
    %536 = arith.truncf %531 : vector<2x32xf32> to vector<2x32xbf16>
    %c1_154 = arith.constant 1 : index
    %c0_155 = arith.constant 0 : index
    %c0_156 = arith.constant 0 : index
    %537 = vector.load %arg7[%c1_154, %c0_155, %c0_156] : memref<8x2x32xbf16, #tpu.memory_space<vmem>>, vector<1x2x32xbf16>
    %538 = vector.shape_cast %537 : vector<1x2x32xbf16> to vector<2x32xbf16>
    %539 = vector.shape_cast %536 : vector<2x32xbf16> to vector<1x2x32xbf16>
    tpu.vector_store %arg7[%c1_154, %c0_155, %c0_156], %539 {strides = array<i32>} : memref<8x2x32xbf16, #tpu.memory_space<vmem>>, vector<1x2x32xbf16>,
    %540 = tpu.concatenate %506, %531 in 1 : vector<2x32xf32>, vector<2x32xf32> -> vector<2x64xf32>
    %541 = arith.truncf %540 : vector<2x64xf32> to vector<2x64xbf16>
    %cst_157 = arith.constant dense<0.000000e+00> : vector<2x256xf32>
    %542 = tpu.matmul %541, %7, %cst_157 {dimension_numbers = #tpu.dot_dimension_numbers<[1], [0], [0], [1], [0, 0, 1, 1], [], []>} : vector<2x64xbf16>, vector<64x256xbf16>, vector<2x256xf32> -> vector<2x256xf32>
    %c7_158 = arith.constant 7 : index
    %c0_159 = arith.constant 0 : index
    %c0_160 = arith.constant 0 : index
    %543 = vector.load %arg1[%c7_158, %c0_159, %c0_160] : memref<8x2x64xbf16, #tpu.memory_space<vmem>>, vector<1x2x64xbf16>
    %544 = vector.shape_cast %543 : vector<1x2x64xbf16> to vector<2x64xbf16>
    %cst_161 = arith.constant dense<0.000000e+00> : vector<2x128xf32>
    %545 = tpu.matmul %544, %4, %cst_161 {dimension_numbers = #tpu.dot_dimension_numbers<[1], [0], [0], [1], [0, 0, 1, 1], [], []>} : vector<2x64xbf16>, vector<64x128xbf16>, vector<2x128xf32> -> vector<2x128xf32>
    %546 = vector.broadcast %9 : vector<1x128xf32> to vector<2x128xf32>
    %547 = arith.addf %545, %546 : vector<2x128xf32>
    %c0_162 = arith.constant 0 : index
    %c0_163 = arith.constant 0 : index
    %c0_164 = arith.constant 0 : index
    %548 = vector.load %arg2[%c0_162, %c0_163, %c0_164] : memref<8x2x64xbf16, #tpu.memory_space<vmem>>, vector<1x2x64xbf16>
    %549 = vector.shape_cast %548 : vector<1x2x64xbf16> to vector<2x64xbf16>
    %cst_165 = arith.constant dense<0.000000e+00> : vector<2x128xf32>
    %550 = tpu.matmul %549, %6, %cst_165 {dimension_numbers = #tpu.dot_dimension_numbers<[1], [0], [0], [1], [0, 0, 1, 1], [], []>} : vector<2x64xbf16>, vector<64x128xbf16>, vector<2x128xf32> -> vector<2x128xf32>
    %551 = vector.broadcast %11 : vector<1x128xf32> to vector<2x128xf32>
    %552 = arith.addf %550, %551 : vector<2x128xf32>
    %553 = vector.extract_strided_slice %542 {offsets = [0, 0], sizes = [2, 128], strides = [1, 1]} : vector<2x256xf32> to vector<2x128xf32>
    %554 = arith.addf %553, %547 : vector<2x128xf32>
    %555 = vector.extract_strided_slice %542 {offsets = [0, 128], sizes = [2, 128], strides = [1, 1]} : vector<2x256xf32> to vector<2x128xf32>
    %556 = arith.addf %555, %552 : vector<2x128xf32>
    %557 = vector.extract_strided_slice %554 {offsets = [0, 0], sizes = [2, 32], strides = [1, 1]} : vector<2x128xf32> to vector<2x32xf32>
    %558 = arith.negf %557 : vector<2x32xf32>
    %559 = math.exp %558 : vector<2x32xf32>
    %cst_166 = arith.constant 1.000000e+00 : f32
    %560 = vector.broadcast %cst_166 : f32 to vector<2x32xf32>
    %561 = arith.addf %560, %559 : vector<2x32xf32>
    %562 = arith.divf %560, %561 : vector<2x32xf32>
    %563 = vector.extract_strided_slice %554 {offsets = [0, 32], sizes = [2, 32], strides = [1, 1]} : vector<2x128xf32> to vector<2x32xf32>
    %564 = arith.negf %563 : vector<2x32xf32>
    %565 = math.exp %564 : vector<2x32xf32>
    %cst_167 = arith.constant 1.000000e+00 : f32
    %566 = vector.broadcast %cst_167 : f32 to vector<2x32xf32>
    %567 = arith.addf %566, %565 : vector<2x32xf32>
    %568 = arith.divf %566, %567 : vector<2x32xf32>
    %569 = vector.extract_strided_slice %554 {offsets = [0, 64], sizes = [2, 32], strides = [1, 1]} : vector<2x128xf32> to vector<2x32xf32>
    %570 = math.tanh %569 : vector<2x32xf32>
    %571 = vector.extract_strided_slice %554 {offsets = [0, 96], sizes = [2, 32], strides = [1, 1]} : vector<2x128xf32> to vector<2x32xf32>
    %572 = arith.negf %571 : vector<2x32xf32>
    %573 = math.exp %572 : vector<2x32xf32>
    %cst_168 = arith.constant 1.000000e+00 : f32
    %574 = vector.broadcast %cst_168 : f32 to vector<2x32xf32>
    %575 = arith.addf %574, %573 : vector<2x32xf32>
    %576 = arith.divf %574, %575 : vector<2x32xf32>
    %577 = arith.mulf %568, %504 : vector<2x32xf32>
    %578 = arith.mulf %562, %570 : vector<2x32xf32>
    %579 = arith.addf %577, %578 : vector<2x32xf32>
    %580 = math.tanh %579 : vector<2x32xf32>
    %581 = arith.mulf %576, %580 : vector<2x32xf32>
    %582 = vector.extract_strided_slice %556 {offsets = [0, 0], sizes = [2, 32], strides = [1, 1]} : vector<2x128xf32> to vector<2x32xf32>
    %583 = arith.negf %582 : vector<2x32xf32>
    %584 = math.exp %583 : vector<2x32xf32>
    %cst_169 = arith.constant 1.000000e+00 : f32
    %585 = vector.broadcast %cst_169 : f32 to vector<2x32xf32>
    %586 = arith.addf %585, %584 : vector<2x32xf32>
    %587 = arith.divf %585, %586 : vector<2x32xf32>
    %588 = vector.extract_strided_slice %556 {offsets = [0, 32], sizes = [2, 32], strides = [1, 1]} : vector<2x128xf32> to vector<2x32xf32>
    %589 = arith.negf %588 : vector<2x32xf32>
    %590 = math.exp %589 : vector<2x32xf32>
    %cst_170 = arith.constant 1.000000e+00 : f32
    %591 = vector.broadcast %cst_170 : f32 to vector<2x32xf32>
    %592 = arith.addf %591, %590 : vector<2x32xf32>
    %593 = arith.divf %591, %592 : vector<2x32xf32>
    %594 = vector.extract_strided_slice %556 {offsets = [0, 64], sizes = [2, 32], strides = [1, 1]} : vector<2x128xf32> to vector<2x32xf32>
    %595 = math.tanh %594 : vector<2x32xf32>
    %596 = vector.extract_strided_slice %556 {offsets = [0, 96], sizes = [2, 32], strides = [1, 1]} : vector<2x128xf32> to vector<2x32xf32>
    %597 = arith.negf %596 : vector<2x32xf32>
    %598 = math.exp %597 : vector<2x32xf32>
    %cst_171 = arith.constant 1.000000e+00 : f32
    %599 = vector.broadcast %cst_171 : f32 to vector<2x32xf32>
    %600 = arith.addf %599, %598 : vector<2x32xf32>
    %601 = arith.divf %599, %600 : vector<2x32xf32>
    %602 = arith.mulf %593, %529 : vector<2x32xf32>
    %603 = arith.mulf %587, %595 : vector<2x32xf32>
    %604 = arith.addf %602, %603 : vector<2x32xf32>
    %605 = math.tanh %604 : vector<2x32xf32>
    %606 = arith.mulf %601, %605 : vector<2x32xf32>
    %607 = arith.truncf %581 : vector<2x32xf32> to vector<2x32xbf16>
    %c7_172 = arith.constant 7 : index
    %c0_173 = arith.constant 0 : index
    %c0_174 = arith.constant 0 : index
    %608 = vector.load %arg6[%c7_172, %c0_173, %c0_174] : memref<8x2x32xbf16, #tpu.memory_space<vmem>>, vector<1x2x32xbf16>
    %609 = vector.shape_cast %608 : vector<1x2x32xbf16> to vector<2x32xbf16>
    %610 = vector.shape_cast %607 : vector<2x32xbf16> to vector<1x2x32xbf16>
    tpu.vector_store %arg6[%c7_172, %c0_173, %c0_174], %610 {strides = array<i32>} : memref<8x2x32xbf16, #tpu.memory_space<vmem>>, vector<1x2x32xbf16>,
    %611 = arith.truncf %606 : vector<2x32xf32> to vector<2x32xbf16>
    %c0_175 = arith.constant 0 : index
    %c0_176 = arith.constant 0 : index
    %c0_177 = arith.constant 0 : index
    %612 = vector.load %arg7[%c0_175, %c0_176, %c0_177] : memref<8x2x32xbf16, #tpu.memory_space<vmem>>, vector<1x2x32xbf16>
    %613 = vector.shape_cast %612 : vector<1x2x32xbf16> to vector<2x32xbf16>
    %614 = vector.shape_cast %611 : vector<2x32xbf16> to vector<1x2x32xbf16>
    tpu.vector_store %arg7[%c0_175, %c0_176, %c0_177], %614 {strides = array<i32>} : memref<8x2x32xbf16, #tpu.memory_space<vmem>>, vector<1x2x32xbf16>,
    %615 = tpu.concatenate %581, %606 in 1 : vector<2x32xf32>, vector<2x32xf32> -> vector<2x64xf32>
    %c0_178 = arith.constant 0 : index
    %c0_179 = arith.constant 0 : index
    %616 = vector.load %arg8[%c0_178, %c0_179] : memref<2x64xf32, #tpu.memory_space<vmem>>, vector<2x64xf32>
    tpu.vector_store %arg8[%c0_178, %c0_179], %615 {strides = array<i32>} : memref<2x64xf32, #tpu.memory_space<vmem>>, vector<2x64xf32>,
    %617 = tpu.concatenate %579, %604 in 1 : vector<2x32xf32>, vector<2x32xf32> -> vector<2x64xf32>
    %c0_180 = arith.constant 0 : index
    %c0_181 = arith.constant 0 : index
    %618 = vector.load %arg9[%c0_180, %c0_181] : memref<2x64xf32, #tpu.memory_space<vmem>>, vector<2x64xf32>
    tpu.vector_store %arg9[%c0_180, %c0_181], %617 {strides = array<i32>} : memref<2x64xf32, #tpu.memory_space<vmem>>, vector<2x64xf32>,
    return
  }
  func.func @transform_0(%arg0: i32) -> (i32, i32, i32) {
    %c0_i32 = arith.constant 0 : i32
    %c0_i32_0 = arith.constant 0 : i32
    %c0_i32_1 = arith.constant 0 : i32
    return %arg0, %c0_i32, %c0_i32_0 : i32, i32, i32
  }
  func.func @transform_1(%arg0: i32) -> (i32, i32, i32) {
    %c0_i32 = arith.constant 0 : i32
    %0 = arith.subi %c0_i32, %arg0 : i32
    %c0_i32_0 = arith.constant 0 : i32
    %c0_i32_1 = arith.constant 0 : i32
    %c0_i32_2 = arith.constant 0 : i32
    return %0, %c0_i32_0, %c0_i32_1 : i32, i32, i32
  }
  func.func @transform_2(%arg0: i32) -> (i32, i32, i32) {
    %c0_i32 = arith.constant 0 : i32
    %c0_i32_0 = arith.constant 0 : i32
    %c0_i32_1 = arith.constant 0 : i32
    %c0_i32_2 = arith.constant 0 : i32
    return %c0_i32, %c0_i32_0, %c0_i32_1 : i32, i32, i32
  }
  func.func @transform_3(%arg0: i32) -> (i32, i32) {
    %c0_i32 = arith.constant 0 : i32
    %c0_i32_0 = arith.constant 0 : i32
    %c0_i32_1 = arith.constant 0 : i32
    return %c0_i32, %c0_i32_0 : i32, i32
  }
  func.func @transform_4(%arg0: i32) -> (i32, i32, i32) {
    %c0_i32 = arith.constant 0 : i32
    %c0_i32_0 = arith.constant 0 : i32
    %c0_i32_1 = arith.constant 0 : i32
    %c0_i32_2 = arith.constant 0 : i32
    return %c0_i32, %c0_i32_0, %c0_i32_1 : i32, i32, i32
  }
  func.func @transform_5(%arg0: i32) -> (i32, i32, i32) {
    %c0_i32 = arith.constant 0 : i32
    %c0_i32_0 = arith.constant 0 : i32
    %c0_i32_1 = arith.constant 0 : i32
    return %arg0, %c0_i32, %c0_i32_0 : i32, i32, i32
  }
  func.func @transform_6(%arg0: i32) -> (i32, i32, i32) {
    %c0_i32 = arith.constant 0 : i32
    %0 = arith.subi %c0_i32, %arg0 : i32
    %c0_i32_0 = arith.constant 0 : i32
    %c0_i32_1 = arith.constant 0 : i32
    %c0_i32_2 = arith.constant 0 : i32
    return %0, %c0_i32_0, %c0_i32_1 : i32, i32, i32
  }
}

</mosaic_0001>

<llo_original>
// kernel: blstm_forward.3
$region0: #{blstm_forward.3}
  #allocation0 [shape = 'u32[]', space=smem, size = 0x4, offset = 0x4, fixed_abs, tag = 'smem constant byte address 0x4 - core index']
  #allocation1 [shape = 'u32[144,128]{1,0:T(1,128)}', space=vmem, size = 0x12000, scoped, tag = 'internal scratch']
  #allocation2 [shape = 'f32[2,64]{1,0:T(2,128)}', space=vmem, size = 0x400, scoped, tag = 'scratch operand']
  #allocation3 [shape = 'f32[2,64]{1,0:T(2,128)}', space=vmem, size = 0x400, scoped, tag = 'scratch operand']
  %s0 = inlined_call_operand.vmem [shape: bf16[8,2,64], index: 0, kind: input, shape index: {}, may-alias: {0,1}]
  %s1 = inlined_call_operand.vmem [shape: bf16[8,2,64], index: 1, kind: input, shape index: {}, may-alias: {0,1}]
  %s2 = inlined_call_operand.vmem [shape: bf16[2,64,128], index: 2, kind: input, shape index: {}]
  %s3 = inlined_call_operand.vmem [shape: bf16[64,256], index: 3, kind: input, shape index: {}]
  %s4 = inlined_call_operand.vmem [shape: f32[2,1,128], index: 4, kind: input, shape index: {}]
  %s5 = inlined_call_operand.vmem [shape: bf16[8,2,32], index: 5, kind: output, shape index: {0}]
  %s6 = inlined_call_operand.vmem [shape: bf16[8,2,32], index: 6, kind: output, shape index: {1}]
  %7 = xla_tuple %s5, %s6
  %s8 = sld [smem:[#allocation0]]
  $region42: #{blstm_forward.3} parent=0
    _
  %s10 = ssub.s32 1, %s8
  %s11 = scalar_select 0, %s10, %s8
  // Predicated region
  $region2: #{blstm_forward.3} parent=0 // pred_check
    _
  $region3: #{blstm_forward.3} parent=0 // pred_check_branch
    %13 = sbr.rel (0) target = $region5
  $region4: #{blstm_forward.3} parent=0 // pred_region
    _
  $region5: #{blstm_forward.3} parent=0 // pred_fallthru
    _
  // Predicated region
  $region6: #{blstm_forward.3} parent=0 // pred_check
    _
  $region7: #{blstm_forward.3} parent=0 // pred_check_branch
    %15 = sbr.rel (0) target = $region9
  $region8: #{blstm_forward.3} parent=0 // pred_region
    %s16 = ssub.s32 0, 0
    %s17 = smul.u32 8, %s16
    %p18 = scmp.lt.s32.totalorder %s17, 7
    %s19 = scalar_select %p18, %s17, 7
    %s20 = scalar_lea.vmem %s1, %s19
    %s21 = ssub.s32 0, 0
    %s22 = smul.u32 8, %s21
  $region9: #{blstm_forward.3} parent=0 // pred_fallthru
    _
  // Predicated region
  $region10: #{blstm_forward.3} parent=0 // pred_check
    _
  $region11: #{blstm_forward.3} parent=0 // pred_check_branch
    %24 = sbr.rel (0) target = $region13
  $region12: #{blstm_forward.3} parent=0 // pred_region
    _
  $region13: #{blstm_forward.3} parent=0 // pred_fallthru
    _
  // Predicated region
  $region14: #{blstm_forward.3} parent=0 // pred_check
    _
  $region15: #{blstm_forward.3} parent=0 // pred_check_branch
    %26 = sbr.rel (0) target = $region17
  $region16: #{blstm_forward.3} parent=0 // pred_region
    _
  $region17: #{blstm_forward.3} parent=0 // pred_fallthru
    _
  // Predicated region
  $region18: #{blstm_forward.3} parent=0 // pred_check
    _
  $region19: #{blstm_forward.3} parent=0 // pred_check_branch
    %28 = sbr.rel (0) target = $region21
  $region20: #{blstm_forward.3} parent=0 // pred_region
    _
  $region21: #{blstm_forward.3} parent=0 // pred_fallthru
    _
  %s29 = ssub.s32 0, 0
  %s30 = smul.u32 8, %s29
  %p31 = scmp.lt.s32.totalorder %s30, 7
  %s32 = scalar_select %p31, %s30, 7
  %s33 = scalar_lea.vmem %s1, %s32
  %s34 = ssub.s32 0, 0
  %s35 = smul.u32 8, %s34
  %p36 = scmp.lt.s32.totalorder %s35, 7
  %s37 = scalar_select %p36, %s35, 7
  %s38 = scalar_lea.vmem %s6, %s37
  %s39 = ssub.s32 0, 0
  %s40 = smul.u32 8, %s39
  %p41 = scmp.lt.s32.totalorder %s40, 7
  %s42 = scalar_select %p41, %s40, 7
  %s43 = scalar_lea.vmem %s1, %s42
  %s44 = ssub.s32 0, 0
  %s45 = smul.u32 8, %s44
  %s46 = ssub.s32 0, 0
  %s47 = smul.u32 8, %s46
  %p48 = scmp.lt.s32.totalorder %s47, 7
  %s49 = scalar_select %p48, %s47, 7
  %s50 = scalar_lea.vmem %s6, %s49
  %s51 = ssub.s32 0, 0
  %s52 = smul.u32 8, %s51
  %p54 = scmp.eq.s32.totalorder 0, 0
  // Predicated region
  $region22: #{blstm_forward.3} parent=0 // pred_check
    %p55 = pneg %p54
  $region23: #{blstm_forward.3} parent=0 // pred_check_branch
    %57 = sbr.rel (%p55) target = $region25
  $region24: #{blstm_forward.3} parent=0 // pred_region
    %vm58 = vcmask 517120
    %59 = vst.msk [vmem:[#allocation2] sm:$0x3] %vm58, 0.0
    %60 = vst.msk [vmem:[#allocation3] sm:$0x3] %vm58, 0.0
  $region25: #{blstm_forward.3} parent=0 // pred_fallthru
    _
  %v61 = vld [vmem:[%s2] sm:$0xf]
  %v62 = vld [vmem:[%s2 + $0x4] sm:$0xf]
  %v63 = vld [vmem:[%s2 + $0x8] sm:$0xf]
  %v64 = vld [vmem:[%s2 + $0xc] sm:$0xf]
  %v65 = vld [vmem:[%s2 + $0x10] sm:$0xf]
  %v66 = vld [vmem:[%s2 + $0x14] sm:$0xf]
  %v67 = vld [vmem:[%s2 + $0x18] sm:$0xf]
  %v68 = vld [vmem:[%s2 + $0x1c] sm:$0xf]
  %s69 = scalar_lea.vmem %s2, 32
  %v70 = vld [vmem:[%s69] sm:$0xf]
  %v71 = vld [vmem:[%s69 + $0x4] sm:$0xf]
  %v72 = vld [vmem:[%s69 + $0x8] sm:$0xf]
  %v73 = vld [vmem:[%s69 + $0xc] sm:$0xf]
  %v74 = vld [vmem:[%s69 + $0x10] sm:$0xf]
  %v75 = vld [vmem:[%s69 + $0x14] sm:$0xf]
  %v76 = vld [vmem:[%s69 + $0x18] sm:$0xf]
  %v77 = vld [vmem:[%s69 + $0x1c] sm:$0xf]
  %v78 = vld [vmem:[%s3] sm:$0xff]
  %v79 = vld [vmem:[%s3 + $0x8] sm:$0xff]
  %v80 = vld [vmem:[%s3 + $0x10] sm:$0xff]
  %v81 = vld [vmem:[%s3 + $0x18] sm:$0xff]
  %v82 = vld [vmem:[%s3 + $0x20] sm:$0xff]
  %v83 = vld [vmem:[%s3 + $0x28] sm:$0xff]
  %v84 = vld [vmem:[%s3 + $0x30] sm:$0xff]
  %v85 = vld [vmem:[%s3 + $0x38] sm:$0xff]
  %v86 = vld [vmem:[%s4] sm:$0x1]
  %s87 = scalar_lea.vmem %s4, 1
  %v88 = vld [vmem:[%s87] sm:$0x1]
  %v89 = vld [vmem:[#allocation2] sm:$0x3]
  %v90 = vld [vmem:[#allocation3] sm:$0x3]
  %v91 = vpack.c.bf16 %v89, %v89
  %v100 = vunpack.c.l.b16 %v78
  %v101 = vunpack.c.h.b16 %v78
  %v102 = vunpack.c.l.b16 %v79
  %v103 = vunpack.c.h.b16 %v79
  %v104 = vunpack.c.l.b16 %v80
  %v105 = vunpack.c.h.b16 %v80
  %v106 = vunpack.c.l.b16 %v81
  %v107 = vunpack.c.h.b16 %v81
  %v108 = vunpack.c.l.b16 %v82
  %v109 = vunpack.c.h.b16 %v82
  %v110 = vunpack.c.l.b16 %v83
  %v111 = vunpack.c.h.b16 %v83
  %v112 = vunpack.c.l.b16 %v84
  %v113 = vunpack.c.h.b16 %v84
  %v114 = vunpack.c.l.b16 %v85
  %v115 = vunpack.c.h.b16 %v85
  %v116 = vpack.c.b16 %v102, %v100
  %v117 = vpack.c.b16 %v103, %v101
  %v118 = vpack.c.b16 %v106, %v104
  %v119 = vpack.c.b16 %v107, %v105
  %v120 = vpack.c.b16 %v110, %v108
  %v121 = vpack.c.b16 %v111, %v109
  %v122 = vpack.c.b16 %v114, %v112
  %v123 = vpack.c.b16 %v115, %v113
  %vm132 = vcmask 523264
  %v134 = vsel %vm132, %v91, 0
  %136 = vmatprep.subr.bf16.mxu0 %v117
  %137 = vmatpush1.bf16.msra.mxu0 %v116
  %138 = vmatprep.subr.bf16.mxu0 %v119
  %139 = vmatpush1.bf16.msra.mxu0 %v118
  %140 = vmatprep.subr.bf16.mxu0 %v121
  %141 = vmatpush1.bf16.msra.mxu0 %v120
  %142 = vmatprep.subr.bf16.mxu0 %v123
  %143 = vmatpush1.bf16.msra.mxu0 %v122
  %144 = vmatprep.subr.bf16.mxu0 0
  %145 = vmatpush1.bf16.msra.mxu0 0
  %146 = vmatprep.subr.bf16.mxu0 0
  %147 = vmatpush1.bf16.msra.mxu0 0
  %148 = vmatprep.subr.bf16.mxu0 0
  %149 = vmatpush1.bf16.msra.mxu0 0
  %150 = vmatprep.subr.bf16.mxu0 0
  %151 = vmatpush1.bf16.msra.mxu0 0
  %152 = vmatprep.subr.bf16.mxu0 0
  %153 = vmatpush1.bf16.msra.mxu0 0
  %154 = vmatprep.subr.bf16.mxu0 0
  %155 = vmatpush1.bf16.msra.mxu0 0
  %156 = vmatprep.subr.bf16.mxu0 0
  %157 = vmatpush1.bf16.msra.mxu0 0
  %158 = vmatprep.subr.bf16.mxu0 0
  %159 = vmatpush1.bf16.msra.mxu0 0
  %160 = vmatprep.subr.bf16.mxu0 0
  %161 = vmatpush1.bf16.msra.mxu0 0
  %162 = vmatprep.subr.bf16.mxu0 0
  %163 = vmatpush1.bf16.msra.mxu0 0
  %164 = vmatprep.subr.bf16.mxu0 0
  %165 = vmatpush1.bf16.msra.mxu0 0
  %166 = vmatprep.subr.bf16.mxu0 0
  %167 = vmatpush1.bf16.msra.mxu0 0
  %168 = vmatprep.mubr.bf16.mxu0 0
  %169 = vmatmul.mubr.bf16.gmra.mrb[0].mxu0 %v134
  %v170 = vpop.f32.mrb[0].mxu0
  %v171 = vadd.f32 0.0, %v170
  %v172 = vpop.f32.mrb[0].mxu0
  %v173 = vadd.f32 0.0, %v172
  %v174 = vpop.f32.mrb[0].mxu0
  %v175 = vpop.f32.mrb[0].mxu0
  %176 = vdwg.mxu0
  %v177 = vld [vmem:[%s0] sm:$0x1]
  %v179 = vlaneseq
  %v180 = vshrl.u32 %v179, 7
  %v181 = vsub.s32 0, %v180
  %v182 = vrot.slane %v86, %v181
  %v192 = vunpack.c.l.b16 %v61
  %v193 = vunpack.c.l.b16 %v62
  %v194 = vunpack.c.l.b16 %v63
  %v195 = vunpack.c.l.b16 %v64
  %v196 = vunpack.c.l.b16 %v65
  %v197 = vunpack.c.l.b16 %v66
  %v198 = vunpack.c.l.b16 %v67
  %v199 = vunpack.c.l.b16 %v68
  %v200 = vpack.c.b16 %v193, %v192
  %v201 = vpack.c.b16 %v195, %v194
  %v202 = vpack.c.b16 %v197, %v196
  %v203 = vpack.c.b16 %v199, %v198
  %v209 = vsel %vm132, %v177, 0
  %211 = vmatprep.subr.bf16.mxu0 0
  %212 = vmatpush1.bf16.msra.mxu0 %v200
  %213 = vmatprep.subr.bf16.mxu0 0
  %214 = vmatpush1.bf16.msra.mxu0 %v201
  %215 = vmatprep.subr.bf16.mxu0 0
  %216 = vmatpush1.bf16.msra.mxu0 %v202
  %217 = vmatprep.subr.bf16.mxu0 0
  %218 = vmatpush1.bf16.msra.mxu0 %v203
  %219 = vmatprep.subr.bf16.mxu0 0
  %220 = vmatpush1.bf16.msra.mxu0 0
  %221 = vmatprep.subr.bf16.mxu0 0
  %222 = vmatpush1.bf16.msra.mxu0 0
  %223 = vmatprep.subr.bf16.mxu0 0
  %224 = vmatpush1.bf16.msra.mxu0 0
  %225 = vmatprep.subr.bf16.mxu0 0
  %226 = vmatpush1.bf16.msra.mxu0 0
  %227 = vmatprep.subr.bf16.mxu0 0
  %228 = vmatpush1.bf16.msra.mxu0 0
  %229 = vmatprep.subr.bf16.mxu0 0
  %230 = vmatpush1.bf16.msra.mxu0 0
  %231 = vmatprep.subr.bf16.mxu0 0
  %232 = vmatpush1.bf16.msra.mxu0 0
  %233 = vmatprep.subr.bf16.mxu0 0
  %234 = vmatpush1.bf16.msra.mxu0 0
  %235 = vmatprep.subr.bf16.mxu0 0
  %236 = vmatpush1.bf16.msra.mxu0 0
  %237 = vmatprep.subr.bf16.mxu0 0
  %238 = vmatpush1.bf16.msra.mxu0 0
  %239 = vmatprep.subr.bf16.mxu0 0
  %240 = vmatpush1.bf16.msra.mxu0 0
  %241 = vmatprep.subr.bf16.mxu0 0
  %242 = vmatpush1.bf16.msra.mxu0 0
  %243 = vmatprep.mubr.bf16.mxu0 0
  %244 = vmatmul.mubr.bf16.gmra.mrb[0].mxu0 %v209
  %v245 = vpop.f32.mrb[0].mxu0
  %v246 = vadd.f32 %v182, %v245
  %v247 = vpop.f32.mrb[0].mxu0
  %v248 = vpop.f32.mrb[0].mxu0
  %v249 = vpop.f32.mrb[0].mxu0
  %250 = vdwg.mxu0
  %s251 = scalar_lea.vmem %s43, 7
  %v252 = vld [vmem:[%s251] sm:$0x1]
  %v254 = vlaneseq
  %v255 = vshrl.u32 %v254, 7
  %v256 = vsub.s32 0, %v255
  %v257 = vrot.slane %v88, %v256
  %v267 = vunpack.c.l.b16 %v70
  %v268 = vunpack.c.l.b16 %v71
  %v269 = vunpack.c.l.b16 %v72
  %v270 = vunpack.c.l.b16 %v73
  %v271 = vunpack.c.l.b16 %v74
  %v272 = vunpack.c.l.b16 %v75
  %v273 = vunpack.c.l.b16 %v76
  %v274 = vunpack.c.l.b16 %v77
  %v275 = vpack.c.b16 %v268, %v267
  %v276 = vpack.c.b16 %v270, %v269
  %v277 = vpack.c.b16 %v272, %v271
  %v278 = vpack.c.b16 %v274, %v273
  %v284 = vsel %vm132, %v252, 0
  %286 = vmatprep.subr.bf16.mxu0 0
  %287 = vmatpush1.bf16.msra.mxu0 %v275
  %288 = vmatprep.subr.bf16.mxu0 0
  %289 = vmatpush1.bf16.msra.mxu0 %v276
  %290 = vmatprep.subr.bf16.mxu0 0
  %291 = vmatpush1.bf16.msra.mxu0 %v277
  %292 = vmatprep.subr.bf16.mxu0 0
  %293 = vmatpush1.bf16.msra.mxu0 %v278
  %294 = vmatprep.subr.bf16.mxu0 0
  %295 = vmatpush1.bf16.msra.mxu0 0
  %296 = vmatprep.subr.bf16.mxu0 0
  %297 = vmatpush1.bf16.msra.mxu0 0
  %298 = vmatprep.subr.bf16.mxu0 0
  %299 = vmatpush1.bf16.msra.mxu0 0
  %300 = vmatprep.subr.bf16.mxu0 0
  %301 = vmatpush1.bf16.msra.mxu0 0
  %302 = vmatprep.subr.bf16.mxu0 0
  %303 = vmatpush1.bf16.msra.mxu0 0
  %304 = vmatprep.subr.bf16.mxu0 0
  %305 = vmatpush1.bf16.msra.mxu0 0
  %306 = vmatprep.subr.bf16.mxu0 0
  %307 = vmatpush1.bf16.msra.mxu0 0
  %308 = vmatprep.subr.bf16.mxu0 0
  %309 = vmatpush1.bf16.msra.mxu0 0
  %310 = vmatprep.subr.bf16.mxu0 0
  %311 = vmatpush1.bf16.msra.mxu0 0
  %312 = vmatprep.subr.bf16.mxu0 0
  %313 = vmatpush1.bf16.msra.mxu0 0
  %314 = vmatprep.subr.bf16.mxu0 0
  %315 = vmatpush1.bf16.msra.mxu0 0
  %316 = vmatprep.subr.bf16.mxu0 0
  %317 = vmatpush1.bf16.msra.mxu0 0
  %318 = vmatprep.mubr.bf16.mxu0 0
  %319 = vmatmul.mubr.bf16.gmra.mrb[0].mxu0 %v284
  %v320 = vpop.f32.mrb[0].mxu0
  %v321 = vadd.f32 %v257, %v320
  %v322 = vpop.f32.mrb[0].mxu0
  %v323 = vpop.f32.mrb[0].mxu0
  %v324 = vpop.f32.mrb[0].mxu0
  %325 = vdwg.mxu0
  %v326 = vadd.f32 %v171, %v246
  %v327 = vadd.f32 %v173, %v321
  %v328 = vxor.u32 %v326, 2147483648
  %v329 = vmul.f32 %v328, 1.442695
  %v330 = vpow.pop %v329
  %v331 = vadd.f32 %v330, 1.0
  %v332 = vrcp.pop %v331
  %v333 = vmul.f32 1.0, %v332
  %v334 = vtanh.pop %v326
  %336 = vrot.lane.b32.xlu0 %v90, 32
  %v337 = vpop.permute.xlu0 %336
  %v339 = vmul.f32 %v333, %v337
  %341 = vrot.lane.b32.xlu0 %v334, 64
  %v342 = vpop.permute.xlu0 %341
  %v344 = vmul.f32 %v333, %v342
  %346 = vrot.lane.b32.xlu0 %v344, 32
  %v347 = vpop.permute.xlu0 %346
  %v349 = vadd.f32 %v339, %v347
  %v350 = vtanh.pop %v349
  %352 = vrot.lane.b32.xlu0 %v350, 64
  %v353 = vpop.permute.xlu0 %352
  %v355 = vmul.f32 %v333, %v353
  %v356 = vxor.u32 %v327, 2147483648
  %v357 = vmul.f32 %v356, 1.442695
  %v358 = vpow.pop %v357
  %v359 = vadd.f32 %v358, 1.0
  %v360 = vrcp.pop %v359
  %v361 = vmul.f32 1.0, %v360
  %v362 = vtanh.pop %v327
  %v363 = vmul.f32 %v361, %v90
  %365 = vrot.lane.b32.xlu0 %v362, 64
  %v366 = vpop.permute.xlu0 %365
  %v368 = vmul.f32 %v361, %v366
  %370 = vrot.lane.b32.xlu0 %v368, 32
  %v371 = vpop.permute.xlu0 %370
  %v373 = vadd.f32 %v363, %v371
  %v374 = vtanh.pop %v373
  %376 = vrot.lane.b32.xlu0 %v374, 64
  %v377 = vpop.permute.xlu0 %376
  %v379 = vmul.f32 %v361, %v377
  %v380 = vpack.c.bf16 %v355, %v355
  %v383 = vunpack.c.l.s4 1966171168
  %v384 = vunpack.c.0.s8 %v383
  %v385 = vlaneseq
  %v386 = vshrl.u32 %v385, 7
  %v387 = vsub.s32 %v384, %v386
  %v388 = vrot.slane %v380, %v387
  %v390 = vunpack.c.l.s4 1966171168
  %v391 = vunpack.c.0.s8 %v390
  %v392 = vlaneseq
  %v393 = vshrl.u32 %v392, 7
  %v394 = vsub.s32 %v391, %v393
  %v395 = vrot.slane %v388, %v394
  %396 = vrot.lane.b32.xlu0 %v395, 32
  %v397 = vpop.permute.xlu0 %396
  %vm399 = vcmask 253952
  %400 = vst.msk [vmem:[%s5] sm:$0x1] %vm399, %v397
  %v401 = vpack.c.bf16 %v379, %v379
  %v404 = vunpack.c.l.s4 1966171168
  %v405 = vunpack.c.0.s8 %v404
  %v406 = vlaneseq
  %v407 = vshrl.u32 %v406, 7
  %v408 = vsub.s32 %v405, %v407
  %v409 = vrot.slane %v401, %v408
  %v411 = vunpack.c.l.s4 1966171168
  %v412 = vunpack.c.0.s8 %v411
  %v413 = vlaneseq
  %v414 = vshrl.u32 %v413, 7
  %v415 = vsub.s32 %v412, %v414
  %v416 = vrot.slane %v409, %v415
  %417 = vrot.lane.b32.xlu0 %v416, 32
  %v418 = vpop.permute.xlu0 %417
  %s420 = scalar_lea.vmem %s50, 7
  %421 = vst.msk [vmem:[%s420] sm:$0x1] %vm399, %v418
  %423 = vrot.lane.b32.xlu0 %v355, 32
  %v424 = vpop.permute.xlu0 %423
  %427 = vrot.lane.b32.xlu0 %v379, 64
  %v428 = vpop.permute.xlu0 %427
  %vm430 = vcmask 261120
  %v431 = vsel %vm430, %v424, %v428
  %v432 = vpack.c.bf16 %v431, %v431
  %v434 = vsel %vm132, %v432, 0
  %436 = vmatprep.subr.bf16.mxu0 %v117
  %437 = vmatpush1.bf16.msra.mxu0 %v116
  %438 = vmatprep.subr.bf16.mxu0 %v119
  %439 = vmatpush1.bf16.msra.mxu0 %v118
  %440 = vmatprep.subr.bf16.mxu0 %v121
  %441 = vmatpush1.bf16.msra.mxu0 %v120
  %442 = vmatprep.subr.bf16.mxu0 %v123
  %443 = vmatpush1.bf16.msra.mxu0 %v122
  %444 = vmatprep.subr.bf16.mxu0 0
  %445 = vmatpush1.bf16.msra.mxu0 0
  %446 = vmatprep.subr.bf16.mxu0 0
  %447 = vmatpush1.bf16.msra.mxu0 0
  %448 = vmatprep.subr.bf16.mxu0 0
  %449 = vmatpush1.bf16.msra.mxu0 0
  %450 = vmatprep.subr.bf16.mxu0 0
  %451 = vmatpush1.bf16.msra.mxu0 0
  %452 = vmatprep.subr.bf16.mxu0 0
  %453 = vmatpush1.bf16.msra.mxu0 0
  %454 = vmatprep.subr.bf16.mxu0 0
  %455 = vmatpush1.bf16.msra.mxu0 0
  %456 = vmatprep.subr.bf16.mxu0 0
  %457 = vmatpush1.bf16.msra.mxu0 0
  %458 = vmatprep.subr.bf16.mxu0 0
  %459 = vmatpush1.bf16.msra.mxu0 0
  %460 = vmatprep.subr.bf16.mxu0 0
  %461 = vmatpush1.bf16.msra.mxu0 0
  %462 = vmatprep.subr.bf16.mxu0 0
  %463 = vmatpush1.bf16.msra.mxu0 0
  %464 = vmatprep.subr.bf16.mxu0 0
  %465 = vmatpush1.bf16.msra.mxu0 0
  %466 = vmatprep.subr.bf16.mxu0 0
  %467 = vmatpush1.bf16.msra.mxu0 0
  %468 = vmatprep.mubr.bf16.mxu0 0
  %469 = vmatmul.mubr.bf16.gmra.mrb[0].mxu0 %v434
  %v470 = vpop.f32.mrb[0].mxu0
  %v471 = vadd.f32 0.0, %v470
  %v472 = vpop.f32.mrb[0].mxu0
  %v473 = vadd.f32 0.0, %v472
  %v474 = vpop.f32.mrb[0].mxu0
  %v475 = vpop.f32.mrb[0].mxu0
  %476 = vdwg.mxu0
  %s477 = scalar_lea.vmem %s0, 1
  %v478 = vld [vmem:[%s477] sm:$0x1]
  %v480 = vsel %vm132, %v478, 0
  %482 = vmatprep.subr.bf16.mxu0 0
  %483 = vmatpush1.bf16.msra.mxu0 %v200
  %484 = vmatprep.subr.bf16.mxu0 0
  %485 = vmatpush1.bf16.msra.mxu0 %v201
  %486 = vmatprep.subr.bf16.mxu0 0
  %487 = vmatpush1.bf16.msra.mxu0 %v202
  %488 = vmatprep.subr.bf16.mxu0 0
  %489 = vmatpush1.bf16.msra.mxu0 %v203
  %490 = vmatprep.subr.bf16.mxu0 0
  %491 = vmatpush1.bf16.msra.mxu0 0
  %492 = vmatprep.subr.bf16.mxu0 0
  %493 = vmatpush1.bf16.msra.mxu0 0
  %494 = vmatprep.subr.bf16.mxu0 0
  %495 = vmatpush1.bf16.msra.mxu0 0
  %496 = vmatprep.subr.bf16.mxu0 0
  %497 = vmatpush1.bf16.msra.mxu0 0
  %498 = vmatprep.subr.bf16.mxu0 0
  %499 = vmatpush1.bf16.msra.mxu0 0
  %500 = vmatprep.subr.bf16.mxu0 0
  %501 = vmatpush1.bf16.msra.mxu0 0
  %502 = vmatprep.subr.bf16.mxu0 0
  %503 = vmatpush1.bf16.msra.mxu0 0
  %504 = vmatprep.subr.bf16.mxu0 0
  %505 = vmatpush1.bf16.msra.mxu0 0
  %506 = vmatprep.subr.bf16.mxu0 0
  %507 = vmatpush1.bf16.msra.mxu0 0
  %508 = vmatprep.subr.bf16.mxu0 0
  %509 = vmatpush1.bf16.msra.mxu0 0
  %510 = vmatprep.subr.bf16.mxu0 0
  %511 = vmatpush1.bf16.msra.mxu0 0
  %512 = vmatprep.subr.bf16.mxu0 0
  %513 = vmatpush1.bf16.msra.mxu0 0
  %514 = vmatprep.mubr.bf16.mxu0 0
  %515 = vmatmul.mubr.bf16.gmra.mrb[0].mxu0 %v480
  %v516 = vpop.f32.mrb[0].mxu0
  %v517 = vadd.f32 %v182, %v516
  %v518 = vpop.f32.mrb[0].mxu0
  %v519 = vpop.f32.mrb[0].mxu0
  %v520 = vpop.f32.mrb[0].mxu0
  %521 = vdwg.mxu0
  %s522 = scalar_lea.vmem %s43, 6
  %v523 = vld [vmem:[%s522] sm:$0x1]
  %v525 = vsel %vm132, %v523, 0
  %527 = vmatprep.subr.bf16.mxu0 0
  %528 = vmatpush1.bf16.msra.mxu0 %v275
  %529 = vmatprep.subr.bf16.mxu0 0
  %530 = vmatpush1.bf16.msra.mxu0 %v276
  %531 = vmatprep.subr.bf16.mxu0 0
  %532 = vmatpush1.bf16.msra.mxu0 %v277
  %533 = vmatprep.subr.bf16.mxu0 0
  %534 = vmatpush1.bf16.msra.mxu0 %v278
  %535 = vmatprep.subr.bf16.mxu0 0
  %536 = vmatpush1.bf16.msra.mxu0 0
  %537 = vmatprep.subr.bf16.mxu0 0
  %538 = vmatpush1.bf16.msra.mxu0 0
  %539 = vmatprep.subr.bf16.mxu0 0
  %540 = vmatpush1.bf16.msra.mxu0 0
  %541 = vmatprep.subr.bf16.mxu0 0
  %542 = vmatpush1.bf16.msra.mxu0 0
  %543 = vmatprep.subr.bf16.mxu0 0
  %544 = vmatpush1.bf16.msra.mxu0 0
  %545 = vmatprep.subr.bf16.mxu0 0
  %546 = vmatpush1.bf16.msra.mxu0 0
  %547 = vmatprep.subr.bf16.mxu0 0
  %548 = vmatpush1.bf16.msra.mxu0 0
  %549 = vmatprep.subr.bf16.mxu0 0
  %550 = vmatpush1.bf16.msra.mxu0 0
  %551 = vmatprep.subr.bf16.mxu0 0
  %552 = vmatpush1.bf16.msra.mxu0 0
  %553 = vmatprep.subr.bf16.mxu0 0
  %554 = vmatpush1.bf16.msra.mxu0 0
  %555 = vmatprep.subr.bf16.mxu0 0
  %556 = vmatpush1.bf16.msra.mxu0 0
  %557 = vmatprep.subr.bf16.mxu0 0
  %558 = vmatpush1.bf16.msra.mxu0 0
  %559 = vmatprep.mubr.bf16.mxu0 0
  %560 = vmatmul.mubr.bf16.gmra.mrb[0].mxu0 %v525
  %v561 = vpop.f32.mrb[0].mxu0
  %v562 = vadd.f32 %v257, %v561
  %v563 = vpop.f32.mrb[0].mxu0
  %v564 = vpop.f32.mrb[0].mxu0
  %v565 = vpop.f32.mrb[0].mxu0
  %566 = vdwg.mxu0
  %v567 = vadd.f32 %v471, %v517
  %v568 = vadd.f32 %v473, %v562
  %v569 = vxor.u32 %v567, 2147483648
  %v570 = vmul.f32 %v569, 1.442695
  %v571 = vpow.pop %v570
  %v572 = vadd.f32 %v571, 1.0
  %v573 = vrcp.pop %v572
  %v574 = vmul.f32 1.0, %v573
  %v575 = vtanh.pop %v567
  %v576 = vmul.f32 %v574, %v349
  %578 = vrot.lane.b32.xlu0 %v575, 64
  %v579 = vpop.permute.xlu0 %578
  %v581 = vmul.f32 %v574, %v579
  %583 = vrot.lane.b32.xlu0 %v581, 32
  %v584 = vpop.permute.xlu0 %583
  %v586 = vadd.f32 %v576, %v584
  %v587 = vtanh.pop %v586
  %589 = vrot.lane.b32.xlu0 %v587, 64
  %v590 = vpop.permute.xlu0 %589
  %v592 = vmul.f32 %v574, %v590
  %v593 = vxor.u32 %v568, 2147483648
  %v594 = vmul.f32 %v593, 1.442695
  %v595 = vpow.pop %v594
  %v596 = vadd.f32 %v595, 1.0
  %v597 = vrcp.pop %v596
  %v598 = vmul.f32 1.0, %v597
  %v599 = vtanh.pop %v568
  %v600 = vmul.f32 %v598, %v373
  %602 = vrot.lane.b32.xlu0 %v599, 64
  %v603 = vpop.permute.xlu0 %602
  %v605 = vmul.f32 %v598, %v603
  %607 = vrot.lane.b32.xlu0 %v605, 32
  %v608 = vpop.permute.xlu0 %607
  %v610 = vadd.f32 %v600, %v608
  %v611 = vtanh.pop %v610
  %613 = vrot.lane.b32.xlu0 %v611, 64
  %v614 = vpop.permute.xlu0 %613
  %v616 = vmul.f32 %v598, %v614
  %v617 = vpack.c.bf16 %v592, %v592
  %v620 = vunpack.c.l.s4 1966171168
  %v621 = vunpack.c.0.s8 %v620
  %v622 = vlaneseq
  %v623 = vshrl.u32 %v622, 7
  %v624 = vsub.s32 %v621, %v623
  %v625 = vrot.slane %v617, %v624
  %v627 = vunpack.c.l.s4 1966171168
  %v628 = vunpack.c.0.s8 %v627
  %v629 = vlaneseq
  %v630 = vshrl.u32 %v629, 7
  %v631 = vsub.s32 %v628, %v630
  %v632 = vrot.slane %v625, %v631
  %633 = vrot.lane.b32.xlu0 %v632, 32
  %v634 = vpop.permute.xlu0 %633
  %s636 = scalar_lea.vmem %s5, 1
  %637 = vst.msk [vmem:[%s636] sm:$0x1] %vm399, %v634
  %v638 = vpack.c.bf16 %v616, %v616
  %v641 = vunpack.c.l.s4 1966171168
  %v642 = vunpack.c.0.s8 %v641
  %v643 = vlaneseq
  %v644 = vshrl.u32 %v643, 7
  %v645 = vsub.s32 %v642, %v644
  %v646 = vrot.slane %v638, %v645
  %v648 = vunpack.c.l.s4 1966171168
  %v649 = vunpack.c.0.s8 %v648
  %v650 = vlaneseq
  %v651 = vshrl.u32 %v650, 7
  %v652 = vsub.s32 %v649, %v651
  %v653 = vrot.slane %v646, %v652
  %654 = vrot.lane.b32.xlu0 %v653, 32
  %v655 = vpop.permute.xlu0 %654
  %s657 = scalar_lea.vmem %s50, 6
  %658 = vst.msk [vmem:[%s657] sm:$0x1] %vm399, %v655
  %660 = vrot.lane.b32.xlu0 %v592, 32
  %v661 = vpop.permute.xlu0 %660
  %664 = vrot.lane.b32.xlu0 %v616, 64
  %v665 = vpop.permute.xlu0 %664
  %v667 = vsel %vm430, %v661, %v665
  %v668 = vpack.c.bf16 %v667, %v667
  %v670 = vsel %vm132, %v668, 0
  %672 = vmatprep.subr.bf16.mxu0 %v117
  %673 = vmatpush1.bf16.msra.mxu0 %v116
  %674 = vmatprep.subr.bf16.mxu0 %v119
  %675 = vmatpush1.bf16.msra.mxu0 %v118
  %676 = vmatprep.subr.bf16.mxu0 %v121
  %677 = vmatpush1.bf16.msra.mxu0 %v120
  %678 = vmatprep.subr.bf16.mxu0 %v123
  %679 = vmatpush1.bf16.msra.mxu0 %v122
  %680 = vmatprep.subr.bf16.mxu0 0
  %681 = vmatpush1.bf16.msra.mxu0 0
  %682 = vmatprep.subr.bf16.mxu0 0
  %683 = vmatpush1.bf16.msra.mxu0 0
  %684 = vmatprep.subr.bf16.mxu0 0
  %685 = vmatpush1.bf16.msra.mxu0 0
  %686 = vmatprep.subr.bf16.mxu0 0
  %687 = vmatpush1.bf16.msra.mxu0 0
  %688 = vmatprep.subr.bf16.mxu0 0
  %689 = vmatpush1.bf16.msra.mxu0 0
  %690 = vmatprep.subr.bf16.mxu0 0
  %691 = vmatpush1.bf16.msra.mxu0 0
  %692 = vmatprep.subr.bf16.mxu0 0
  %693 = vmatpush1.bf16.msra.mxu0 0
  %694 = vmatprep.subr.bf16.mxu0 0
  %695 = vmatpush1.bf16.msra.mxu0 0
  %696 = vmatprep.subr.bf16.mxu0 0
  %697 = vmatpush1.bf16.msra.mxu0 0
  %698 = vmatprep.subr.bf16.mxu0 0
  %699 = vmatpush1.bf16.msra.mxu0 0
  %700 = vmatprep.subr.bf16.mxu0 0
  %701 = vmatpush1.bf16.msra.mxu0 0
  %702 = vmatprep.subr.bf16.mxu0 0
  %703 = vmatpush1.bf16.msra.mxu0 0
  %704 = vmatprep.mubr.bf16.mxu0 0
  %705 = vmatmul.mubr.bf16.gmra.mrb[0].mxu0 %v670
  %v706 = vpop.f32.mrb[0].mxu0
  %v707 = vadd.f32 0.0, %v706
  %v708 = vpop.f32.mrb[0].mxu0
  %v709 = vadd.f32 0.0, %v708
  %v710 = vpop.f32.mrb[0].mxu0
  %v711 = vpop.f32.mrb[0].mxu0
  %712 = vdwg.mxu0
  %s713 = scalar_lea.vmem %s0, 2
  %v714 = vld [vmem:[%s713] sm:$0x1]
  %v716 = vsel %vm132, %v714, 0
  %718 = vmatprep.subr.bf16.mxu0 0
  %719 = vmatpush1.bf16.msra.mxu0 %v200
  %720 = vmatprep.subr.bf16.mxu0 0
  %721 = vmatpush1.bf16.msra.mxu0 %v201
  %722 = vmatprep.subr.bf16.mxu0 0
  %723 = vmatpush1.bf16.msra.mxu0 %v202
  %724 = vmatprep.subr.bf16.mxu0 0
  %725 = vmatpush1.bf16.msra.mxu0 %v203
  %726 = vmatprep.subr.bf16.mxu0 0
  %727 = vmatpush1.bf16.msra.mxu0 0
  %728 = vmatprep.subr.bf16.mxu0 0
  %729 = vmatpush1.bf16.msra.mxu0 0
  %730 = vmatprep.subr.bf16.mxu0 0
  %731 = vmatpush1.bf16.msra.mxu0 0
  %732 = vmatprep.subr.bf16.mxu0 0
  %733 = vmatpush1.bf16.msra.mxu0 0
  %734 = vmatprep.subr.bf16.mxu0 0
  %735 = vmatpush1.bf16.msra.mxu0 0
  %736 = vmatprep.subr.bf16.mxu0 0
  %737 = vmatpush1.bf16.msra.mxu0 0
  %738 = vmatprep.subr.bf16.mxu0 0
  %739 = vmatpush1.bf16.msra.mxu0 0
  %740 = vmatprep.subr.bf16.mxu0 0
  %741 = vmatpush1.bf16.msra.mxu0 0
  %742 = vmatprep.subr.bf16.mxu0 0
  %743 = vmatpush1.bf16.msra.mxu0 0
  %744 = vmatprep.subr.bf16.mxu0 0
  %745 = vmatpush1.bf16.msra.mxu0 0
  %746 = vmatprep.subr.bf16.mxu0 0
  %747 = vmatpush1.bf16.msra.mxu0 0
  %748 = vmatprep.subr.bf16.mxu0 0
  %749 = vmatpush1.bf16.msra.mxu0 0
  %750 = vmatprep.mubr.bf16.mxu0 0
  %751 = vmatmul.mubr.bf16.gmra.mrb[0].mxu0 %v716
  %v752 = vpop.f32.mrb[0].mxu0
  %v753 = vadd.f32 %v182, %v752
  %v754 = vpop.f32.mrb[0].mxu0
  %v755 = vpop.f32.mrb[0].mxu0
  %v756 = vpop.f32.mrb[0].mxu0
  %757 = vdwg.mxu0
  %s758 = scalar_lea.vmem %s43, 5
  %v759 = vld [vmem:[%s758] sm:$0x1]
  %v761 = vsel %vm132, %v759, 0
  %763 = vmatprep.subr.bf16.mxu0 0
  %764 = vmatpush1.bf16.msra.mxu0 %v275
  %765 = vmatprep.subr.bf16.mxu0 0
  %766 = vmatpush1.bf16.msra.mxu0 %v276
  %767 = vmatprep.subr.bf16.mxu0 0
  %768 = vmatpush1.bf16.msra.mxu0 %v277
  %769 = vmatprep.subr.bf16.mxu0 0
  %770 = vmatpush1.bf16.msra.mxu0 %v278
  %771 = vmatprep.subr.bf16.mxu0 0
  %772 = vmatpush1.bf16.msra.mxu0 0
  %773 = vmatprep.subr.bf16.mxu0 0
  %774 = vmatpush1.bf16.msra.mxu0 0
  %775 = vmatprep.subr.bf16.mxu0 0
  %776 = vmatpush1.bf16.msra.mxu0 0
  %777 = vmatprep.subr.bf16.mxu0 0
  %778 = vmatpush1.bf16.msra.mxu0 0
  %779 = vmatprep.subr.bf16.mxu0 0
  %780 = vmatpush1.bf16.msra.mxu0 0
  %781 = vmatprep.subr.bf16.mxu0 0
  %782 = vmatpush1.bf16.msra.mxu0 0
  %783 = vmatprep.subr.bf16.mxu0 0
  %784 = vmatpush1.bf16.msra.mxu0 0
  %785 = vmatprep.subr.bf16.mxu0 0
  %786 = vmatpush1.bf16.msra.mxu0 0
  %787 = vmatprep.subr.bf16.mxu0 0
  %788 = vmatpush1.bf16.msra.mxu0 0
  %789 = vmatprep.subr.bf16.mxu0 0
  %790 = vmatpush1.bf16.msra.mxu0 0
  %791 = vmatprep.subr.bf16.mxu0 0
  %792 = vmatpush1.bf16.msra.mxu0 0
  %793 = vmatprep.subr.bf16.mxu0 0
  %794 = vmatpush1.bf16.msra.mxu0 0
  %795 = vmatprep.mubr.bf16.mxu0 0
  %796 = vmatmul.mubr.bf16.gmra.mrb[0].mxu0 %v761
  %v797 = vpop.f32.mrb[0].mxu0
  %v798 = vadd.f32 %v257, %v797
  %v799 = vpop.f32.mrb[0].mxu0
  %v800 = vpop.f32.mrb[0].mxu0
  %v801 = vpop.f32.mrb[0].mxu0
  %802 = vdwg.mxu0
  %v803 = vadd.f32 %v707, %v753
  %v804 = vadd.f32 %v709, %v798
  %v805 = vxor.u32 %v803, 2147483648
  %v806 = vmul.f32 %v805, 1.442695
  %v807 = vpow.pop %v806
  %v808 = vadd.f32 %v807, 1.0
  %v809 = vrcp.pop %v808
  %v810 = vmul.f32 1.0, %v809
  %v811 = vtanh.pop %v803
  %v812 = vmul.f32 %v810, %v586
  %814 = vrot.lane.b32.xlu0 %v811, 64
  %v815 = vpop.permute.xlu0 %814
  %v817 = vmul.f32 %v810, %v815
  %819 = vrot.lane.b32.xlu0 %v817, 32
  %v820 = vpop.permute.xlu0 %819
  %v822 = vadd.f32 %v812, %v820
  %v823 = vtanh.pop %v822
  %825 = vrot.lane.b32.xlu0 %v823, 64
  %v826 = vpop.permute.xlu0 %825
  %v828 = vmul.f32 %v810, %v826
  %v829 = vxor.u32 %v804, 2147483648
  %v830 = vmul.f32 %v829, 1.442695
  %v831 = vpow.pop %v830
  %v832 = vadd.f32 %v831, 1.0
  %v833 = vrcp.pop %v832
  %v834 = vmul.f32 1.0, %v833
  %v835 = vtanh.pop %v804
  %v836 = vmul.f32 %v834, %v610
  %838 = vrot.lane.b32.xlu0 %v835, 64
  %v839 = vpop.permute.xlu0 %838
  %v841 = vmul.f32 %v834, %v839
  %843 = vrot.lane.b32.xlu0 %v841, 32
  %v844 = vpop.permute.xlu0 %843
  %v846 = vadd.f32 %v836, %v844
  %v847 = vtanh.pop %v846
  %849 = vrot.lane.b32.xlu0 %v847, 64
  %v850 = vpop.permute.xlu0 %849
  %v852 = vmul.f32 %v834, %v850
  %v853 = vpack.c.bf16 %v828, %v828
  %v856 = vunpack.c.l.s4 1966171168
  %v857 = vunpack.c.0.s8 %v856
  %v858 = vlaneseq
  %v859 = vshrl.u32 %v858, 7
  %v860 = vsub.s32 %v857, %v859
  %v861 = vrot.slane %v853, %v860
  %v863 = vunpack.c.l.s4 1966171168
  %v864 = vunpack.c.0.s8 %v863
  %v865 = vlaneseq
  %v866 = vshrl.u32 %v865, 7
  %v867 = vsub.s32 %v864, %v866
  %v868 = vrot.slane %v861, %v867
  %869 = vrot.lane.b32.xlu0 %v868, 32
  %v870 = vpop.permute.xlu0 %869
  %s872 = scalar_lea.vmem %s5, 2
  %873 = vst.msk [vmem:[%s872] sm:$0x1] %vm399, %v870
  %v874 = vpack.c.bf16 %v852, %v852
  %v877 = vunpack.c.l.s4 1966171168
  %v878 = vunpack.c.0.s8 %v877
  %v879 = vlaneseq
  %v880 = vshrl.u32 %v879, 7
  %v881 = vsub.s32 %v878, %v880
  %v882 = vrot.slane %v874, %v881
  %v884 = vunpack.c.l.s4 1966171168
  %v885 = vunpack.c.0.s8 %v884
  %v886 = vlaneseq
  %v887 = vshrl.u32 %v886, 7
  %v888 = vsub.s32 %v885, %v887
  %v889 = vrot.slane %v882, %v888
  %890 = vrot.lane.b32.xlu0 %v889, 32
  %v891 = vpop.permute.xlu0 %890
  %s893 = scalar_lea.vmem %s50, 5
  %894 = vst.msk [vmem:[%s893] sm:$0x1] %vm399, %v891
  %896 = vrot.lane.b32.xlu0 %v828, 32
  %v897 = vpop.permute.xlu0 %896
  %900 = vrot.lane.b32.xlu0 %v852, 64
  %v901 = vpop.permute.xlu0 %900
  %v903 = vsel %vm430, %v897, %v901
  %v904 = vpack.c.bf16 %v903, %v903
  %v906 = vsel %vm132, %v904, 0
  %908 = vmatprep.subr.bf16.mxu0 %v117
  %909 = vmatpush1.bf16.msra.mxu0 %v116
  %910 = vmatprep.subr.bf16.mxu0 %v119
  %911 = vmatpush1.bf16.msra.mxu0 %v118
  %912 = vmatprep.subr.bf16.mxu0 %v121
  %913 = vmatpush1.bf16.msra.mxu0 %v120
  %914 = vmatprep.subr.bf16.mxu0 %v123
  %915 = vmatpush1.bf16.msra.mxu0 %v122
  %916 = vmatprep.subr.bf16.mxu0 0
  %917 = vmatpush1.bf16.msra.mxu0 0
  %918 = vmatprep.subr.bf16.mxu0 0
  %919 = vmatpush1.bf16.msra.mxu0 0
  %920 = vmatprep.subr.bf16.mxu0 0
  %921 = vmatpush1.bf16.msra.mxu0 0
  %922 = vmatprep.subr.bf16.mxu0 0
  %923 = vmatpush1.bf16.msra.mxu0 0
  %924 = vmatprep.subr.bf16.mxu0 0
  %925 = vmatpush1.bf16.msra.mxu0 0
  %926 = vmatprep.subr.bf16.mxu0 0
  %927 = vmatpush1.bf16.msra.mxu0 0
  %928 = vmatprep.subr.bf16.mxu0 0
  %929 = vmatpush1.bf16.msra.mxu0 0
  %930 = vmatprep.subr.bf16.mxu0 0
  %931 = vmatpush1.bf16.msra.mxu0 0
  %932 = vmatprep.subr.bf16.mxu0 0
  %933 = vmatpush1.bf16.msra.mxu0 0
  %934 = vmatprep.subr.bf16.mxu0 0
  %935 = vmatpush1.bf16.msra.mxu0 0
  %936 = vmatprep.subr.bf16.mxu0 0
  %937 = vmatpush1.bf16.msra.mxu0 0
  %938 = vmatprep.subr.bf16.mxu0 0
  %939 = vmatpush1.bf16.msra.mxu0 0
  %940 = vmatprep.mubr.bf16.mxu0 0
  %941 = vmatmul.mubr.bf16.gmra.mrb[0].mxu0 %v906
  %v942 = vpop.f32.mrb[0].mxu0
  %v943 = vadd.f32 0.0, %v942
  %v944 = vpop.f32.mrb[0].mxu0
  %v945 = vadd.f32 0.0, %v944
  %v946 = vpop.f32.mrb[0].mxu0
  %v947 = vpop.f32.mrb[0].mxu0
  %948 = vdwg.mxu0
  %s949 = scalar_lea.vmem %s0, 3
  %v950 = vld [vmem:[%s949] sm:$0x1]
  %v952 = vsel %vm132, %v950, 0
  %954 = vmatprep.subr.bf16.mxu0 0
  %955 = vmatpush1.bf16.msra.mxu0 %v200
  %956 = vmatprep.subr.bf16.mxu0 0
  %957 = vmatpush1.bf16.msra.mxu0 %v201
  %958 = vmatprep.subr.bf16.mxu0 0
  %959 = vmatpush1.bf16.msra.mxu0 %v202
  %960 = vmatprep.subr.bf16.mxu0 0
  %961 = vmatpush1.bf16.msra.mxu0 %v203
  %962 = vmatprep.subr.bf16.mxu0 0
  %963 = vmatpush1.bf16.msra.mxu0 0
  %964 = vmatprep.subr.bf16.mxu0 0
  %965 = vmatpush1.bf16.msra.mxu0 0
  %966 = vmatprep.subr.bf16.mxu0 0
  %967 = vmatpush1.bf16.msra.mxu0 0
  %968 = vmatprep.subr.bf16.mxu0 0
  %969 = vmatpush1.bf16.msra.mxu0 0
  %970 = vmatprep.subr.bf16.mxu0 0
  %971 = vmatpush1.bf16.msra.mxu0 0
  %972 = vmatprep.subr.bf16.mxu0 0
  %973 = vmatpush1.bf16.msra.mxu0 0
  %974 = vmatprep.subr.bf16.mxu0 0
  %975 = vmatpush1.bf16.msra.mxu0 0
  %976 = vmatprep.subr.bf16.mxu0 0
  %977 = vmatpush1.bf16.msra.mxu0 0
  %978 = vmatprep.subr.bf16.mxu0 0
  %979 = vmatpush1.bf16.msra.mxu0 0
  %980 = vmatprep.subr.bf16.mxu0 0
  %981 = vmatpush1.bf16.msra.mxu0 0
  %982 = vmatprep.subr.bf16.mxu0 0
  %983 = vmatpush1.bf16.msra.mxu0 0
  %984 = vmatprep.subr.bf16.mxu0 0
  %985 = vmatpush1.bf16.msra.mxu0 0
  %986 = vmatprep.mubr.bf16.mxu0 0
  %987 = vmatmul.mubr.bf16.gmra.mrb[0].mxu0 %v952
  %v988 = vpop.f32.mrb[0].mxu0
  %v989 = vadd.f32 %v182, %v988
  %v990 = vpop.f32.mrb[0].mxu0
  %v991 = vpop.f32.mrb[0].mxu0
  %v992 = vpop.f32.mrb[0].mxu0
  %993 = vdwg.mxu0
  %s994 = scalar_lea.vmem %s43, 4
  %v995 = vld [vmem:[%s994] sm:$0x1]
  %v997 = vsel %vm132, %v995, 0
  %999 = vmatprep.subr.bf16.mxu0 0
  %1000 = vmatpush1.bf16.msra.mxu0 %v275
  %1001 = vmatprep.subr.bf16.mxu0 0
  %1002 = vmatpush1.bf16.msra.mxu0 %v276
  %1003 = vmatprep.subr.bf16.mxu0 0
  %1004 = vmatpush1.bf16.msra.mxu0 %v277
  %1005 = vmatprep.subr.bf16.mxu0 0
  %1006 = vmatpush1.bf16.msra.mxu0 %v278
  %1007 = vmatprep.subr.bf16.mxu0 0
  %1008 = vmatpush1.bf16.msra.mxu0 0
  %1009 = vmatprep.subr.bf16.mxu0 0
  %1010 = vmatpush1.bf16.msra.mxu0 0
  %1011 = vmatprep.subr.bf16.mxu0 0
  %1012 = vmatpush1.bf16.msra.mxu0 0
  %1013 = vmatprep.subr.bf16.mxu0 0
  %1014 = vmatpush1.bf16.msra.mxu0 0
  %1015 = vmatprep.subr.bf16.mxu0 0
  %1016 = vmatpush1.bf16.msra.mxu0 0
  %1017 = vmatprep.subr.bf16.mxu0 0
  %1018 = vmatpush1.bf16.msra.mxu0 0
  %1019 = vmatprep.subr.bf16.mxu0 0
  %1020 = vmatpush1.bf16.msra.mxu0 0
  %1021 = vmatprep.subr.bf16.mxu0 0
  %1022 = vmatpush1.bf16.msra.mxu0 0
  %1023 = vmatprep.subr.bf16.mxu0 0
  %1024 = vmatpush1.bf16.msra.mxu0 0
  %1025 = vmatprep.subr.bf16.mxu0 0
  %1026 = vmatpush1.bf16.msra.mxu0 0
  %1027 = vmatprep.subr.bf16.mxu0 0
  %1028 = vmatpush1.bf16.msra.mxu0 0
  %1029 = vmatprep.subr.bf16.mxu0 0
  %1030 = vmatpush1.bf16.msra.mxu0 0
  %1031 = vmatprep.mubr.bf16.mxu0 0
  %1032 = vmatmul.mubr.bf16.gmra.mrb[0].mxu0 %v997
  %v1033 = vpop.f32.mrb[0].mxu0
  %v1034 = vadd.f32 %v257, %v1033
  %v1035 = vpop.f32.mrb[0].mxu0
  %v1036 = vpop.f32.mrb[0].mxu0
  %v1037 = vpop.f32.mrb[0].mxu0
  %1038 = vdwg.mxu0
  %v1039 = vadd.f32 %v943, %v989
  %v1040 = vadd.f32 %v945, %v1034
  %v1041 = vxor.u32 %v1039, 2147483648
  %v1042 = vmul.f32 %v1041, 1.442695
  %v1043 = vpow.pop %v1042
  %v1044 = vadd.f32 %v1043, 1.0
  %v1045 = vrcp.pop %v1044
  %v1046 = vmul.f32 1.0, %v1045
  %v1047 = vtanh.pop %v1039
  %v1048 = vmul.f32 %v1046, %v822
  %1050 = vrot.lane.b32.xlu0 %v1047, 64
  %v1051 = vpop.permute.xlu0 %1050
  %v1053 = vmul.f32 %v1046, %v1051
  %1055 = vrot.lane.b32.xlu0 %v1053, 32
  %v1056 = vpop.permute.xlu0 %1055
  %v1058 = vadd.f32 %v1048, %v1056
  %v1059 = vtanh.pop %v1058
  %1061 = vrot.lane.b32.xlu0 %v1059, 64
  %v1062 = vpop.permute.xlu0 %1061
  %v1064 = vmul.f32 %v1046, %v1062
  %v1065 = vxor.u32 %v1040, 2147483648
  %v1066 = vmul.f32 %v1065, 1.442695
  %v1067 = vpow.pop %v1066
  %v1068 = vadd.f32 %v1067, 1.0
  %v1069 = vrcp.pop %v1068
  %v1070 = vmul.f32 1.0, %v1069
  %v1071 = vtanh.pop %v1040
  %v1072 = vmul.f32 %v1070, %v846
  %1074 = vrot.lane.b32.xlu0 %v1071, 64
  %v1075 = vpop.permute.xlu0 %1074
  %v1077 = vmul.f32 %v1070, %v1075
  %1079 = vrot.lane.b32.xlu0 %v1077, 32
  %v1080 = vpop.permute.xlu0 %1079
  %v1082 = vadd.f32 %v1072, %v1080
  %v1083 = vtanh.pop %v1082
  %1085 = vrot.lane.b32.xlu0 %v1083, 64
  %v1086 = vpop.permute.xlu0 %1085
  %v1088 = vmul.f32 %v1070, %v1086
  %v1089 = vpack.c.bf16 %v1064, %v1064
  %v1092 = vunpack.c.l.s4 1966171168
  %v1093 = vunpack.c.0.s8 %v1092
  %v1094 = vlaneseq
  %v1095 = vshrl.u32 %v1094, 7
  %v1096 = vsub.s32 %v1093, %v1095
  %v1097 = vrot.slane %v1089, %v1096
  %v1099 = vunpack.c.l.s4 1966171168
  %v1100 = vunpack.c.0.s8 %v1099
  %v1101 = vlaneseq
  %v1102 = vshrl.u32 %v1101, 7
  %v1103 = vsub.s32 %v1100, %v1102
  %v1104 = vrot.slane %v1097, %v1103
  %1105 = vrot.lane.b32.xlu0 %v1104, 32
  %v1106 = vpop.permute.xlu0 %1105
  %s1108 = scalar_lea.vmem %s5, 3
  %1109 = vst.msk [vmem:[%s1108] sm:$0x1] %vm399, %v1106
  %v1110 = vpack.c.bf16 %v1088, %v1088
  %v1113 = vunpack.c.l.s4 1966171168
  %v1114 = vunpack.c.0.s8 %v1113
  %v1115 = vlaneseq
  %v1116 = vshrl.u32 %v1115, 7
  %v1117 = vsub.s32 %v1114, %v1116
  %v1118 = vrot.slane %v1110, %v1117
  %v1120 = vunpack.c.l.s4 1966171168
  %v1121 = vunpack.c.0.s8 %v1120
  %v1122 = vlaneseq
  %v1123 = vshrl.u32 %v1122, 7
  %v1124 = vsub.s32 %v1121, %v1123
  %v1125 = vrot.slane %v1118, %v1124
  %1126 = vrot.lane.b32.xlu0 %v1125, 32
  %v1127 = vpop.permute.xlu0 %1126
  %s1129 = scalar_lea.vmem %s50, 4
  %1130 = vst.msk [vmem:[%s1129] sm:$0x1] %vm399, %v1127
  %1132 = vrot.lane.b32.xlu0 %v1064, 32
  %v1133 = vpop.permute.xlu0 %1132
  %1136 = vrot.lane.b32.xlu0 %v1088, 64
  %v1137 = vpop.permute.xlu0 %1136
  %v1139 = vsel %vm430, %v1133, %v1137
  %v1140 = vpack.c.bf16 %v1139, %v1139
  %v1142 = vsel %vm132, %v1140, 0
  %1144 = vmatprep.subr.bf16.mxu0 %v117
  %1145 = vmatpush1.bf16.msra.mxu0 %v116
  %1146 = vmatprep.subr.bf16.mxu0 %v119
  %1147 = vmatpush1.bf16.msra.mxu0 %v118
  %1148 = vmatprep.subr.bf16.mxu0 %v121
  %1149 = vmatpush1.bf16.msra.mxu0 %v120
  %1150 = vmatprep.subr.bf16.mxu0 %v123
  %1151 = vmatpush1.bf16.msra.mxu0 %v122
  %1152 = vmatprep.subr.bf16.mxu0 0
  %1153 = vmatpush1.bf16.msra.mxu0 0
  %1154 = vmatprep.subr.bf16.mxu0 0
  %1155 = vmatpush1.bf16.msra.mxu0 0
  %1156 = vmatprep.subr.bf16.mxu0 0
  %1157 = vmatpush1.bf16.msra.mxu0 0
  %1158 = vmatprep.subr.bf16.mxu0 0
  %1159 = vmatpush1.bf16.msra.mxu0 0
  %1160 = vmatprep.subr.bf16.mxu0 0
  %1161 = vmatpush1.bf16.msra.mxu0 0
  %1162 = vmatprep.subr.bf16.mxu0 0
  %1163 = vmatpush1.bf16.msra.mxu0 0
  %1164 = vmatprep.subr.bf16.mxu0 0
  %1165 = vmatpush1.bf16.msra.mxu0 0
  %1166 = vmatprep.subr.bf16.mxu0 0
  %1167 = vmatpush1.bf16.msra.mxu0 0
  %1168 = vmatprep.subr.bf16.mxu0 0
  %1169 = vmatpush1.bf16.msra.mxu0 0
  %1170 = vmatprep.subr.bf16.mxu0 0
  %1171 = vmatpush1.bf16.msra.mxu0 0
  %1172 = vmatprep.subr.bf16.mxu0 0
  %1173 = vmatpush1.bf16.msra.mxu0 0
  %1174 = vmatprep.subr.bf16.mxu0 0
  %1175 = vmatpush1.bf16.msra.mxu0 0
  %1176 = vmatprep.mubr.bf16.mxu0 0
  %1177 = vmatmul.mubr.bf16.gmra.mrb[0].mxu0 %v1142
  %v1178 = vpop.f32.mrb[0].mxu0
  %v1179 = vadd.f32 0.0, %v1178
  %v1180 = vpop.f32.mrb[0].mxu0
  %v1181 = vadd.f32 0.0, %v1180
  %v1182 = vpop.f32.mrb[0].mxu0
  %v1183 = vpop.f32.mrb[0].mxu0
  %1184 = vdwg.mxu0
  %s1185 = scalar_lea.vmem %s0, 4
  %v1186 = vld [vmem:[%s1185] sm:$0x1]
  %v1188 = vsel %vm132, %v1186, 0
  %1190 = vmatprep.subr.bf16.mxu0 0
  %1191 = vmatpush1.bf16.msra.mxu0 %v200
  %1192 = vmatprep.subr.bf16.mxu0 0
  %1193 = vmatpush1.bf16.msra.mxu0 %v201
  %1194 = vmatprep.subr.bf16.mxu0 0
  %1195 = vmatpush1.bf16.msra.mxu0 %v202
  %1196 = vmatprep.subr.bf16.mxu0 0
  %1197 = vmatpush1.bf16.msra.mxu0 %v203
  %1198 = vmatprep.subr.bf16.mxu0 0
  %1199 = vmatpush1.bf16.msra.mxu0 0
  %1200 = vmatprep.subr.bf16.mxu0 0
  %1201 = vmatpush1.bf16.msra.mxu0 0
  %1202 = vmatprep.subr.bf16.mxu0 0
  %1203 = vmatpush1.bf16.msra.mxu0 0
  %1204 = vmatprep.subr.bf16.mxu0 0
  %1205 = vmatpush1.bf16.msra.mxu0 0
  %1206 = vmatprep.subr.bf16.mxu0 0
  %1207 = vmatpush1.bf16.msra.mxu0 0
  %1208 = vmatprep.subr.bf16.mxu0 0
  %1209 = vmatpush1.bf16.msra.mxu0 0
  %1210 = vmatprep.subr.bf16.mxu0 0
  %1211 = vmatpush1.bf16.msra.mxu0 0
  %1212 = vmatprep.subr.bf16.mxu0 0
  %1213 = vmatpush1.bf16.msra.mxu0 0
  %1214 = vmatprep.subr.bf16.mxu0 0
  %1215 = vmatpush1.bf16.msra.mxu0 0
  %1216 = vmatprep.subr.bf16.mxu0 0
  %1217 = vmatpush1.bf16.msra.mxu0 0
  %1218 = vmatprep.subr.bf16.mxu0 0
  %1219 = vmatpush1.bf16.msra.mxu0 0
  %1220 = vmatprep.subr.bf16.mxu0 0
  %1221 = vmatpush1.bf16.msra.mxu0 0
  %1222 = vmatprep.mubr.bf16.mxu0 0
  %1223 = vmatmul.mubr.bf16.gmra.mrb[0].mxu0 %v1188
  %v1224 = vpop.f32.mrb[0].mxu0
  %v1225 = vadd.f32 %v182, %v1224
  %v1226 = vpop.f32.mrb[0].mxu0
  %v1227 = vpop.f32.mrb[0].mxu0
  %v1228 = vpop.f32.mrb[0].mxu0
  %1229 = vdwg.mxu0
  %s1230 = scalar_lea.vmem %s43, 3
  %v1231 = vld [vmem:[%s1230] sm:$0x1]
  %v1233 = vsel %vm132, %v1231, 0
  %1235 = vmatprep.subr.bf16.mxu0 0
  %1236 = vmatpush1.bf16.msra.mxu0 %v275
  %1237 = vmatprep.subr.bf16.mxu0 0
  %1238 = vmatpush1.bf16.msra.mxu0 %v276
  %1239 = vmatprep.subr.bf16.mxu0 0
  %1240 = vmatpush1.bf16.msra.mxu0 %v277
  %1241 = vmatprep.subr.bf16.mxu0 0
  %1242 = vmatpush1.bf16.msra.mxu0 %v278
  %1243 = vmatprep.subr.bf16.mxu0 0
  %1244 = vmatpush1.bf16.msra.mxu0 0
  %1245 = vmatprep.subr.bf16.mxu0 0
  %1246 = vmatpush1.bf16.msra.mxu0 0
  %1247 = vmatprep.subr.bf16.mxu0 0
  %1248 = vmatpush1.bf16.msra.mxu0 0
  %1249 = vmatprep.subr.bf16.mxu0 0
  %1250 = vmatpush1.bf16.msra.mxu0 0
  %1251 = vmatprep.subr.bf16.mxu0 0
  %1252 = vmatpush1.bf16.msra.mxu0 0
  %1253 = vmatprep.subr.bf16.mxu0 0
  %1254 = vmatpush1.bf16.msra.mxu0 0
  %1255 = vmatprep.subr.bf16.mxu0 0
  %1256 = vmatpush1.bf16.msra.mxu0 0
  %1257 = vmatprep.subr.bf16.mxu0 0
  %1258 = vmatpush1.bf16.msra.mxu0 0
  %1259 = vmatprep.subr.bf16.mxu0 0
  %1260 = vmatpush1.bf16.msra.mxu0 0
  %1261 = vmatprep.subr.bf16.mxu0 0
  %1262 = vmatpush1.bf16.msra.mxu0 0
  %1263 = vmatprep.subr.bf16.mxu0 0
  %1264 = vmatpush1.bf16.msra.mxu0 0
  %1265 = vmatprep.subr.bf16.mxu0 0
  %1266 = vmatpush1.bf16.msra.mxu0 0
  %1267 = vmatprep.mubr.bf16.mxu0 0
  %1268 = vmatmul.mubr.bf16.gmra.mrb[0].mxu0 %v1233
  %v1269 = vpop.f32.mrb[0].mxu0
  %v1270 = vadd.f32 %v257, %v1269
  %v1271 = vpop.f32.mrb[0].mxu0
  %v1272 = vpop.f32.mrb[0].mxu0
  %v1273 = vpop.f32.mrb[0].mxu0
  %1274 = vdwg.mxu0
  %v1275 = vadd.f32 %v1179, %v1225
  %v1276 = vadd.f32 %v1181, %v1270
  %v1277 = vxor.u32 %v1275, 2147483648
  %v1278 = vmul.f32 %v1277, 1.442695
  %v1279 = vpow.pop %v1278
  %v1280 = vadd.f32 %v1279, 1.0
  %v1281 = vrcp.pop %v1280
  %v1282 = vmul.f32 1.0, %v1281
  %v1283 = vtanh.pop %v1275
  %v1284 = vmul.f32 %v1282, %v1058
  %1286 = vrot.lane.b32.xlu0 %v1283, 64
  %v1287 = vpop.permute.xlu0 %1286
  %v1289 = vmul.f32 %v1282, %v1287
  %1291 = vrot.lane.b32.xlu0 %v1289, 32
  %v1292 = vpop.permute.xlu0 %1291
  %v1294 = vadd.f32 %v1284, %v1292
  %v1295 = vtanh.pop %v1294
  %1297 = vrot.lane.b32.xlu0 %v1295, 64
  %v1298 = vpop.permute.xlu0 %1297
  %v1300 = vmul.f32 %v1282, %v1298
  %v1301 = vxor.u32 %v1276, 2147483648
  %v1302 = vmul.f32 %v1301, 1.442695
  %v1303 = vpow.pop %v1302
  %v1304 = vadd.f32 %v1303, 1.0
  %v1305 = vrcp.pop %v1304
  %v1306 = vmul.f32 1.0, %v1305
  %v1307 = vtanh.pop %v1276
  %v1308 = vmul.f32 %v1306, %v1082
  %1310 = vrot.lane.b32.xlu0 %v1307, 64
  %v1311 = vpop.permute.xlu0 %1310
  %v1313 = vmul.f32 %v1306, %v1311
  %1315 = vrot.lane.b32.xlu0 %v1313, 32
  %v1316 = vpop.permute.xlu0 %1315
  %v1318 = vadd.f32 %v1308, %v1316
  %v1319 = vtanh.pop %v1318
  %1321 = vrot.lane.b32.xlu0 %v1319, 64
  %v1322 = vpop.permute.xlu0 %1321
  %v1324 = vmul.f32 %v1306, %v1322
  %v1325 = vpack.c.bf16 %v1300, %v1300
  %v1328 = vunpack.c.l.s4 1966171168
  %v1329 = vunpack.c.0.s8 %v1328
  %v1330 = vlaneseq
  %v1331 = vshrl.u32 %v1330, 7
  %v1332 = vsub.s32 %v1329, %v1331
  %v1333 = vrot.slane %v1325, %v1332
  %v1335 = vunpack.c.l.s4 1966171168
  %v1336 = vunpack.c.0.s8 %v1335
  %v1337 = vlaneseq
  %v1338 = vshrl.u32 %v1337, 7
  %v1339 = vsub.s32 %v1336, %v1338
  %v1340 = vrot.slane %v1333, %v1339
  %1341 = vrot.lane.b32.xlu0 %v1340, 32
  %v1342 = vpop.permute.xlu0 %1341
  %s1344 = scalar_lea.vmem %s5, 4
  %1345 = vst.msk [vmem:[%s1344] sm:$0x1] %vm399, %v1342
  %v1346 = vpack.c.bf16 %v1324, %v1324
  %v1349 = vunpack.c.l.s4 1966171168
  %v1350 = vunpack.c.0.s8 %v1349
  %v1351 = vlaneseq
  %v1352 = vshrl.u32 %v1351, 7
  %v1353 = vsub.s32 %v1350, %v1352
  %v1354 = vrot.slane %v1346, %v1353
  %v1356 = vunpack.c.l.s4 1966171168
  %v1357 = vunpack.c.0.s8 %v1356
  %v1358 = vlaneseq
  %v1359 = vshrl.u32 %v1358, 7
  %v1360 = vsub.s32 %v1357, %v1359
  %v1361 = vrot.slane %v1354, %v1360
  %1362 = vrot.lane.b32.xlu0 %v1361, 32
  %v1363 = vpop.permute.xlu0 %1362
  %s1365 = scalar_lea.vmem %s50, 3
  %1366 = vst.msk [vmem:[%s1365] sm:$0x1] %vm399, %v1363
  %1368 = vrot.lane.b32.xlu0 %v1300, 32
  %v1369 = vpop.permute.xlu0 %1368
  %1372 = vrot.lane.b32.xlu0 %v1324, 64
  %v1373 = vpop.permute.xlu0 %1372
  %v1375 = vsel %vm430, %v1369, %v1373
  %v1376 = vpack.c.bf16 %v1375, %v1375
  %v1378 = vsel %vm132, %v1376, 0
  %1380 = vmatprep.subr.bf16.mxu0 %v117
  %1381 = vmatpush1.bf16.msra.mxu0 %v116
  %1382 = vmatprep.subr.bf16.mxu0 %v119
  %1383 = vmatpush1.bf16.msra.mxu0 %v118
  %1384 = vmatprep.subr.bf16.mxu0 %v121
  %1385 = vmatpush1.bf16.msra.mxu0 %v120
  %1386 = vmatprep.subr.bf16.mxu0 %v123
  %1387 = vmatpush1.bf16.msra.mxu0 %v122
  %1388 = vmatprep.subr.bf16.mxu0 0
  %1389 = vmatpush1.bf16.msra.mxu0 0
  %1390 = vmatprep.subr.bf16.mxu0 0
  %1391 = vmatpush1.bf16.msra.mxu0 0
  %1392 = vmatprep.subr.bf16.mxu0 0
  %1393 = vmatpush1.bf16.msra.mxu0 0
  %1394 = vmatprep.subr.bf16.mxu0 0
  %1395 = vmatpush1.bf16.msra.mxu0 0
  %1396 = vmatprep.subr.bf16.mxu0 0
  %1397 = vmatpush1.bf16.msra.mxu0 0
  %1398 = vmatprep.subr.bf16.mxu0 0
  %1399 = vmatpush1.bf16.msra.mxu0 0
  %1400 = vmatprep.subr.bf16.mxu0 0
  %1401 = vmatpush1.bf16.msra.mxu0 0
  %1402 = vmatprep.subr.bf16.mxu0 0
  %1403 = vmatpush1.bf16.msra.mxu0 0
  %1404 = vmatprep.subr.bf16.mxu0 0
  %1405 = vmatpush1.bf16.msra.mxu0 0
  %1406 = vmatprep.subr.bf16.mxu0 0
  %1407 = vmatpush1.bf16.msra.mxu0 0
  %1408 = vmatprep.subr.bf16.mxu0 0
  %1409 = vmatpush1.bf16.msra.mxu0 0
  %1410 = vmatprep.subr.bf16.mxu0 0
  %1411 = vmatpush1.bf16.msra.mxu0 0
  %1412 = vmatprep.mubr.bf16.mxu0 0
  %1413 = vmatmul.mubr.bf16.gmra.mrb[0].mxu0 %v1378
  %v1414 = vpop.f32.mrb[0].mxu0
  %v1415 = vadd.f32 0.0, %v1414
  %v1416 = vpop.f32.mrb[0].mxu0
  %v1417 = vadd.f32 0.0, %v1416
  %v1418 = vpop.f32.mrb[0].mxu0
  %v1419 = vpop.f32.mrb[0].mxu0
  %1420 = vdwg.mxu0
  %s1421 = scalar_lea.vmem %s0, 5
  %v1422 = vld [vmem:[%s1421] sm:$0x1]
  %v1424 = vsel %vm132, %v1422, 0
  %1426 = vmatprep.subr.bf16.mxu0 0
  %1427 = vmatpush1.bf16.msra.mxu0 %v200
  %1428 = vmatprep.subr.bf16.mxu0 0
  %1429 = vmatpush1.bf16.msra.mxu0 %v201
  %1430 = vmatprep.subr.bf16.mxu0 0
  %1431 = vmatpush1.bf16.msra.mxu0 %v202
  %1432 = vmatprep.subr.bf16.mxu0 0
  %1433 = vmatpush1.bf16.msra.mxu0 %v203
  %1434 = vmatprep.subr.bf16.mxu0 0
  %1435 = vmatpush1.bf16.msra.mxu0 0
  %1436 = vmatprep.subr.bf16.mxu0 0
  %1437 = vmatpush1.bf16.msra.mxu0 0
  %1438 = vmatprep.subr.bf16.mxu0 0
  %1439 = vmatpush1.bf16.msra.mxu0 0
  %1440 = vmatprep.subr.bf16.mxu0 0
  %1441 = vmatpush1.bf16.msra.mxu0 0
  %1442 = vmatprep.subr.bf16.mxu0 0
  %1443 = vmatpush1.bf16.msra.mxu0 0
  %1444 = vmatprep.subr.bf16.mxu0 0
  %1445 = vmatpush1.bf16.msra.mxu0 0
  %1446 = vmatprep.subr.bf16.mxu0 0
  %1447 = vmatpush1.bf16.msra.mxu0 0
  %1448 = vmatprep.subr.bf16.mxu0 0
  %1449 = vmatpush1.bf16.msra.mxu0 0
  %1450 = vmatprep.subr.bf16.mxu0 0
  %1451 = vmatpush1.bf16.msra.mxu0 0
  %1452 = vmatprep.subr.bf16.mxu0 0
  %1453 = vmatpush1.bf16.msra.mxu0 0
  %1454 = vmatprep.subr.bf16.mxu0 0
  %1455 = vmatpush1.bf16.msra.mxu0 0
  %1456 = vmatprep.subr.bf16.mxu0 0
  %1457 = vmatpush1.bf16.msra.mxu0 0
  %1458 = vmatprep.mubr.bf16.mxu0 0
  %1459 = vmatmul.mubr.bf16.gmra.mrb[0].mxu0 %v1424
  %v1460 = vpop.f32.mrb[0].mxu0
  %v1461 = vadd.f32 %v182, %v1460
  %v1462 = vpop.f32.mrb[0].mxu0
  %v1463 = vpop.f32.mrb[0].mxu0
  %v1464 = vpop.f32.mrb[0].mxu0
  %1465 = vdwg.mxu0
  %s1466 = scalar_lea.vmem %s43, 2
  %v1467 = vld [vmem:[%s1466] sm:$0x1]
  %v1469 = vsel %vm132, %v1467, 0
  %1471 = vmatprep.subr.bf16.mxu0 0
  %1472 = vmatpush1.bf16.msra.mxu0 %v275
  %1473 = vmatprep.subr.bf16.mxu0 0
  %1474 = vmatpush1.bf16.msra.mxu0 %v276
  %1475 = vmatprep.subr.bf16.mxu0 0
  %1476 = vmatpush1.bf16.msra.mxu0 %v277
  %1477 = vmatprep.subr.bf16.mxu0 0
  %1478 = vmatpush1.bf16.msra.mxu0 %v278
  %1479 = vmatprep.subr.bf16.mxu0 0
  %1480 = vmatpush1.bf16.msra.mxu0 0
  %1481 = vmatprep.subr.bf16.mxu0 0
  %1482 = vmatpush1.bf16.msra.mxu0 0
  %1483 = vmatprep.subr.bf16.mxu0 0
  %1484 = vmatpush1.bf16.msra.mxu0 0
  %1485 = vmatprep.subr.bf16.mxu0 0
  %1486 = vmatpush1.bf16.msra.mxu0 0
  %1487 = vmatprep.subr.bf16.mxu0 0
  %1488 = vmatpush1.bf16.msra.mxu0 0
  %1489 = vmatprep.subr.bf16.mxu0 0
  %1490 = vmatpush1.bf16.msra.mxu0 0
  %1491 = vmatprep.subr.bf16.mxu0 0
  %1492 = vmatpush1.bf16.msra.mxu0 0
  %1493 = vmatprep.subr.bf16.mxu0 0
  %1494 = vmatpush1.bf16.msra.mxu0 0
  %1495 = vmatprep.subr.bf16.mxu0 0
  %1496 = vmatpush1.bf16.msra.mxu0 0
  %1497 = vmatprep.subr.bf16.mxu0 0
  %1498 = vmatpush1.bf16.msra.mxu0 0
  %1499 = vmatprep.subr.bf16.mxu0 0
  %1500 = vmatpush1.bf16.msra.mxu0 0
  %1501 = vmatprep.subr.bf16.mxu0 0
  %1502 = vmatpush1.bf16.msra.mxu0 0
  %1503 = vmatprep.mubr.bf16.mxu0 0
  %1504 = vmatmul.mubr.bf16.gmra.mrb[0].mxu0 %v1469
  %v1505 = vpop.f32.mrb[0].mxu0
  %v1506 = vadd.f32 %v257, %v1505
  %v1507 = vpop.f32.mrb[0].mxu0
  %v1508 = vpop.f32.mrb[0].mxu0
  %v1509 = vpop.f32.mrb[0].mxu0
  %1510 = vdwg.mxu0
  %v1511 = vadd.f32 %v1415, %v1461
  %v1512 = vadd.f32 %v1417, %v1506
  %v1513 = vxor.u32 %v1511, 2147483648
  %v1514 = vmul.f32 %v1513, 1.442695
  %v1515 = vpow.pop %v1514
  %v1516 = vadd.f32 %v1515, 1.0
  %v1517 = vrcp.pop %v1516
  %v1518 = vmul.f32 1.0, %v1517
  %v1519 = vtanh.pop %v1511
  %v1520 = vmul.f32 %v1518, %v1294
  %1522 = vrot.lane.b32.xlu0 %v1519, 64
  %v1523 = vpop.permute.xlu0 %1522
  %v1525 = vmul.f32 %v1518, %v1523
  %1527 = vrot.lane.b32.xlu0 %v1525, 32
  %v1528 = vpop.permute.xlu0 %1527
  %v1530 = vadd.f32 %v1520, %v1528
  %v1531 = vtanh.pop %v1530
  %1533 = vrot.lane.b32.xlu0 %v1531, 64
  %v1534 = vpop.permute.xlu0 %1533
  %v1536 = vmul.f32 %v1518, %v1534
  %v1537 = vxor.u32 %v1512, 2147483648
  %v1538 = vmul.f32 %v1537, 1.442695
  %v1539 = vpow.pop %v1538
  %v1540 = vadd.f32 %v1539, 1.0
  %v1541 = vrcp.pop %v1540
  %v1542 = vmul.f32 1.0, %v1541
  %v1543 = vtanh.pop %v1512
  %v1544 = vmul.f32 %v1542, %v1318
  %1546 = vrot.lane.b32.xlu0 %v1543, 64
  %v1547 = vpop.permute.xlu0 %1546
  %v1549 = vmul.f32 %v1542, %v1547
  %1551 = vrot.lane.b32.xlu0 %v1549, 32
  %v1552 = vpop.permute.xlu0 %1551
  %v1554 = vadd.f32 %v1544, %v1552
  %v1555 = vtanh.pop %v1554
  %1557 = vrot.lane.b32.xlu0 %v1555, 64
  %v1558 = vpop.permute.xlu0 %1557
  %v1560 = vmul.f32 %v1542, %v1558
  %v1561 = vpack.c.bf16 %v1536, %v1536
  %v1564 = vunpack.c.l.s4 1966171168
  %v1565 = vunpack.c.0.s8 %v1564
  %v1566 = vlaneseq
  %v1567 = vshrl.u32 %v1566, 7
  %v1568 = vsub.s32 %v1565, %v1567
  %v1569 = vrot.slane %v1561, %v1568
  %v1571 = vunpack.c.l.s4 1966171168
  %v1572 = vunpack.c.0.s8 %v1571
  %v1573 = vlaneseq
  %v1574 = vshrl.u32 %v1573, 7
  %v1575 = vsub.s32 %v1572, %v1574
  %v1576 = vrot.slane %v1569, %v1575
  %1577 = vrot.lane.b32.xlu0 %v1576, 32
  %v1578 = vpop.permute.xlu0 %1577
  %s1580 = scalar_lea.vmem %s5, 5
  %1581 = vst.msk [vmem:[%s1580] sm:$0x1] %vm399, %v1578
  %v1582 = vpack.c.bf16 %v1560, %v1560
  %v1585 = vunpack.c.l.s4 1966171168
  %v1586 = vunpack.c.0.s8 %v1585
  %v1587 = vlaneseq
  %v1588 = vshrl.u32 %v1587, 7
  %v1589 = vsub.s32 %v1586, %v1588
  %v1590 = vrot.slane %v1582, %v1589
  %v1592 = vunpack.c.l.s4 1966171168
  %v1593 = vunpack.c.0.s8 %v1592
  %v1594 = vlaneseq
  %v1595 = vshrl.u32 %v1594, 7
  %v1596 = vsub.s32 %v1593, %v1595
  %v1597 = vrot.slane %v1590, %v1596
  %1598 = vrot.lane.b32.xlu0 %v1597, 32
  %v1599 = vpop.permute.xlu0 %1598
  %s1601 = scalar_lea.vmem %s50, 2
  %1602 = vst.msk [vmem:[%s1601] sm:$0x1] %vm399, %v1599
  %1604 = vrot.lane.b32.xlu0 %v1536, 32
  %v1605 = vpop.permute.xlu0 %1604
  %1608 = vrot.lane.b32.xlu0 %v1560, 64
  %v1609 = vpop.permute.xlu0 %1608
  %v1611 = vsel %vm430, %v1605, %v1609
  %v1612 = vpack.c.bf16 %v1611, %v1611
  %v1614 = vsel %vm132, %v1612, 0
  %1616 = vmatprep.subr.bf16.mxu0 %v117
  %1617 = vmatpush1.bf16.msra.mxu0 %v116
  %1618 = vmatprep.subr.bf16.mxu0 %v119
  %1619 = vmatpush1.bf16.msra.mxu0 %v118
  %1620 = vmatprep.subr.bf16.mxu0 %v121
  %1621 = vmatpush1.bf16.msra.mxu0 %v120
  %1622 = vmatprep.subr.bf16.mxu0 %v123
  %1623 = vmatpush1.bf16.msra.mxu0 %v122
  %1624 = vmatprep.subr.bf16.mxu0 0
  %1625 = vmatpush1.bf16.msra.mxu0 0
  %1626 = vmatprep.subr.bf16.mxu0 0
  %1627 = vmatpush1.bf16.msra.mxu0 0
  %1628 = vmatprep.subr.bf16.mxu0 0
  %1629 = vmatpush1.bf16.msra.mxu0 0
  %1630 = vmatprep.subr.bf16.mxu0 0
  %1631 = vmatpush1.bf16.msra.mxu0 0
  %1632 = vmatprep.subr.bf16.mxu0 0
  %1633 = vmatpush1.bf16.msra.mxu0 0
  %1634 = vmatprep.subr.bf16.mxu0 0
  %1635 = vmatpush1.bf16.msra.mxu0 0
  %1636 = vmatprep.subr.bf16.mxu0 0
  %1637 = vmatpush1.bf16.msra.mxu0 0
  %1638 = vmatprep.subr.bf16.mxu0 0
  %1639 = vmatpush1.bf16.msra.mxu0 0
  %1640 = vmatprep.subr.bf16.mxu0 0
  %1641 = vmatpush1.bf16.msra.mxu0 0
  %1642 = vmatprep.subr.bf16.mxu0 0
  %1643 = vmatpush1.bf16.msra.mxu0 0
  %1644 = vmatprep.subr.bf16.mxu0 0
  %1645 = vmatpush1.bf16.msra.mxu0 0
  %1646 = vmatprep.subr.bf16.mxu0 0
  %1647 = vmatpush1.bf16.msra.mxu0 0
  %1648 = vmatprep.mubr.bf16.mxu0 0
  %1649 = vmatmul.mubr.bf16.gmra.mrb[0].mxu0 %v1614
  %v1650 = vpop.f32.mrb[0].mxu0
  %v1651 = vadd.f32 0.0, %v1650
  %v1652 = vpop.f32.mrb[0].mxu0
  %v1653 = vadd.f32 0.0, %v1652
  %v1654 = vpop.f32.mrb[0].mxu0
  %v1655 = vpop.f32.mrb[0].mxu0
  %1656 = vdwg.mxu0
  %s1657 = scalar_lea.vmem %s0, 6
  %v1658 = vld [vmem:[%s1657] sm:$0x1]
  %v1660 = vsel %vm132, %v1658, 0
  %1662 = vmatprep.subr.bf16.mxu0 0
  %1663 = vmatpush1.bf16.msra.mxu0 %v200
  %1664 = vmatprep.subr.bf16.mxu0 0
  %1665 = vmatpush1.bf16.msra.mxu0 %v201
  %1666 = vmatprep.subr.bf16.mxu0 0
  %1667 = vmatpush1.bf16.msra.mxu0 %v202
  %1668 = vmatprep.subr.bf16.mxu0 0
  %1669 = vmatpush1.bf16.msra.mxu0 %v203
  %1670 = vmatprep.subr.bf16.mxu0 0
  %1671 = vmatpush1.bf16.msra.mxu0 0
  %1672 = vmatprep.subr.bf16.mxu0 0
  %1673 = vmatpush1.bf16.msra.mxu0 0
  %1674 = vmatprep.subr.bf16.mxu0 0
  %1675 = vmatpush1.bf16.msra.mxu0 0
  %1676 = vmatprep.subr.bf16.mxu0 0
  %1677 = vmatpush1.bf16.msra.mxu0 0
  %1678 = vmatprep.subr.bf16.mxu0 0
  %1679 = vmatpush1.bf16.msra.mxu0 0
  %1680 = vmatprep.subr.bf16.mxu0 0
  %1681 = vmatpush1.bf16.msra.mxu0 0
  %1682 = vmatprep.subr.bf16.mxu0 0
  %1683 = vmatpush1.bf16.msra.mxu0 0
  %1684 = vmatprep.subr.bf16.mxu0 0
  %1685 = vmatpush1.bf16.msra.mxu0 0
  %1686 = vmatprep.subr.bf16.mxu0 0
  %1687 = vmatpush1.bf16.msra.mxu0 0
  %1688 = vmatprep.subr.bf16.mxu0 0
  %1689 = vmatpush1.bf16.msra.mxu0 0
  %1690 = vmatprep.subr.bf16.mxu0 0
  %1691 = vmatpush1.bf16.msra.mxu0 0
  %1692 = vmatprep.subr.bf16.mxu0 0
  %1693 = vmatpush1.bf16.msra.mxu0 0
  %1694 = vmatprep.mubr.bf16.mxu0 0
  %1695 = vmatmul.mubr.bf16.gmra.mrb[0].mxu0 %v1660
  %v1696 = vpop.f32.mrb[0].mxu0
  %v1697 = vadd.f32 %v182, %v1696
  %v1698 = vpop.f32.mrb[0].mxu0
  %v1699 = vpop.f32.mrb[0].mxu0
  %v1700 = vpop.f32.mrb[0].mxu0
  %1701 = vdwg.mxu0
  %s1702 = scalar_lea.vmem %s43, 1
  %v1703 = vld [vmem:[%s1702] sm:$0x1]
  %v1705 = vsel %vm132, %v1703, 0
  %1707 = vmatprep.subr.bf16.mxu0 0
  %1708 = vmatpush1.bf16.msra.mxu0 %v275
  %1709 = vmatprep.subr.bf16.mxu0 0
  %1710 = vmatpush1.bf16.msra.mxu0 %v276
  %1711 = vmatprep.subr.bf16.mxu0 0
  %1712 = vmatpush1.bf16.msra.mxu0 %v277
  %1713 = vmatprep.subr.bf16.mxu0 0
  %1714 = vmatpush1.bf16.msra.mxu0 %v278
  %1715 = vmatprep.subr.bf16.mxu0 0
  %1716 = vmatpush1.bf16.msra.mxu0 0
  %1717 = vmatprep.subr.bf16.mxu0 0
  %1718 = vmatpush1.bf16.msra.mxu0 0
  %1719 = vmatprep.subr.bf16.mxu0 0
  %1720 = vmatpush1.bf16.msra.mxu0 0
  %1721 = vmatprep.subr.bf16.mxu0 0
  %1722 = vmatpush1.bf16.msra.mxu0 0
  %1723 = vmatprep.subr.bf16.mxu0 0
  %1724 = vmatpush1.bf16.msra.mxu0 0
  %1725 = vmatprep.subr.bf16.mxu0 0
  %1726 = vmatpush1.bf16.msra.mxu0 0
  %1727 = vmatprep.subr.bf16.mxu0 0
  %1728 = vmatpush1.bf16.msra.mxu0 0
  %1729 = vmatprep.subr.bf16.mxu0 0
  %1730 = vmatpush1.bf16.msra.mxu0 0
  %1731 = vmatprep.subr.bf16.mxu0 0
  %1732 = vmatpush1.bf16.msra.mxu0 0
  %1733 = vmatprep.subr.bf16.mxu0 0
  %1734 = vmatpush1.bf16.msra.mxu0 0
  %1735 = vmatprep.subr.bf16.mxu0 0
  %1736 = vmatpush1.bf16.msra.mxu0 0
  %1737 = vmatprep.subr.bf16.mxu0 0
  %1738 = vmatpush1.bf16.msra.mxu0 0
  %1739 = vmatprep.mubr.bf16.mxu0 0
  %1740 = vmatmul.mubr.bf16.gmra.mrb[0].mxu0 %v1705
  %v1741 = vpop.f32.mrb[0].mxu0
  %v1742 = vadd.f32 %v257, %v1741
  %v1743 = vpop.f32.mrb[0].mxu0
  %v1744 = vpop.f32.mrb[0].mxu0
  %v1745 = vpop.f32.mrb[0].mxu0
  %1746 = vdwg.mxu0
  %v1747 = vadd.f32 %v1651, %v1697
  %v1748 = vadd.f32 %v1653, %v1742
  %v1749 = vxor.u32 %v1747, 2147483648
  %v1750 = vmul.f32 %v1749, 1.442695
  %v1751 = vpow.pop %v1750
  %v1752 = vadd.f32 %v1751, 1.0
  %v1753 = vrcp.pop %v1752
  %v1754 = vmul.f32 1.0, %v1753
  %v1755 = vtanh.pop %v1747
  %v1756 = vmul.f32 %v1754, %v1530
  %1758 = vrot.lane.b32.xlu0 %v1755, 64
  %v1759 = vpop.permute.xlu0 %1758
  %v1761 = vmul.f32 %v1754, %v1759
  %1763 = vrot.lane.b32.xlu0 %v1761, 32
  %v1764 = vpop.permute.xlu0 %1763
  %v1766 = vadd.f32 %v1756, %v1764
  %v1767 = vtanh.pop %v1766
  %1769 = vrot.lane.b32.xlu0 %v1767, 64
  %v1770 = vpop.permute.xlu0 %1769
  %v1772 = vmul.f32 %v1754, %v1770
  %v1773 = vxor.u32 %v1748, 2147483648
  %v1774 = vmul.f32 %v1773, 1.442695
  %v1775 = vpow.pop %v1774
  %v1776 = vadd.f32 %v1775, 1.0
  %v1777 = vrcp.pop %v1776
  %v1778 = vmul.f32 1.0, %v1777
  %v1779 = vtanh.pop %v1748
  %v1780 = vmul.f32 %v1778, %v1554
  %1782 = vrot.lane.b32.xlu0 %v1779, 64
  %v1783 = vpop.permute.xlu0 %1782
  %v1785 = vmul.f32 %v1778, %v1783
  %1787 = vrot.lane.b32.xlu0 %v1785, 32
  %v1788 = vpop.permute.xlu0 %1787
  %v1790 = vadd.f32 %v1780, %v1788
  %v1791 = vtanh.pop %v1790
  %1793 = vrot.lane.b32.xlu0 %v1791, 64
  %v1794 = vpop.permute.xlu0 %1793
  %v1796 = vmul.f32 %v1778, %v1794
  %v1797 = vpack.c.bf16 %v1772, %v1772
  %v1800 = vunpack.c.l.s4 1966171168
  %v1801 = vunpack.c.0.s8 %v1800
  %v1802 = vlaneseq
  %v1803 = vshrl.u32 %v1802, 7
  %v1804 = vsub.s32 %v1801, %v1803
  %v1805 = vrot.slane %v1797, %v1804
  %v1807 = vunpack.c.l.s4 1966171168
  %v1808 = vunpack.c.0.s8 %v1807
  %v1809 = vlaneseq
  %v1810 = vshrl.u32 %v1809, 7
  %v1811 = vsub.s32 %v1808, %v1810
  %v1812 = vrot.slane %v1805, %v1811
  %1813 = vrot.lane.b32.xlu0 %v1812, 32
  %v1814 = vpop.permute.xlu0 %1813
  %s1816 = scalar_lea.vmem %s5, 6
  %1817 = vst.msk [vmem:[%s1816] sm:$0x1] %vm399, %v1814
  %v1818 = vpack.c.bf16 %v1796, %v1796
  %v1821 = vunpack.c.l.s4 1966171168
  %v1822 = vunpack.c.0.s8 %v1821
  %v1823 = vlaneseq
  %v1824 = vshrl.u32 %v1823, 7
  %v1825 = vsub.s32 %v1822, %v1824
  %v1826 = vrot.slane %v1818, %v1825
  %v1828 = vunpack.c.l.s4 1966171168
  %v1829 = vunpack.c.0.s8 %v1828
  %v1830 = vlaneseq
  %v1831 = vshrl.u32 %v1830, 7
  %v1832 = vsub.s32 %v1829, %v1831
  %v1833 = vrot.slane %v1826, %v1832
  %1834 = vrot.lane.b32.xlu0 %v1833, 32
  %v1835 = vpop.permute.xlu0 %1834
  %s1837 = scalar_lea.vmem %s50, 1
  %1838 = vst.msk [vmem:[%s1837] sm:$0x1] %vm399, %v1835
  %1840 = vrot.lane.b32.xlu0 %v1772, 32
  %v1841 = vpop.permute.xlu0 %1840
  %1844 = vrot.lane.b32.xlu0 %v1796, 64
  %v1845 = vpop.permute.xlu0 %1844
  %v1847 = vsel %vm430, %v1841, %v1845
  %v1848 = vpack.c.bf16 %v1847, %v1847
  %v1850 = vsel %vm132, %v1848, 0
  %1852 = vmatprep.subr.bf16.mxu0 %v117
  %1853 = vmatpush1.bf16.msra.mxu0 %v116
  %1854 = vmatprep.subr.bf16.mxu0 %v119
  %1855 = vmatpush1.bf16.msra.mxu0 %v118
  %1856 = vmatprep.subr.bf16.mxu0 %v121
  %1857 = vmatpush1.bf16.msra.mxu0 %v120
  %1858 = vmatprep.subr.bf16.mxu0 %v123
  %1859 = vmatpush1.bf16.msra.mxu0 %v122
  %1860 = vmatprep.subr.bf16.mxu0 0
  %1861 = vmatpush1.bf16.msra.mxu0 0
  %1862 = vmatprep.subr.bf16.mxu0 0
  %1863 = vmatpush1.bf16.msra.mxu0 0
  %1864 = vmatprep.subr.bf16.mxu0 0
  %1865 = vmatpush1.bf16.msra.mxu0 0
  %1866 = vmatprep.subr.bf16.mxu0 0
  %1867 = vmatpush1.bf16.msra.mxu0 0
  %1868 = vmatprep.subr.bf16.mxu0 0
  %1869 = vmatpush1.bf16.msra.mxu0 0
  %1870 = vmatprep.subr.bf16.mxu0 0
  %1871 = vmatpush1.bf16.msra.mxu0 0
  %1872 = vmatprep.subr.bf16.mxu0 0
  %1873 = vmatpush1.bf16.msra.mxu0 0
  %1874 = vmatprep.subr.bf16.mxu0 0
  %1875 = vmatpush1.bf16.msra.mxu0 0
  %1876 = vmatprep.subr.bf16.mxu0 0
  %1877 = vmatpush1.bf16.msra.mxu0 0
  %1878 = vmatprep.subr.bf16.mxu0 0
  %1879 = vmatpush1.bf16.msra.mxu0 0
  %1880 = vmatprep.subr.bf16.mxu0 0
  %1881 = vmatpush1.bf16.msra.mxu0 0
  %1882 = vmatprep.subr.bf16.mxu0 0
  %1883 = vmatpush1.bf16.msra.mxu0 0
  %1884 = vmatprep.mubr.bf16.mxu0 0
  %1885 = vmatmul.mubr.bf16.gmra.mrb[0].mxu0 %v1850
  %v1886 = vpop.f32.mrb[0].mxu0
  %v1887 = vadd.f32 0.0, %v1886
  %v1888 = vpop.f32.mrb[0].mxu0
  %v1889 = vadd.f32 0.0, %v1888
  %v1890 = vpop.f32.mrb[0].mxu0
  %v1891 = vpop.f32.mrb[0].mxu0
  %1892 = vdwg.mxu0
  %s1893 = scalar_lea.vmem %s0, 7
  %v1894 = vld [vmem:[%s1893] sm:$0x1]
  %v1896 = vsel %vm132, %v1894, 0
  %1898 = vmatprep.subr.bf16.mxu0 0
  %1899 = vmatpush1.bf16.msra.mxu0 %v200
  %1900 = vmatprep.subr.bf16.mxu0 0
  %1901 = vmatpush1.bf16.msra.mxu0 %v201
  %1902 = vmatprep.subr.bf16.mxu0 0
  %1903 = vmatpush1.bf16.msra.mxu0 %v202
  %1904 = vmatprep.subr.bf16.mxu0 0
  %1905 = vmatpush1.bf16.msra.mxu0 %v203
  %1906 = vmatprep.subr.bf16.mxu0 0
  %1907 = vmatpush1.bf16.msra.mxu0 0
  %1908 = vmatprep.subr.bf16.mxu0 0
  %1909 = vmatpush1.bf16.msra.mxu0 0
  %1910 = vmatprep.subr.bf16.mxu0 0
  %1911 = vmatpush1.bf16.msra.mxu0 0
  %1912 = vmatprep.subr.bf16.mxu0 0
  %1913 = vmatpush1.bf16.msra.mxu0 0
  %1914 = vmatprep.subr.bf16.mxu0 0
  %1915 = vmatpush1.bf16.msra.mxu0 0
  %1916 = vmatprep.subr.bf16.mxu0 0
  %1917 = vmatpush1.bf16.msra.mxu0 0
  %1918 = vmatprep.subr.bf16.mxu0 0
  %1919 = vmatpush1.bf16.msra.mxu0 0
  %1920 = vmatprep.subr.bf16.mxu0 0
  %1921 = vmatpush1.bf16.msra.mxu0 0
  %1922 = vmatprep.subr.bf16.mxu0 0
  %1923 = vmatpush1.bf16.msra.mxu0 0
  %1924 = vmatprep.subr.bf16.mxu0 0
  %1925 = vmatpush1.bf16.msra.mxu0 0
  %1926 = vmatprep.subr.bf16.mxu0 0
  %1927 = vmatpush1.bf16.msra.mxu0 0
  %1928 = vmatprep.subr.bf16.mxu0 0
  %1929 = vmatpush1.bf16.msra.mxu0 0
  %1930 = vmatprep.mubr.bf16.mxu0 0
  %1931 = vmatmul.mubr.bf16.gmra.mrb[0].mxu0 %v1896
  %v1932 = vpop.f32.mrb[0].mxu0
  %v1933 = vadd.f32 %v182, %v1932
  %v1934 = vpop.f32.mrb[0].mxu0
  %v1935 = vpop.f32.mrb[0].mxu0
  %v1936 = vpop.f32.mrb[0].mxu0
  %1937 = vdwg.mxu0
  %v1938 = vld [vmem:[%s43] sm:$0x1]
  %v1940 = vsel %vm132, %v1938, 0
  %1942 = vmatprep.subr.bf16.mxu0 0
  %1943 = vmatpush1.bf16.msra.mxu0 %v275
  %1944 = vmatprep.subr.bf16.mxu0 0
  %1945 = vmatpush1.bf16.msra.mxu0 %v276
  %1946 = vmatprep.subr.bf16.mxu0 0
  %1947 = vmatpush1.bf16.msra.mxu0 %v277
  %1948 = vmatprep.subr.bf16.mxu0 0
  %1949 = vmatpush1.bf16.msra.mxu0 %v278
  %1950 = vmatprep.subr.bf16.mxu0 0
  %1951 = vmatpush1.bf16.msra.mxu0 0
  %1952 = vmatprep.subr.bf16.mxu0 0
  %1953 = vmatpush1.bf16.msra.mxu0 0
  %1954 = vmatprep.subr.bf16.mxu0 0
  %1955 = vmatpush1.bf16.msra.mxu0 0
  %1956 = vmatprep.subr.bf16.mxu0 0
  %1957 = vmatpush1.bf16.msra.mxu0 0
  %1958 = vmatprep.subr.bf16.mxu0 0
  %1959 = vmatpush1.bf16.msra.mxu0 0
  %1960 = vmatprep.subr.bf16.mxu0 0
  %1961 = vmatpush1.bf16.msra.mxu0 0
  %1962 = vmatprep.subr.bf16.mxu0 0
  %1963 = vmatpush1.bf16.msra.mxu0 0
  %1964 = vmatprep.subr.bf16.mxu0 0
  %1965 = vmatpush1.bf16.msra.mxu0 0
  %1966 = vmatprep.subr.bf16.mxu0 0
  %1967 = vmatpush1.bf16.msra.mxu0 0
  %1968 = vmatprep.subr.bf16.mxu0 0
  %1969 = vmatpush1.bf16.msra.mxu0 0
  %1970 = vmatprep.subr.bf16.mxu0 0
  %1971 = vmatpush1.bf16.msra.mxu0 0
  %1972 = vmatprep.subr.bf16.mxu0 0
  %1973 = vmatpush1.bf16.msra.mxu0 0
  %1974 = vmatprep.mubr.bf16.mxu0 0
  %1975 = vmatmul.mubr.bf16.gmra.mrb[0].mxu0 %v1940
  %v1976 = vpop.f32.mrb[0].mxu0
  %v1977 = vadd.f32 %v257, %v1976
  %v1978 = vpop.f32.mrb[0].mxu0
  %v1979 = vpop.f32.mrb[0].mxu0
  %v1980 = vpop.f32.mrb[0].mxu0
  %1981 = vdwg.mxu0
  %v1982 = vadd.f32 %v1887, %v1933
  %v1983 = vadd.f32 %v1889, %v1977
  %v1984 = vxor.u32 %v1982, 2147483648
  %v1985 = vmul.f32 %v1984, 1.442695
  %v1986 = vpow.pop %v1985
  %v1987 = vadd.f32 %v1986, 1.0
  %v1988 = vrcp.pop %v1987
  %v1989 = vmul.f32 1.0, %v1988
  %v1990 = vtanh.pop %v1982
  %v1991 = vmul.f32 %v1989, %v1766
  %1993 = vrot.lane.b32.xlu0 %v1990, 64
  %v1994 = vpop.permute.xlu0 %1993
  %v1996 = vmul.f32 %v1989, %v1994
  %1998 = vrot.lane.b32.xlu0 %v1996, 32
  %v1999 = vpop.permute.xlu0 %1998
  %v2001 = vadd.f32 %v1991, %v1999
  %v2002 = vtanh.pop %v2001
  %2004 = vrot.lane.b32.xlu0 %v2002, 64
  %v2005 = vpop.permute.xlu0 %2004
  %v2007 = vmul.f32 %v1989, %v2005
  %v2008 = vxor.u32 %v1983, 2147483648
  %v2009 = vmul.f32 %v2008, 1.442695
  %v2010 = vpow.pop %v2009
  %v2011 = vadd.f32 %v2010, 1.0
  %v2012 = vrcp.pop %v2011
  %v2013 = vmul.f32 1.0, %v2012
  %v2014 = vtanh.pop %v1983
  %v2015 = vmul.f32 %v2013, %v1790
  %2017 = vrot.lane.b32.xlu0 %v2014, 64
  %v2018 = vpop.permute.xlu0 %2017
  %v2020 = vmul.f32 %v2013, %v2018
  %2022 = vrot.lane.b32.xlu0 %v2020, 32
  %v2023 = vpop.permute.xlu0 %2022
  %v2025 = vadd.f32 %v2015, %v2023
  %v2026 = vtanh.pop %v2025
  %2028 = vrot.lane.b32.xlu0 %v2026, 64
  %v2029 = vpop.permute.xlu0 %2028
  %v2031 = vmul.f32 %v2013, %v2029
  %v2032 = vpack.c.bf16 %v2007, %v2007
  %v2035 = vunpack.c.l.s4 1966171168
  %v2036 = vunpack.c.0.s8 %v2035
  %v2037 = vlaneseq
  %v2038 = vshrl.u32 %v2037, 7
  %v2039 = vsub.s32 %v2036, %v2038
  %v2040 = vrot.slane %v2032, %v2039
  %v2042 = vunpack.c.l.s4 1966171168
  %v2043 = vunpack.c.0.s8 %v2042
  %v2044 = vlaneseq
  %v2045 = vshrl.u32 %v2044, 7
  %v2046 = vsub.s32 %v2043, %v2045
  %v2047 = vrot.slane %v2040, %v2046
  %2048 = vrot.lane.b32.xlu0 %v2047, 32
  %v2049 = vpop.permute.xlu0 %2048
  %s2051 = scalar_lea.vmem %s5, 7
  %2052 = vst.msk [vmem:[%s2051] sm:$0x1] %vm399, %v2049
  %v2053 = vpack.c.bf16 %v2031, %v2031
  %v2056 = vunpack.c.l.s4 1966171168
  %v2057 = vunpack.c.0.s8 %v2056
  %v2058 = vlaneseq
  %v2059 = vshrl.u32 %v2058, 7
  %v2060 = vsub.s32 %v2057, %v2059
  %v2061 = vrot.slane %v2053, %v2060
  %v2063 = vunpack.c.l.s4 1966171168
  %v2064 = vunpack.c.0.s8 %v2063
  %v2065 = vlaneseq
  %v2066 = vshrl.u32 %v2065, 7
  %v2067 = vsub.s32 %v2064, %v2066
  %v2068 = vrot.slane %v2061, %v2067
  %2069 = vrot.lane.b32.xlu0 %v2068, 32
  %v2070 = vpop.permute.xlu0 %2069
  %2072 = vst.msk [vmem:[%s50] sm:$0x1] %vm399, %v2070
  %2074 = vrot.lane.b32.xlu0 %v2007, 32
  %v2075 = vpop.permute.xlu0 %2074
  %2078 = vrot.lane.b32.xlu0 %v2031, 64
  %v2079 = vpop.permute.xlu0 %2078
  %v2081 = vsel %vm430, %v2075, %v2079
  %vm2082 = vcmask 517120
  %2083 = vst.msk [vmem:[#allocation2] sm:$0x3] %vm2082, %v2081
  %2085 = vrot.lane.b32.xlu0 %v2001, 96
  %v2086 = vpop.permute.xlu0 %2085
  %v2088 = vsel %vm430, %v2086, %v2025
  %2089 = vst.msk [vmem:[#allocation3] sm:$0x3] %vm2082, %v2088
  %s2090 = ssub.s32 0, 0
  %s2091 = smul.u32 8, %s2090
  %p2092 = scmp.lt.s32.totalorder %s2091, 7
  %s2093 = scalar_select %p2092, %s2091, 7
  %s2094 = scalar_lea.vmem %s6, %s2093
  // Predicated region
  $region26: #{blstm_forward.3} parent=0 // pred_check
    _
  $region27: #{blstm_forward.3} parent=0 // pred_check_branch
    %2096 = sbr.rel (0) target = $region29
  $region28: #{blstm_forward.3} parent=0 // pred_region
    _
  $region29: #{blstm_forward.3} parent=0 // pred_fallthru
    _
  // Predicated region
  $region30: #{blstm_forward.3} parent=0 // pred_check
    _
  $region31: #{blstm_forward.3} parent=0 // pred_check_branch
    %2098 = sbr.rel (0) target = $region33
  $region32: #{blstm_forward.3} parent=0 // pred_region
    %s2099 = ssub.s32 0, 0
    %s2100 = smul.u32 8, %s2099
  $region33: #{blstm_forward.3} parent=0 // pred_fallthru
    _
  // Predicated region
  $region34: #{blstm_forward.3} parent=0 // pred_check
    _
  $region35: #{blstm_forward.3} parent=0 // pred_check_branch
    %2102 = sbr.rel (0) target = $region37
  $region36: #{blstm_forward.3} parent=0 // pred_region
    _
  $region37: #{blstm_forward.3} parent=0 // pred_fallthru
    _
  // Predicated region
  $region38: #{blstm_forward.3} parent=0 // pred_check
    _
  $region39: #{blstm_forward.3} parent=0 // pred_check_branch
    %2104 = sbr.rel (0) target = $region41
  $region40: #{blstm_forward.3} parent=0 // pred_region
    %s2105 = ssub.s32 0, 0
    %s2106 = smul.u32 8, %s2105
    %p2107 = scmp.lt.s32.totalorder %s2106, 7
    %s2108 = scalar_select %p2107, %s2106, 7
    %s2109 = scalar_lea.vmem %s6, %s2108
  $region41: #{blstm_forward.3} parent=0 // pred_fallthru
    _

// kernel: blstm_forward.2
$region0: #{blstm_forward.2}
  #allocation0 [shape = 'u32[]', space=smem, size = 0x4, offset = 0x4, fixed_abs, tag = 'smem constant byte address 0x4 - core index']
  #allocation1 [shape = 'u32[144,128]{1,0:T(1,128)}', space=vmem, size = 0x12000, scoped, tag = 'internal scratch']
  #allocation2 [shape = 'f32[2,64]{1,0:T(2,128)}', space=vmem, size = 0x400, scoped, tag = 'scratch operand']
  #allocation3 [shape = 'f32[2,64]{1,0:T(2,128)}', space=vmem, size = 0x400, scoped, tag = 'scratch operand']
  %s0 = inlined_call_operand.vmem [shape: bf16[8,2,16], index: 0, kind: input, shape index: {}, may-alias: {0,1}]
  %s1 = inlined_call_operand.vmem [shape: bf16[8,2,16], index: 1, kind: input, shape index: {}, may-alias: {0,1}]
  %s2 = inlined_call_operand.vmem [shape: bf16[2,16,128], index: 2, kind: input, shape index: {}]
  %s3 = inlined_call_operand.vmem [shape: bf16[64,256], index: 3, kind: input, shape index: {}]
  %s4 = inlined_call_operand.vmem [shape: f32[2,1,128], index: 4, kind: input, shape index: {}]
  %s5 = inlined_call_operand.vmem [shape: bf16[8,2,32], index: 5, kind: output, shape index: {0}]
  %s6 = inlined_call_operand.vmem [shape: bf16[8,2,32], index: 6, kind: output, shape index: {1}]
  %7 = xla_tuple %s5, %s6
  %s8 = sld [smem:[#allocation0]]
  $region42: #{blstm_forward.2} parent=0
    _
  %s10 = ssub.s32 1, %s8
  %s11 = scalar_select 0, %s10, %s8
  // Predicated region
  $region2: #{blstm_forward.2} parent=0 // pred_check
    _
  $region3: #{blstm_forward.2} parent=0 // pred_check_branch
    %13 = sbr.rel (0) target = $region5
  $region4: #{blstm_forward.2} parent=0 // pred_region
    _
  $region5: #{blstm_forward.2} parent=0 // pred_fallthru
    _
  // Predicated region
  $region6: #{blstm_forward.2} parent=0 // pred_check
    _
  $region7: #{blstm_forward.2} parent=0 // pred_check_branch
    %15 = sbr.rel (0) target = $region9
  $region8: #{blstm_forward.2} parent=0 // pred_region
    %s16 = ssub.s32 0, 0
    %s17 = smul.u32 8, %s16
    %p18 = scmp.lt.s32.totalorder %s17, 7
    %s19 = scalar_select %p18, %s17, 7
    %s20 = scalar_lea.vmem %s1, %s19
    %s21 = ssub.s32 0, 0
    %s22 = smul.u32 8, %s21
  $region9: #{blstm_forward.2} parent=0 // pred_fallthru
    _
  // Predicated region
  $region10: #{blstm_forward.2} parent=0 // pred_check
    _
  $region11: #{blstm_forward.2} parent=0 // pred_check_branch
    %24 = sbr.rel (0) target = $region13
  $region12: #{blstm_forward.2} parent=0 // pred_region
    _
  $region13: #{blstm_forward.2} parent=0 // pred_fallthru
    _
  // Predicated region
  $region14: #{blstm_forward.2} parent=0 // pred_check
    _
  $region15: #{blstm_forward.2} parent=0 // pred_check_branch
    %26 = sbr.rel (0) target = $region17
  $region16: #{blstm_forward.2} parent=0 // pred_region
    _
  $region17: #{blstm_forward.2} parent=0 // pred_fallthru
    _
  // Predicated region
  $region18: #{blstm_forward.2} parent=0 // pred_check
    _
  $region19: #{blstm_forward.2} parent=0 // pred_check_branch
    %28 = sbr.rel (0) target = $region21
  $region20: #{blstm_forward.2} parent=0 // pred_region
    _
  $region21: #{blstm_forward.2} parent=0 // pred_fallthru
    _
  %s29 = ssub.s32 0, 0
  %s30 = smul.u32 8, %s29
  %p31 = scmp.lt.s32.totalorder %s30, 7
  %s32 = scalar_select %p31, %s30, 7
  %s33 = scalar_lea.vmem %s1, %s32
  %s34 = ssub.s32 0, 0
  %s35 = smul.u32 8, %s34
  %p36 = scmp.lt.s32.totalorder %s35, 7
  %s37 = scalar_select %p36, %s35, 7
  %s38 = scalar_lea.vmem %s6, %s37
  %s39 = ssub.s32 0, 0
  %s40 = smul.u32 8, %s39
  %p41 = scmp.lt.s32.totalorder %s40, 7
  %s42 = scalar_select %p41, %s40, 7
  %s43 = scalar_lea.vmem %s1, %s42
  %s44 = ssub.s32 0, 0
  %s45 = smul.u32 8, %s44
  %s46 = ssub.s32 0, 0
  %s47 = smul.u32 8, %s46
  %p48 = scmp.lt.s32.totalorder %s47, 7
  %s49 = scalar_select %p48, %s47, 7
  %s50 = scalar_lea.vmem %s6, %s49
  %s51 = ssub.s32 0, 0
  %s52 = smul.u32 8, %s51
  %p54 = scmp.eq.s32.totalorder 0, 0
  // Predicated region
  $region22: #{blstm_forward.2} parent=0 // pred_check
    %p55 = pneg %p54
  $region23: #{blstm_forward.2} parent=0 // pred_check_branch
    %57 = sbr.rel (%p55) target = $region25
  $region24: #{blstm_forward.2} parent=0 // pred_region
    %vm58 = vcmask 517120
    %59 = vst.msk [vmem:[#allocation2] sm:$0x3] %vm58, 0.0
    %60 = vst.msk [vmem:[#allocation3] sm:$0x3] %vm58, 0.0
  $region25: #{blstm_forward.2} parent=0 // pred_fallthru
    _
  %v61 = vld [vmem:[%s2] sm:$0xf]
  %v62 = vld [vmem:[%s2 + $0x4] sm:$0xf]
  %s63 = scalar_lea.vmem %s2, 8
  %v64 = vld [vmem:[%s63] sm:$0xf]
  %v65 = vld [vmem:[%s63 + $0x4] sm:$0xf]
  %v66 = vld [vmem:[%s3] sm:$0xff]
  %v67 = vld [vmem:[%s3 + $0x8] sm:$0xff]
  %v68 = vld [vmem:[%s3 + $0x10] sm:$0xff]
  %v69 = vld [vmem:[%s3 + $0x18] sm:$0xff]
  %v70 = vld [vmem:[%s3 + $0x20] sm:$0xff]
  %v71 = vld [vmem:[%s3 + $0x28] sm:$0xff]
  %v72 = vld [vmem:[%s3 + $0x30] sm:$0xff]
  %v73 = vld [vmem:[%s3 + $0x38] sm:$0xff]
  %v74 = vld [vmem:[%s4] sm:$0x1]
  %s75 = scalar_lea.vmem %s4, 1
  %v76 = vld [vmem:[%s75] sm:$0x1]
  %v77 = vld [vmem:[#allocation2] sm:$0x3]
  %v78 = vld [vmem:[#allocation3] sm:$0x3]
  %v79 = vpack.c.bf16 %v77, %v77
  %v88 = vunpack.c.l.b16 %v66
  %v89 = vunpack.c.h.b16 %v66
  %v90 = vunpack.c.l.b16 %v67
  %v91 = vunpack.c.h.b16 %v67
  %v92 = vunpack.c.l.b16 %v68
  %v93 = vunpack.c.h.b16 %v68
  %v94 = vunpack.c.l.b16 %v69
  %v95 = vunpack.c.h.b16 %v69
  %v96 = vunpack.c.l.b16 %v70
  %v97 = vunpack.c.h.b16 %v70
  %v98 = vunpack.c.l.b16 %v71
  %v99 = vunpack.c.h.b16 %v71
  %v100 = vunpack.c.l.b16 %v72
  %v101 = vunpack.c.h.b16 %v72
  %v102 = vunpack.c.l.b16 %v73
  %v103 = vunpack.c.h.b16 %v73
  %v104 = vpack.c.b16 %v90, %v88
  %v105 = vpack.c.b16 %v91, %v89
  %v106 = vpack.c.b16 %v94, %v92
  %v107 = vpack.c.b16 %v95, %v93
  %v108 = vpack.c.b16 %v98, %v96
  %v109 = vpack.c.b16 %v99, %v97
  %v110 = vpack.c.b16 %v102, %v100
  %v111 = vpack.c.b16 %v103, %v101
  %vm120 = vcmask 523264
  %v122 = vsel %vm120, %v79, 0
  %124 = vmatprep.subr.bf16.mxu0 %v105
  %125 = vmatpush1.bf16.msra.mxu0 %v104
  %126 = vmatprep.subr.bf16.mxu0 %v107
  %127 = vmatpush1.bf16.msra.mxu0 %v106
  %128 = vmatprep.subr.bf16.mxu0 %v109
  %129 = vmatpush1.bf16.msra.mxu0 %v108
  %130 = vmatprep.subr.bf16.mxu0 %v111
  %131 = vmatpush1.bf16.msra.mxu0 %v110
  %132 = vmatprep.subr.bf16.mxu0 0
  %133 = vmatpush1.bf16.msra.mxu0 0
  %134 = vmatprep.subr.bf16.mxu0 0
  %135 = vmatpush1.bf16.msra.mxu0 0
  %136 = vmatprep.subr.bf16.mxu0 0
  %137 = vmatpush1.bf16.msra.mxu0 0
  %138 = vmatprep.subr.bf16.mxu0 0
  %139 = vmatpush1.bf16.msra.mxu0 0
  %140 = vmatprep.subr.bf16.mxu0 0
  %141 = vmatpush1.bf16.msra.mxu0 0
  %142 = vmatprep.subr.bf16.mxu0 0
  %143 = vmatpush1.bf16.msra.mxu0 0
  %144 = vmatprep.subr.bf16.mxu0 0
  %145 = vmatpush1.bf16.msra.mxu0 0
  %146 = vmatprep.subr.bf16.mxu0 0
  %147 = vmatpush1.bf16.msra.mxu0 0
  %148 = vmatprep.subr.bf16.mxu0 0
  %149 = vmatpush1.bf16.msra.mxu0 0
  %150 = vmatprep.subr.bf16.mxu0 0
  %151 = vmatpush1.bf16.msra.mxu0 0
  %152 = vmatprep.subr.bf16.mxu0 0
  %153 = vmatpush1.bf16.msra.mxu0 0
  %154 = vmatprep.subr.bf16.mxu0 0
  %155 = vmatpush1.bf16.msra.mxu0 0
  %156 = vmatprep.mubr.bf16.mxu0 0
  %157 = vmatmul.mubr.bf16.gmra.mrb[0].mxu0 %v122
  %v158 = vpop.f32.mrb[0].mxu0
  %v159 = vadd.f32 0.0, %v158
  %v160 = vpop.f32.mrb[0].mxu0
  %v161 = vadd.f32 0.0, %v160
  %v162 = vpop.f32.mrb[0].mxu0
  %v163 = vpop.f32.mrb[0].mxu0
  %164 = vdwg.mxu0
  %v165 = vld [vmem:[%s0] sm:$0x1]
  %v167 = vlaneseq
  %v168 = vshrl.u32 %v167, 7
  %v169 = vsub.s32 0, %v168
  %v170 = vrot.slane %v74, %v169
  %v174 = vunpack.c.l.b16 %v61
  %v175 = vunpack.c.l.b16 %v62
  %v176 = vpack.c.b16 %v175, %v174
  %vm178 = vcmask 130048
  %v180 = vsel %vm178, %v165, 0
  %182 = vmatprep.subr.bf16.mxu0 0
  %183 = vmatpush1.bf16.msra.mxu0 %v176
  %184 = vmatprep.subr.bf16.mxu0 0
  %185 = vmatpush1.bf16.msra.mxu0 0
  %186 = vmatprep.subr.bf16.mxu0 0
  %187 = vmatpush1.bf16.msra.mxu0 0
  %188 = vmatprep.subr.bf16.mxu0 0
  %189 = vmatpush1.bf16.msra.mxu0 0
  %190 = vmatprep.subr.bf16.mxu0 0
  %191 = vmatpush1.bf16.msra.mxu0 0
  %192 = vmatprep.subr.bf16.mxu0 0
  %193 = vmatpush1.bf16.msra.mxu0 0
  %194 = vmatprep.subr.bf16.mxu0 0
  %195 = vmatpush1.bf16.msra.mxu0 0
  %196 = vmatprep.subr.bf16.mxu0 0
  %197 = vmatpush1.bf16.msra.mxu0 0
  %198 = vmatprep.subr.bf16.mxu0 0
  %199 = vmatpush1.bf16.msra.mxu0 0
  %200 = vmatprep.subr.bf16.mxu0 0
  %201 = vmatpush1.bf16.msra.mxu0 0
  %202 = vmatprep.subr.bf16.mxu0 0
  %203 = vmatpush1.bf16.msra.mxu0 0
  %204 = vmatprep.subr.bf16.mxu0 0
  %205 = vmatpush1.bf16.msra.mxu0 0
  %206 = vmatprep.subr.bf16.mxu0 0
  %207 = vmatpush1.bf16.msra.mxu0 0
  %208 = vmatprep.subr.bf16.mxu0 0
  %209 = vmatpush1.bf16.msra.mxu0 0
  %210 = vmatprep.subr.bf16.mxu0 0
  %211 = vmatpush1.bf16.msra.mxu0 0
  %212 = vmatprep.subr.bf16.mxu0 0
  %213 = vmatpush1.bf16.msra.mxu0 0
  %214 = vmatprep.mubr.bf16.mxu0 0
  %215 = vmatmul.mubr.bf16.gmra.mrb[0].mxu0 %v180
  %v216 = vpop.f32.mrb[0].mxu0
  %v217 = vadd.f32 %v170, %v216
  %v218 = vpop.f32.mrb[0].mxu0
  %v219 = vpop.f32.mrb[0].mxu0
  %v220 = vpop.f32.mrb[0].mxu0
  %221 = vdwg.mxu0
  %s222 = scalar_lea.vmem %s43, 7
  %v223 = vld [vmem:[%s222] sm:$0x1]
  %v225 = vlaneseq
  %v226 = vshrl.u32 %v225, 7
  %v227 = vsub.s32 0, %v226
  %v228 = vrot.slane %v76, %v227
  %v232 = vunpack.c.l.b16 %v64
  %v233 = vunpack.c.l.b16 %v65
  %v234 = vpack.c.b16 %v233, %v232
  %v237 = vsel %vm178, %v223, 0
  %239 = vmatprep.subr.bf16.mxu0 0
  %240 = vmatpush1.bf16.msra.mxu0 %v234
  %241 = vmatprep.subr.bf16.mxu0 0
  %242 = vmatpush1.bf16.msra.mxu0 0
  %243 = vmatprep.subr.bf16.mxu0 0
  %244 = vmatpush1.bf16.msra.mxu0 0
  %245 = vmatprep.subr.bf16.mxu0 0
  %246 = vmatpush1.bf16.msra.mxu0 0
  %247 = vmatprep.subr.bf16.mxu0 0
  %248 = vmatpush1.bf16.msra.mxu0 0
  %249 = vmatprep.subr.bf16.mxu0 0
  %250 = vmatpush1.bf16.msra.mxu0 0
  %251 = vmatprep.subr.bf16.mxu0 0
  %252 = vmatpush1.bf16.msra.mxu0 0
  %253 = vmatprep.subr.bf16.mxu0 0
  %254 = vmatpush1.bf16.msra.mxu0 0
  %255 = vmatprep.subr.bf16.mxu0 0
  %256 = vmatpush1.bf16.msra.mxu0 0
  %257 = vmatprep.subr.bf16.mxu0 0
  %258 = vmatpush1.bf16.msra.mxu0 0
  %259 = vmatprep.subr.bf16.mxu0 0
  %260 = vmatpush1.bf16.msra.mxu0 0
  %261 = vmatprep.subr.bf16.mxu0 0
  %262 = vmatpush1.bf16.msra.mxu0 0
  %263 = vmatprep.subr.bf16.mxu0 0
  %264 = vmatpush1.bf16.msra.mxu0 0
  %265 = vmatprep.subr.bf16.mxu0 0
  %266 = vmatpush1.bf16.msra.mxu0 0
  %267 = vmatprep.subr.bf16.mxu0 0
  %268 = vmatpush1.bf16.msra.mxu0 0
  %269 = vmatprep.subr.bf16.mxu0 0
  %270 = vmatpush1.bf16.msra.mxu0 0
  %271 = vmatprep.mubr.bf16.mxu0 0
  %272 = vmatmul.mubr.bf16.gmra.mrb[0].mxu0 %v237
  %v273 = vpop.f32.mrb[0].mxu0
  %v274 = vadd.f32 %v228, %v273
  %v275 = vpop.f32.mrb[0].mxu0
  %v276 = vpop.f32.mrb[0].mxu0
  %v277 = vpop.f32.mrb[0].mxu0
  %278 = vdwg.mxu0
  %v279 = vadd.f32 %v159, %v217
  %v280 = vadd.f32 %v161, %v274
  %v281 = vxor.u32 %v279, 2147483648
  %v282 = vmul.f32 %v281, 1.442695
  %v283 = vpow.pop %v282
  %v284 = vadd.f32 %v283, 1.0
  %v285 = vrcp.pop %v284
  %v286 = vmul.f32 1.0, %v285
  %v287 = vtanh.pop %v279
  %289 = vrot.lane.b32.xlu0 %v78, 32
  %v290 = vpop.permute.xlu0 %289
  %v292 = vmul.f32 %v286, %v290
  %294 = vrot.lane.b32.xlu0 %v287, 64
  %v295 = vpop.permute.xlu0 %294
  %v297 = vmul.f32 %v286, %v295
  %299 = vrot.lane.b32.xlu0 %v297, 32
  %v300 = vpop.permute.xlu0 %299
  %v302 = vadd.f32 %v292, %v300
  %v303 = vtanh.pop %v302
  %305 = vrot.lane.b32.xlu0 %v303, 64
  %v306 = vpop.permute.xlu0 %305
  %v308 = vmul.f32 %v286, %v306
  %v309 = vxor.u32 %v280, 2147483648
  %v310 = vmul.f32 %v309, 1.442695
  %v311 = vpow.pop %v310
  %v312 = vadd.f32 %v311, 1.0
  %v313 = vrcp.pop %v312
  %v314 = vmul.f32 1.0, %v313
  %v315 = vtanh.pop %v280
  %v316 = vmul.f32 %v314, %v78
  %318 = vrot.lane.b32.xlu0 %v315, 64
  %v319 = vpop.permute.xlu0 %318
  %v321 = vmul.f32 %v314, %v319
  %323 = vrot.lane.b32.xlu0 %v321, 32
  %v324 = vpop.permute.xlu0 %323
  %v326 = vadd.f32 %v316, %v324
  %v327 = vtanh.pop %v326
  %329 = vrot.lane.b32.xlu0 %v327, 64
  %v330 = vpop.permute.xlu0 %329
  %v332 = vmul.f32 %v314, %v330
  %v333 = vpack.c.bf16 %v308, %v308
  %v336 = vunpack.c.l.s4 1966171168
  %v337 = vunpack.c.0.s8 %v336
  %v338 = vlaneseq
  %v339 = vshrl.u32 %v338, 7
  %v340 = vsub.s32 %v337, %v339
  %v341 = vrot.slane %v333, %v340
  %v343 = vunpack.c.l.s4 1966171168
  %v344 = vunpack.c.0.s8 %v343
  %v345 = vlaneseq
  %v346 = vshrl.u32 %v345, 7
  %v347 = vsub.s32 %v344, %v346
  %v348 = vrot.slane %v341, %v347
  %349 = vrot.lane.b32.xlu0 %v348, 32
  %v350 = vpop.permute.xlu0 %349
  %vm352 = vcmask 253952
  %353 = vst.msk [vmem:[%s5] sm:$0x1] %vm352, %v350
  %v354 = vpack.c.bf16 %v332, %v332
  %v357 = vunpack.c.l.s4 1966171168
  %v358 = vunpack.c.0.s8 %v357
  %v359 = vlaneseq
  %v360 = vshrl.u32 %v359, 7
  %v361 = vsub.s32 %v358, %v360
  %v362 = vrot.slane %v354, %v361
  %v364 = vunpack.c.l.s4 1966171168
  %v365 = vunpack.c.0.s8 %v364
  %v366 = vlaneseq
  %v367 = vshrl.u32 %v366, 7
  %v368 = vsub.s32 %v365, %v367
  %v369 = vrot.slane %v362, %v368
  %370 = vrot.lane.b32.xlu0 %v369, 32
  %v371 = vpop.permute.xlu0 %370
  %s373 = scalar_lea.vmem %s50, 7
  %374 = vst.msk [vmem:[%s373] sm:$0x1] %vm352, %v371
  %376 = vrot.lane.b32.xlu0 %v308, 32
  %v377 = vpop.permute.xlu0 %376
  %380 = vrot.lane.b32.xlu0 %v332, 64
  %v381 = vpop.permute.xlu0 %380
  %vm383 = vcmask 261120
  %v384 = vsel %vm383, %v377, %v381
  %v385 = vpack.c.bf16 %v384, %v384
  %v387 = vsel %vm120, %v385, 0
  %389 = vmatprep.subr.bf16.mxu0 %v105
  %390 = vmatpush1.bf16.msra.mxu0 %v104
  %391 = vmatprep.subr.bf16.mxu0 %v107
  %392 = vmatpush1.bf16.msra.mxu0 %v106
  %393 = vmatprep.subr.bf16.mxu0 %v109
  %394 = vmatpush1.bf16.msra.mxu0 %v108
  %395 = vmatprep.subr.bf16.mxu0 %v111
  %396 = vmatpush1.bf16.msra.mxu0 %v110
  %397 = vmatprep.subr.bf16.mxu0 0
  %398 = vmatpush1.bf16.msra.mxu0 0
  %399 = vmatprep.subr.bf16.mxu0 0
  %400 = vmatpush1.bf16.msra.mxu0 0
  %401 = vmatprep.subr.bf16.mxu0 0
  %402 = vmatpush1.bf16.msra.mxu0 0
  %403 = vmatprep.subr.bf16.mxu0 0
  %404 = vmatpush1.bf16.msra.mxu0 0
  %405 = vmatprep.subr.bf16.mxu0 0
  %406 = vmatpush1.bf16.msra.mxu0 0
  %407 = vmatprep.subr.bf16.mxu0 0
  %408 = vmatpush1.bf16.msra.mxu0 0
  %409 = vmatprep.subr.bf16.mxu0 0
  %410 = vmatpush1.bf16.msra.mxu0 0
  %411 = vmatprep.subr.bf16.mxu0 0
  %412 = vmatpush1.bf16.msra.mxu0 0
  %413 = vmatprep.subr.bf16.mxu0 0
  %414 = vmatpush1.bf16.msra.mxu0 0
  %415 = vmatprep.subr.bf16.mxu0 0
  %416 = vmatpush1.bf16.msra.mxu0 0
  %417 = vmatprep.subr.bf16.mxu0 0
  %418 = vmatpush1.bf16.msra.mxu0 0
  %419 = vmatprep.subr.bf16.mxu0 0
  %420 = vmatpush1.bf16.msra.mxu0 0
  %421 = vmatprep.mubr.bf16.mxu0 0
  %422 = vmatmul.mubr.bf16.gmra.mrb[0].mxu0 %v387
  %v423 = vpop.f32.mrb[0].mxu0
  %v424 = vadd.f32 0.0, %v423
  %v425 = vpop.f32.mrb[0].mxu0
  %v426 = vadd.f32 0.0, %v425
  %v427 = vpop.f32.mrb[0].mxu0
  %v428 = vpop.f32.mrb[0].mxu0
  %429 = vdwg.mxu0
  %s430 = scalar_lea.vmem %s0, 1
  %v431 = vld [vmem:[%s430] sm:$0x1]
  %v433 = vsel %vm178, %v431, 0
  %435 = vmatprep.subr.bf16.mxu0 0
  %436 = vmatpush1.bf16.msra.mxu0 %v176
  %437 = vmatprep.subr.bf16.mxu0 0
  %438 = vmatpush1.bf16.msra.mxu0 0
  %439 = vmatprep.subr.bf16.mxu0 0
  %440 = vmatpush1.bf16.msra.mxu0 0
  %441 = vmatprep.subr.bf16.mxu0 0
  %442 = vmatpush1.bf16.msra.mxu0 0
  %443 = vmatprep.subr.bf16.mxu0 0
  %444 = vmatpush1.bf16.msra.mxu0 0
  %445 = vmatprep.subr.bf16.mxu0 0
  %446 = vmatpush1.bf16.msra.mxu0 0
  %447 = vmatprep.subr.bf16.mxu0 0
  %448 = vmatpush1.bf16.msra.mxu0 0
  %449 = vmatprep.subr.bf16.mxu0 0
  %450 = vmatpush1.bf16.msra.mxu0 0
  %451 = vmatprep.subr.bf16.mxu0 0
  %452 = vmatpush1.bf16.msra.mxu0 0
  %453 = vmatprep.subr.bf16.mxu0 0
  %454 = vmatpush1.bf16.msra.mxu0 0
  %455 = vmatprep.subr.bf16.mxu0 0
  %456 = vmatpush1.bf16.msra.mxu0 0
  %457 = vmatprep.subr.bf16.mxu0 0
  %458 = vmatpush1.bf16.msra.mxu0 0
  %459 = vmatprep.subr.bf16.mxu0 0
  %460 = vmatpush1.bf16.msra.mxu0 0
  %461 = vmatprep.subr.bf16.mxu0 0
  %462 = vmatpush1.bf16.msra.mxu0 0
  %463 = vmatprep.subr.bf16.mxu0 0
  %464 = vmatpush1.bf16.msra.mxu0 0
  %465 = vmatprep.subr.bf16.mxu0 0
  %466 = vmatpush1.bf16.msra.mxu0 0
  %467 = vmatprep.mubr.bf16.mxu0 0
  %468 = vmatmul.mubr.bf16.gmra.mrb[0].mxu0 %v433
  %v469 = vpop.f32.mrb[0].mxu0
  %v470 = vadd.f32 %v170, %v469
  %v471 = vpop.f32.mrb[0].mxu0
  %v472 = vpop.f32.mrb[0].mxu0
  %v473 = vpop.f32.mrb[0].mxu0
  %474 = vdwg.mxu0
  %s475 = scalar_lea.vmem %s43, 6
  %v476 = vld [vmem:[%s475] sm:$0x1]
  %v478 = vsel %vm178, %v476, 0
  %480 = vmatprep.subr.bf16.mxu0 0
  %481 = vmatpush1.bf16.msra.mxu0 %v234
  %482 = vmatprep.subr.bf16.mxu0 0
  %483 = vmatpush1.bf16.msra.mxu0 0
  %484 = vmatprep.subr.bf16.mxu0 0
  %485 = vmatpush1.bf16.msra.mxu0 0
  %486 = vmatprep.subr.bf16.mxu0 0
  %487 = vmatpush1.bf16.msra.mxu0 0
  %488 = vmatprep.subr.bf16.mxu0 0
  %489 = vmatpush1.bf16.msra.mxu0 0
  %490 = vmatprep.subr.bf16.mxu0 0
  %491 = vmatpush1.bf16.msra.mxu0 0
  %492 = vmatprep.subr.bf16.mxu0 0
  %493 = vmatpush1.bf16.msra.mxu0 0
  %494 = vmatprep.subr.bf16.mxu0 0
  %495 = vmatpush1.bf16.msra.mxu0 0
  %496 = vmatprep.subr.bf16.mxu0 0
  %497 = vmatpush1.bf16.msra.mxu0 0
  %498 = vmatprep.subr.bf16.mxu0 0
  %499 = vmatpush1.bf16.msra.mxu0 0
  %500 = vmatprep.subr.bf16.mxu0 0
  %501 = vmatpush1.bf16.msra.mxu0 0
  %502 = vmatprep.subr.bf16.mxu0 0
  %503 = vmatpush1.bf16.msra.mxu0 0
  %504 = vmatprep.subr.bf16.mxu0 0
  %505 = vmatpush1.bf16.msra.mxu0 0
  %506 = vmatprep.subr.bf16.mxu0 0
  %507 = vmatpush1.bf16.msra.mxu0 0
  %508 = vmatprep.subr.bf16.mxu0 0
  %509 = vmatpush1.bf16.msra.mxu0 0
  %510 = vmatprep.subr.bf16.mxu0 0
  %511 = vmatpush1.bf16.msra.mxu0 0
  %512 = vmatprep.mubr.bf16.mxu0 0
  %513 = vmatmul.mubr.bf16.gmra.mrb[0].mxu0 %v478
  %v514 = vpop.f32.mrb[0].mxu0
  %v515 = vadd.f32 %v228, %v514
  %v516 = vpop.f32.mrb[0].mxu0
  %v517 = vpop.f32.mrb[0].mxu0
  %v518 = vpop.f32.mrb[0].mxu0
  %519 = vdwg.mxu0
  %v520 = vadd.f32 %v424, %v470
  %v521 = vadd.f32 %v426, %v515
  %v522 = vxor.u32 %v520, 2147483648
  %v523 = vmul.f32 %v522, 1.442695
  %v524 = vpow.pop %v523
  %v525 = vadd.f32 %v524, 1.0
  %v526 = vrcp.pop %v525
  %v527 = vmul.f32 1.0, %v526
  %v528 = vtanh.pop %v520
  %v529 = vmul.f32 %v527, %v302
  %531 = vrot.lane.b32.xlu0 %v528, 64
  %v532 = vpop.permute.xlu0 %531
  %v534 = vmul.f32 %v527, %v532
  %536 = vrot.lane.b32.xlu0 %v534, 32
  %v537 = vpop.permute.xlu0 %536
  %v539 = vadd.f32 %v529, %v537
  %v540 = vtanh.pop %v539
  %542 = vrot.lane.b32.xlu0 %v540, 64
  %v543 = vpop.permute.xlu0 %542
  %v545 = vmul.f32 %v527, %v543
  %v546 = vxor.u32 %v521, 2147483648
  %v547 = vmul.f32 %v546, 1.442695
  %v548 = vpow.pop %v547
  %v549 = vadd.f32 %v548, 1.0
  %v550 = vrcp.pop %v549
  %v551 = vmul.f32 1.0, %v550
  %v552 = vtanh.pop %v521
  %v553 = vmul.f32 %v551, %v326
  %555 = vrot.lane.b32.xlu0 %v552, 64
  %v556 = vpop.permute.xlu0 %555
  %v558 = vmul.f32 %v551, %v556
  %560 = vrot.lane.b32.xlu0 %v558, 32
  %v561 = vpop.permute.xlu0 %560
  %v563 = vadd.f32 %v553, %v561
  %v564 = vtanh.pop %v563
  %566 = vrot.lane.b32.xlu0 %v564, 64
  %v567 = vpop.permute.xlu0 %566
  %v569 = vmul.f32 %v551, %v567
  %v570 = vpack.c.bf16 %v545, %v545
  %v573 = vunpack.c.l.s4 1966171168
  %v574 = vunpack.c.0.s8 %v573
  %v575 = vlaneseq
  %v576 = vshrl.u32 %v575, 7
  %v577 = vsub.s32 %v574, %v576
  %v578 = vrot.slane %v570, %v577
  %v580 = vunpack.c.l.s4 1966171168
  %v581 = vunpack.c.0.s8 %v580
  %v582 = vlaneseq
  %v583 = vshrl.u32 %v582, 7
  %v584 = vsub.s32 %v581, %v583
  %v585 = vrot.slane %v578, %v584
  %586 = vrot.lane.b32.xlu0 %v585, 32
  %v587 = vpop.permute.xlu0 %586
  %s589 = scalar_lea.vmem %s5, 1
  %590 = vst.msk [vmem:[%s589] sm:$0x1] %vm352, %v587
  %v591 = vpack.c.bf16 %v569, %v569
  %v594 = vunpack.c.l.s4 1966171168
  %v595 = vunpack.c.0.s8 %v594
  %v596 = vlaneseq
  %v597 = vshrl.u32 %v596, 7
  %v598 = vsub.s32 %v595, %v597
  %v599 = vrot.slane %v591, %v598
  %v601 = vunpack.c.l.s4 1966171168
  %v602 = vunpack.c.0.s8 %v601
  %v603 = vlaneseq
  %v604 = vshrl.u32 %v603, 7
  %v605 = vsub.s32 %v602, %v604
  %v606 = vrot.slane %v599, %v605
  %607 = vrot.lane.b32.xlu0 %v606, 32
  %v608 = vpop.permute.xlu0 %607
  %s610 = scalar_lea.vmem %s50, 6
  %611 = vst.msk [vmem:[%s610] sm:$0x1] %vm352, %v608
  %613 = vrot.lane.b32.xlu0 %v545, 32
  %v614 = vpop.permute.xlu0 %613
  %617 = vrot.lane.b32.xlu0 %v569, 64
  %v618 = vpop.permute.xlu0 %617
  %v620 = vsel %vm383, %v614, %v618
  %v621 = vpack.c.bf16 %v620, %v620
  %v623 = vsel %vm120, %v621, 0
  %625 = vmatprep.subr.bf16.mxu0 %v105
  %626 = vmatpush1.bf16.msra.mxu0 %v104
  %627 = vmatprep.subr.bf16.mxu0 %v107
  %628 = vmatpush1.bf16.msra.mxu0 %v106
  %629 = vmatprep.subr.bf16.mxu0 %v109
  %630 = vmatpush1.bf16.msra.mxu0 %v108
  %631 = vmatprep.subr.bf16.mxu0 %v111
  %632 = vmatpush1.bf16.msra.mxu0 %v110
  %633 = vmatprep.subr.bf16.mxu0 0
  %634 = vmatpush1.bf16.msra.mxu0 0
  %635 = vmatprep.subr.bf16.mxu0 0
  %636 = vmatpush1.bf16.msra.mxu0 0
  %637 = vmatprep.subr.bf16.mxu0 0
  %638 = vmatpush1.bf16.msra.mxu0 0
  %639 = vmatprep.subr.bf16.mxu0 0
  %640 = vmatpush1.bf16.msra.mxu0 0
  %641 = vmatprep.subr.bf16.mxu0 0
  %642 = vmatpush1.bf16.msra.mxu0 0
  %643 = vmatprep.subr.bf16.mxu0 0
  %644 = vmatpush1.bf16.msra.mxu0 0
  %645 = vmatprep.subr.bf16.mxu0 0
  %646 = vmatpush1.bf16.msra.mxu0 0
  %647 = vmatprep.subr.bf16.mxu0 0
  %648 = vmatpush1.bf16.msra.mxu0 0
  %649 = vmatprep.subr.bf16.mxu0 0
  %650 = vmatpush1.bf16.msra.mxu0 0
  %651 = vmatprep.subr.bf16.mxu0 0
  %652 = vmatpush1.bf16.msra.mxu0 0
  %653 = vmatprep.subr.bf16.mxu0 0
  %654 = vmatpush1.bf16.msra.mxu0 0
  %655 = vmatprep.subr.bf16.mxu0 0
  %656 = vmatpush1.bf16.msra.mxu0 0
  %657 = vmatprep.mubr.bf16.mxu0 0
  %658 = vmatmul.mubr.bf16.gmra.mrb[0].mxu0 %v623
  %v659 = vpop.f32.mrb[0].mxu0
  %v660 = vadd.f32 0.0, %v659
  %v661 = vpop.f32.mrb[0].mxu0
  %v662 = vadd.f32 0.0, %v661
  %v663 = vpop.f32.mrb[0].mxu0
  %v664 = vpop.f32.mrb[0].mxu0
  %665 = vdwg.mxu0
  %s666 = scalar_lea.vmem %s0, 2
  %v667 = vld [vmem:[%s666] sm:$0x1]
  %v669 = vsel %vm178, %v667, 0
  %671 = vmatprep.subr.bf16.mxu0 0
  %672 = vmatpush1.bf16.msra.mxu0 %v176
  %673 = vmatprep.subr.bf16.mxu0 0
  %674 = vmatpush1.bf16.msra.mxu0 0
  %675 = vmatprep.subr.bf16.mxu0 0
  %676 = vmatpush1.bf16.msra.mxu0 0
  %677 = vmatprep.subr.bf16.mxu0 0
  %678 = vmatpush1.bf16.msra.mxu0 0
  %679 = vmatprep.subr.bf16.mxu0 0
  %680 = vmatpush1.bf16.msra.mxu0 0
  %681 = vmatprep.subr.bf16.mxu0 0
  %682 = vmatpush1.bf16.msra.mxu0 0
  %683 = vmatprep.subr.bf16.mxu0 0
  %684 = vmatpush1.bf16.msra.mxu0 0
  %685 = vmatprep.subr.bf16.mxu0 0
  %686 = vmatpush1.bf16.msra.mxu0 0
  %687 = vmatprep.subr.bf16.mxu0 0
  %688 = vmatpush1.bf16.msra.mxu0 0
  %689 = vmatprep.subr.bf16.mxu0 0
  %690 = vmatpush1.bf16.msra.mxu0 0
  %691 = vmatprep.subr.bf16.mxu0 0
  %692 = vmatpush1.bf16.msra.mxu0 0
  %693 = vmatprep.subr.bf16.mxu0 0
  %694 = vmatpush1.bf16.msra.mxu0 0
  %695 = vmatprep.subr.bf16.mxu0 0
  %696 = vmatpush1.bf16.msra.mxu0 0
  %697 = vmatprep.subr.bf16.mxu0 0
  %698 = vmatpush1.bf16.msra.mxu0 0
  %699 = vmatprep.subr.bf16.mxu0 0
  %700 = vmatpush1.bf16.msra.mxu0 0
  %701 = vmatprep.subr.bf16.mxu0 0
  %702 = vmatpush1.bf16.msra.mxu0 0
  %703 = vmatprep.mubr.bf16.mxu0 0
  %704 = vmatmul.mubr.bf16.gmra.mrb[0].mxu0 %v669
  %v705 = vpop.f32.mrb[0].mxu0
  %v706 = vadd.f32 %v170, %v705
  %v707 = vpop.f32.mrb[0].mxu0
  %v708 = vpop.f32.mrb[0].mxu0
  %v709 = vpop.f32.mrb[0].mxu0
  %710 = vdwg.mxu0
  %s711 = scalar_lea.vmem %s43, 5
  %v712 = vld [vmem:[%s711] sm:$0x1]
  %v714 = vsel %vm178, %v712, 0
  %716 = vmatprep.subr.bf16.mxu0 0
  %717 = vmatpush1.bf16.msra.mxu0 %v234
  %718 = vmatprep.subr.bf16.mxu0 0
  %719 = vmatpush1.bf16.msra.mxu0 0
  %720 = vmatprep.subr.bf16.mxu0 0
  %721 = vmatpush1.bf16.msra.mxu0 0
  %722 = vmatprep.subr.bf16.mxu0 0
  %723 = vmatpush1.bf16.msra.mxu0 0
  %724 = vmatprep.subr.bf16.mxu0 0
  %725 = vmatpush1.bf16.msra.mxu0 0
  %726 = vmatprep.subr.bf16.mxu0 0
  %727 = vmatpush1.bf16.msra.mxu0 0
  %728 = vmatprep.subr.bf16.mxu0 0
  %729 = vmatpush1.bf16.msra.mxu0 0
  %730 = vmatprep.subr.bf16.mxu0 0
  %731 = vmatpush1.bf16.msra.mxu0 0
  %732 = vmatprep.subr.bf16.mxu0 0
  %733 = vmatpush1.bf16.msra.mxu0 0
  %734 = vmatprep.subr.bf16.mxu0 0
  %735 = vmatpush1.bf16.msra.mxu0 0
  %736 = vmatprep.subr.bf16.mxu0 0
  %737 = vmatpush1.bf16.msra.mxu0 0
  %738 = vmatprep.subr.bf16.mxu0 0
  %739 = vmatpush1.bf16.msra.mxu0 0
  %740 = vmatprep.subr.bf16.mxu0 0
  %741 = vmatpush1.bf16.msra.mxu0 0
  %742 = vmatprep.subr.bf16.mxu0 0
  %743 = vmatpush1.bf16.msra.mxu0 0
  %744 = vmatprep.subr.bf16.mxu0 0
  %745 = vmatpush1.bf16.msra.mxu0 0
  %746 = vmatprep.subr.bf16.mxu0 0
  %747 = vmatpush1.bf16.msra.mxu0 0
  %748 = vmatprep.mubr.bf16.mxu0 0
  %749 = vmatmul.mubr.bf16.gmra.mrb[0].mxu0 %v714
  %v750 = vpop.f32.mrb[0].mxu0
  %v751 = vadd.f32 %v228, %v750
  %v752 = vpop.f32.mrb[0].mxu0
  %v753 = vpop.f32.mrb[0].mxu0
  %v754 = vpop.f32.mrb[0].mxu0
  %755 = vdwg.mxu0
  %v756 = vadd.f32 %v660, %v706
  %v757 = vadd.f32 %v662, %v751
  %v758 = vxor.u32 %v756, 2147483648
  %v759 = vmul.f32 %v758, 1.442695
  %v760 = vpow.pop %v759
  %v761 = vadd.f32 %v760, 1.0
  %v762 = vrcp.pop %v761
  %v763 = vmul.f32 1.0, %v762
  %v764 = vtanh.pop %v756
  %v765 = vmul.f32 %v763, %v539
  %767 = vrot.lane.b32.xlu0 %v764, 64
  %v768 = vpop.permute.xlu0 %767
  %v770 = vmul.f32 %v763, %v768
  %772 = vrot.lane.b32.xlu0 %v770, 32
  %v773 = vpop.permute.xlu0 %772
  %v775 = vadd.f32 %v765, %v773
  %v776 = vtanh.pop %v775
  %778 = vrot.lane.b32.xlu0 %v776, 64
  %v779 = vpop.permute.xlu0 %778
  %v781 = vmul.f32 %v763, %v779
  %v782 = vxor.u32 %v757, 2147483648
  %v783 = vmul.f32 %v782, 1.442695
  %v784 = vpow.pop %v783
  %v785 = vadd.f32 %v784, 1.0
  %v786 = vrcp.pop %v785
  %v787 = vmul.f32 1.0, %v786
  %v788 = vtanh.pop %v757
  %v789 = vmul.f32 %v787, %v563
  %791 = vrot.lane.b32.xlu0 %v788, 64
  %v792 = vpop.permute.xlu0 %791
  %v794 = vmul.f32 %v787, %v792
  %796 = vrot.lane.b32.xlu0 %v794, 32
  %v797 = vpop.permute.xlu0 %796
  %v799 = vadd.f32 %v789, %v797
  %v800 = vtanh.pop %v799
  %802 = vrot.lane.b32.xlu0 %v800, 64
  %v803 = vpop.permute.xlu0 %802
  %v805 = vmul.f32 %v787, %v803
  %v806 = vpack.c.bf16 %v781, %v781
  %v809 = vunpack.c.l.s4 1966171168
  %v810 = vunpack.c.0.s8 %v809
  %v811 = vlaneseq
  %v812 = vshrl.u32 %v811, 7
  %v813 = vsub.s32 %v810, %v812
  %v814 = vrot.slane %v806, %v813
  %v816 = vunpack.c.l.s4 1966171168
  %v817 = vunpack.c.0.s8 %v816
  %v818 = vlaneseq
  %v819 = vshrl.u32 %v818, 7
  %v820 = vsub.s32 %v817, %v819
  %v821 = vrot.slane %v814, %v820
  %822 = vrot.lane.b32.xlu0 %v821, 32
  %v823 = vpop.permute.xlu0 %822
  %s825 = scalar_lea.vmem %s5, 2
  %826 = vst.msk [vmem:[%s825] sm:$0x1] %vm352, %v823
  %v827 = vpack.c.bf16 %v805, %v805
  %v830 = vunpack.c.l.s4 1966171168
  %v831 = vunpack.c.0.s8 %v830
  %v832 = vlaneseq
  %v833 = vshrl.u32 %v832, 7
  %v834 = vsub.s32 %v831, %v833
  %v835 = vrot.slane %v827, %v834
  %v837 = vunpack.c.l.s4 1966171168
  %v838 = vunpack.c.0.s8 %v837
  %v839 = vlaneseq
  %v840 = vshrl.u32 %v839, 7
  %v841 = vsub.s32 %v838, %v840
  %v842 = vrot.slane %v835, %v841
  %843 = vrot.lane.b32.xlu0 %v842, 32
  %v844 = vpop.permute.xlu0 %843
  %s846 = scalar_lea.vmem %s50, 5
  %847 = vst.msk [vmem:[%s846] sm:$0x1] %vm352, %v844
  %849 = vrot.lane.b32.xlu0 %v781, 32
  %v850 = vpop.permute.xlu0 %849
  %853 = vrot.lane.b32.xlu0 %v805, 64
  %v854 = vpop.permute.xlu0 %853
  %v856 = vsel %vm383, %v850, %v854
  %v857 = vpack.c.bf16 %v856, %v856
  %v859 = vsel %vm120, %v857, 0
  %861 = vmatprep.subr.bf16.mxu0 %v105
  %862 = vmatpush1.bf16.msra.mxu0 %v104
  %863 = vmatprep.subr.bf16.mxu0 %v107
  %864 = vmatpush1.bf16.msra.mxu0 %v106
  %865 = vmatprep.subr.bf16.mxu0 %v109
  %866 = vmatpush1.bf16.msra.mxu0 %v108
  %867 = vmatprep.subr.bf16.mxu0 %v111
  %868 = vmatpush1.bf16.msra.mxu0 %v110
  %869 = vmatprep.subr.bf16.mxu0 0
  %870 = vmatpush1.bf16.msra.mxu0 0
  %871 = vmatprep.subr.bf16.mxu0 0
  %872 = vmatpush1.bf16.msra.mxu0 0
  %873 = vmatprep.subr.bf16.mxu0 0
  %874 = vmatpush1.bf16.msra.mxu0 0
  %875 = vmatprep.subr.bf16.mxu0 0
  %876 = vmatpush1.bf16.msra.mxu0 0
  %877 = vmatprep.subr.bf16.mxu0 0
  %878 = vmatpush1.bf16.msra.mxu0 0
  %879 = vmatprep.subr.bf16.mxu0 0
  %880 = vmatpush1.bf16.msra.mxu0 0
  %881 = vmatprep.subr.bf16.mxu0 0
  %882 = vmatpush1.bf16.msra.mxu0 0
  %883 = vmatprep.subr.bf16.mxu0 0
  %884 = vmatpush1.bf16.msra.mxu0 0
  %885 = vmatprep.subr.bf16.mxu0 0
  %886 = vmatpush1.bf16.msra.mxu0 0
  %887 = vmatprep.subr.bf16.mxu0 0
  %888 = vmatpush1.bf16.msra.mxu0 0
  %889 = vmatprep.subr.bf16.mxu0 0
  %890 = vmatpush1.bf16.msra.mxu0 0
  %891 = vmatprep.subr.bf16.mxu0 0
  %892 = vmatpush1.bf16.msra.mxu0 0
  %893 = vmatprep.mubr.bf16.mxu0 0
  %894 = vmatmul.mubr.bf16.gmra.mrb[0].mxu0 %v859
  %v895 = vpop.f32.mrb[0].mxu0
  %v896 = vadd.f32 0.0, %v895
  %v897 = vpop.f32.mrb[0].mxu0
  %v898 = vadd.f32 0.0, %v897
  %v899 = vpop.f32.mrb[0].mxu0
  %v900 = vpop.f32.mrb[0].mxu0
  %901 = vdwg.mxu0
  %s902 = scalar_lea.vmem %s0, 3
  %v903 = vld [vmem:[%s902] sm:$0x1]
  %v905 = vsel %vm178, %v903, 0
  %907 = vmatprep.subr.bf16.mxu0 0
  %908 = vmatpush1.bf16.msra.mxu0 %v176
  %909 = vmatprep.subr.bf16.mxu0 0
  %910 = vmatpush1.bf16.msra.mxu0 0
  %911 = vmatprep.subr.bf16.mxu0 0
  %912 = vmatpush1.bf16.msra.mxu0 0
  %913 = vmatprep.subr.bf16.mxu0 0
  %914 = vmatpush1.bf16.msra.mxu0 0
  %915 = vmatprep.subr.bf16.mxu0 0
  %916 = vmatpush1.bf16.msra.mxu0 0
  %917 = vmatprep.subr.bf16.mxu0 0
  %918 = vmatpush1.bf16.msra.mxu0 0
  %919 = vmatprep.subr.bf16.mxu0 0
  %920 = vmatpush1.bf16.msra.mxu0 0
  %921 = vmatprep.subr.bf16.mxu0 0
  %922 = vmatpush1.bf16.msra.mxu0 0
  %923 = vmatprep.subr.bf16.mxu0 0
  %924 = vmatpush1.bf16.msra.mxu0 0
  %925 = vmatprep.subr.bf16.mxu0 0
  %926 = vmatpush1.bf16.msra.mxu0 0
  %927 = vmatprep.subr.bf16.mxu0 0
  %928 = vmatpush1.bf16.msra.mxu0 0
  %929 = vmatprep.subr.bf16.mxu0 0
  %930 = vmatpush1.bf16.msra.mxu0 0
  %931 = vmatprep.subr.bf16.mxu0 0
  %932 = vmatpush1.bf16.msra.mxu0 0
  %933 = vmatprep.subr.bf16.mxu0 0
  %934 = vmatpush1.bf16.msra.mxu0 0
  %935 = vmatprep.subr.bf16.mxu0 0
  %936 = vmatpush1.bf16.msra.mxu0 0
  %937 = vmatprep.subr.bf16.mxu0 0
  %938 = vmatpush1.bf16.msra.mxu0 0
  %939 = vmatprep.mubr.bf16.mxu0 0
  %940 = vmatmul.mubr.bf16.gmra.mrb[0].mxu0 %v905
  %v941 = vpop.f32.mrb[0].mxu0
  %v942 = vadd.f32 %v170, %v941
  %v943 = vpop.f32.mrb[0].mxu0
  %v944 = vpop.f32.mrb[0].mxu0
  %v945 = vpop.f32.mrb[0].mxu0
  %946 = vdwg.mxu0
  %s947 = scalar_lea.vmem %s43, 4
  %v948 = vld [vmem:[%s947] sm:$0x1]
  %v950 = vsel %vm178, %v948, 0
  %952 = vmatprep.subr.bf16.mxu0 0
  %953 = vmatpush1.bf16.msra.mxu0 %v234
  %954 = vmatprep.subr.bf16.mxu0 0
  %955 = vmatpush1.bf16.msra.mxu0 0
  %956 = vmatprep.subr.bf16.mxu0 0
  %957 = vmatpush1.bf16.msra.mxu0 0
  %958 = vmatprep.subr.bf16.mxu0 0
  %959 = vmatpush1.bf16.msra.mxu0 0
  %960 = vmatprep.subr.bf16.mxu0 0
  %961 = vmatpush1.bf16.msra.mxu0 0
  %962 = vmatprep.subr.bf16.mxu0 0
  %963 = vmatpush1.bf16.msra.mxu0 0
  %964 = vmatprep.subr.bf16.mxu0 0
  %965 = vmatpush1.bf16.msra.mxu0 0
  %966 = vmatprep.subr.bf16.mxu0 0
  %967 = vmatpush1.bf16.msra.mxu0 0
  %968 = vmatprep.subr.bf16.mxu0 0
  %969 = vmatpush1.bf16.msra.mxu0 0
  %970 = vmatprep.subr.bf16.mxu0 0
  %971 = vmatpush1.bf16.msra.mxu0 0
  %972 = vmatprep.subr.bf16.mxu0 0
  %973 = vmatpush1.bf16.msra.mxu0 0
  %974 = vmatprep.subr.bf16.mxu0 0
  %975 = vmatpush1.bf16.msra.mxu0 0
  %976 = vmatprep.subr.bf16.mxu0 0
  %977 = vmatpush1.bf16.msra.mxu0 0
  %978 = vmatprep.subr.bf16.mxu0 0
  %979 = vmatpush1.bf16.msra.mxu0 0
  %980 = vmatprep.subr.bf16.mxu0 0
  %981 = vmatpush1.bf16.msra.mxu0 0
  %982 = vmatprep.subr.bf16.mxu0 0
  %983 = vmatpush1.bf16.msra.mxu0 0
  %984 = vmatprep.mubr.bf16.mxu0 0
  %985 = vmatmul.mubr.bf16.gmra.mrb[0].mxu0 %v950
  %v986 = vpop.f32.mrb[0].mxu0
  %v987 = vadd.f32 %v228, %v986
  %v988 = vpop.f32.mrb[0].mxu0
  %v989 = vpop.f32.mrb[0].mxu0
  %v990 = vpop.f32.mrb[0].mxu0
  %991 = vdwg.mxu0
  %v992 = vadd.f32 %v896, %v942
  %v993 = vadd.f32 %v898, %v987
  %v994 = vxor.u32 %v992, 2147483648
  %v995 = vmul.f32 %v994, 1.442695
  %v996 = vpow.pop %v995
  %v997 = vadd.f32 %v996, 1.0
  %v998 = vrcp.pop %v997
  %v999 = vmul.f32 1.0, %v998
  %v1000 = vtanh.pop %v992
  %v1001 = vmul.f32 %v999, %v775
  %1003 = vrot.lane.b32.xlu0 %v1000, 64
  %v1004 = vpop.permute.xlu0 %1003
  %v1006 = vmul.f32 %v999, %v1004
  %1008 = vrot.lane.b32.xlu0 %v1006, 32
  %v1009 = vpop.permute.xlu0 %1008
  %v1011 = vadd.f32 %v1001, %v1009
  %v1012 = vtanh.pop %v1011
  %1014 = vrot.lane.b32.xlu0 %v1012, 64
  %v1015 = vpop.permute.xlu0 %1014
  %v1017 = vmul.f32 %v999, %v1015
  %v1018 = vxor.u32 %v993, 2147483648
  %v1019 = vmul.f32 %v1018, 1.442695
  %v1020 = vpow.pop %v1019
  %v1021 = vadd.f32 %v1020, 1.0
  %v1022 = vrcp.pop %v1021
  %v1023 = vmul.f32 1.0, %v1022
  %v1024 = vtanh.pop %v993
  %v1025 = vmul.f32 %v1023, %v799
  %1027 = vrot.lane.b32.xlu0 %v1024, 64
  %v1028 = vpop.permute.xlu0 %1027
  %v1030 = vmul.f32 %v1023, %v1028
  %1032 = vrot.lane.b32.xlu0 %v1030, 32
  %v1033 = vpop.permute.xlu0 %1032
  %v1035 = vadd.f32 %v1025, %v1033
  %v1036 = vtanh.pop %v1035
  %1038 = vrot.lane.b32.xlu0 %v1036, 64
  %v1039 = vpop.permute.xlu0 %1038
  %v1041 = vmul.f32 %v1023, %v1039
  %v1042 = vpack.c.bf16 %v1017, %v1017
  %v1045 = vunpack.c.l.s4 1966171168
  %v1046 = vunpack.c.0.s8 %v1045
  %v1047 = vlaneseq
  %v1048 = vshrl.u32 %v1047, 7
  %v1049 = vsub.s32 %v1046, %v1048
  %v1050 = vrot.slane %v1042, %v1049
  %v1052 = vunpack.c.l.s4 1966171168
  %v1053 = vunpack.c.0.s8 %v1052
  %v1054 = vlaneseq
  %v1055 = vshrl.u32 %v1054, 7
  %v1056 = vsub.s32 %v1053, %v1055
  %v1057 = vrot.slane %v1050, %v1056
  %1058 = vrot.lane.b32.xlu0 %v1057, 32
  %v1059 = vpop.permute.xlu0 %1058
  %s1061 = scalar_lea.vmem %s5, 3
  %1062 = vst.msk [vmem:[%s1061] sm:$0x1] %vm352, %v1059
  %v1063 = vpack.c.bf16 %v1041, %v1041
  %v1066 = vunpack.c.l.s4 1966171168
  %v1067 = vunpack.c.0.s8 %v1066
  %v1068 = vlaneseq
  %v1069 = vshrl.u32 %v1068, 7
  %v1070 = vsub.s32 %v1067, %v1069
  %v1071 = vrot.slane %v1063, %v1070
  %v1073 = vunpack.c.l.s4 1966171168
  %v1074 = vunpack.c.0.s8 %v1073
  %v1075 = vlaneseq
  %v1076 = vshrl.u32 %v1075, 7
  %v1077 = vsub.s32 %v1074, %v1076
  %v1078 = vrot.slane %v1071, %v1077
  %1079 = vrot.lane.b32.xlu0 %v1078, 32
  %v1080 = vpop.permute.xlu0 %1079
  %s1082 = scalar_lea.vmem %s50, 4
  %1083 = vst.msk [vmem:[%s1082] sm:$0x1] %vm352, %v1080
  %1085 = vrot.lane.b32.xlu0 %v1017, 32
  %v1086 = vpop.permute.xlu0 %1085
  %1089 = vrot.lane.b32.xlu0 %v1041, 64
  %v1090 = vpop.permute.xlu0 %1089
  %v1092 = vsel %vm383, %v1086, %v1090
  %v1093 = vpack.c.bf16 %v1092, %v1092
  %v1095 = vsel %vm120, %v1093, 0
  %1097 = vmatprep.subr.bf16.mxu0 %v105
  %1098 = vmatpush1.bf16.msra.mxu0 %v104
  %1099 = vmatprep.subr.bf16.mxu0 %v107
  %1100 = vmatpush1.bf16.msra.mxu0 %v106
  %1101 = vmatprep.subr.bf16.mxu0 %v109
  %1102 = vmatpush1.bf16.msra.mxu0 %v108
  %1103 = vmatprep.subr.bf16.mxu0 %v111
  %1104 = vmatpush1.bf16.msra.mxu0 %v110
  %1105 = vmatprep.subr.bf16.mxu0 0
  %1106 = vmatpush1.bf16.msra.mxu0 0
  %1107 = vmatprep.subr.bf16.mxu0 0
  %1108 = vmatpush1.bf16.msra.mxu0 0
  %1109 = vmatprep.subr.bf16.mxu0 0
  %1110 = vmatpush1.bf16.msra.mxu0 0
  %1111 = vmatprep.subr.bf16.mxu0 0
  %1112 = vmatpush1.bf16.msra.mxu0 0
  %1113 = vmatprep.subr.bf16.mxu0 0
  %1114 = vmatpush1.bf16.msra.mxu0 0
  %1115 = vmatprep.subr.bf16.mxu0 0
  %1116 = vmatpush1.bf16.msra.mxu0 0
  %1117 = vmatprep.subr.bf16.mxu0 0
  %1118 = vmatpush1.bf16.msra.mxu0 0
  %1119 = vmatprep.subr.bf16.mxu0 0
  %1120 = vmatpush1.bf16.msra.mxu0 0
  %1121 = vmatprep.subr.bf16.mxu0 0
  %1122 = vmatpush1.bf16.msra.mxu0 0
  %1123 = vmatprep.subr.bf16.mxu0 0
  %1124 = vmatpush1.bf16.msra.mxu0 0
  %1125 = vmatprep.subr.bf16.mxu0 0
  %1126 = vmatpush1.bf16.msra.mxu0 0
  %1127 = vmatprep.subr.bf16.mxu0 0
  %1128 = vmatpush1.bf16.msra.mxu0 0
  %1129 = vmatprep.mubr.bf16.mxu0 0
  %1130 = vmatmul.mubr.bf16.gmra.mrb[0].mxu0 %v1095
  %v1131 = vpop.f32.mrb[0].mxu0
  %v1132 = vadd.f32 0.0, %v1131
  %v1133 = vpop.f32.mrb[0].mxu0
  %v1134 = vadd.f32 0.0, %v1133
  %v1135 = vpop.f32.mrb[0].mxu0
  %v1136 = vpop.f32.mrb[0].mxu0
  %1137 = vdwg.mxu0
  %s1138 = scalar_lea.vmem %s0, 4
  %v1139 = vld [vmem:[%s1138] sm:$0x1]
  %v1141 = vsel %vm178, %v1139, 0
  %1143 = vmatprep.subr.bf16.mxu0 0
  %1144 = vmatpush1.bf16.msra.mxu0 %v176
  %1145 = vmatprep.subr.bf16.mxu0 0
  %1146 = vmatpush1.bf16.msra.mxu0 0
  %1147 = vmatprep.subr.bf16.mxu0 0
  %1148 = vmatpush1.bf16.msra.mxu0 0
  %1149 = vmatprep.subr.bf16.mxu0 0
  %1150 = vmatpush1.bf16.msra.mxu0 0
  %1151 = vmatprep.subr.bf16.mxu0 0
  %1152 = vmatpush1.bf16.msra.mxu0 0
  %1153 = vmatprep.subr.bf16.mxu0 0
  %1154 = vmatpush1.bf16.msra.mxu0 0
  %1155 = vmatprep.subr.bf16.mxu0 0
  %1156 = vmatpush1.bf16.msra.mxu0 0
  %1157 = vmatprep.subr.bf16.mxu0 0
  %1158 = vmatpush1.bf16.msra.mxu0 0
  %1159 = vmatprep.subr.bf16.mxu0 0
  %1160 = vmatpush1.bf16.msra.mxu0 0
  %1161 = vmatprep.subr.bf16.mxu0 0
  %1162 = vmatpush1.bf16.msra.mxu0 0
  %1163 = vmatprep.subr.bf16.mxu0 0
  %1164 = vmatpush1.bf16.msra.mxu0 0
  %1165 = vmatprep.subr.bf16.mxu0 0
  %1166 = vmatpush1.bf16.msra.mxu0 0
  %1167 = vmatprep.subr.bf16.mxu0 0
  %1168 = vmatpush1.bf16.msra.mxu0 0
  %1169 = vmatprep.subr.bf16.mxu0 0
  %1170 = vmatpush1.bf16.msra.mxu0 0
  %1171 = vmatprep.subr.bf16.mxu0 0
  %1172 = vmatpush1.bf16.msra.mxu0 0
  %1173 = vmatprep.subr.bf16.mxu0 0
  %1174 = vmatpush1.bf16.msra.mxu0 0
  %1175 = vmatprep.mubr.bf16.mxu0 0
  %1176 = vmatmul.mubr.bf16.gmra.mrb[0].mxu0 %v1141
  %v1177 = vpop.f32.mrb[0].mxu0
  %v1178 = vadd.f32 %v170, %v1177
  %v1179 = vpop.f32.mrb[0].mxu0
  %v1180 = vpop.f32.mrb[0].mxu0
  %v1181 = vpop.f32.mrb[0].mxu0
  %1182 = vdwg.mxu0
  %s1183 = scalar_lea.vmem %s43, 3
  %v1184 = vld [vmem:[%s1183] sm:$0x1]
  %v1186 = vsel %vm178, %v1184, 0
  %1188 = vmatprep.subr.bf16.mxu0 0
  %1189 = vmatpush1.bf16.msra.mxu0 %v234
  %1190 = vmatprep.subr.bf16.mxu0 0
  %1191 = vmatpush1.bf16.msra.mxu0 0
  %1192 = vmatprep.subr.bf16.mxu0 0
  %1193 = vmatpush1.bf16.msra.mxu0 0
  %1194 = vmatprep.subr.bf16.mxu0 0
  %1195 = vmatpush1.bf16.msra.mxu0 0
  %1196 = vmatprep.subr.bf16.mxu0 0
  %1197 = vmatpush1.bf16.msra.mxu0 0
  %1198 = vmatprep.subr.bf16.mxu0 0
  %1199 = vmatpush1.bf16.msra.mxu0 0
  %1200 = vmatprep.subr.bf16.mxu0 0
  %1201 = vmatpush1.bf16.msra.mxu0 0
  %1202 = vmatprep.subr.bf16.mxu0 0
  %1203 = vmatpush1.bf16.msra.mxu0 0
  %1204 = vmatprep.subr.bf16.mxu0 0
  %1205 = vmatpush1.bf16.msra.mxu0 0
  %1206 = vmatprep.subr.bf16.mxu0 0
  %1207 = vmatpush1.bf16.msra.mxu0 0
  %1208 = vmatprep.subr.bf16.mxu0 0
  %1209 = vmatpush1.bf16.msra.mxu0 0
  %1210 = vmatprep.subr.bf16.mxu0 0
  %1211 = vmatpush1.bf16.msra.mxu0 0
  %1212 = vmatprep.subr.bf16.mxu0 0
  %1213 = vmatpush1.bf16.msra.mxu0 0
  %1214 = vmatprep.subr.bf16.mxu0 0
  %1215 = vmatpush1.bf16.msra.mxu0 0
  %1216 = vmatprep.subr.bf16.mxu0 0
  %1217 = vmatpush1.bf16.msra.mxu0 0
  %1218 = vmatprep.subr.bf16.mxu0 0
  %1219 = vmatpush1.bf16.msra.mxu0 0
  %1220 = vmatprep.mubr.bf16.mxu0 0
  %1221 = vmatmul.mubr.bf16.gmra.mrb[0].mxu0 %v1186
  %v1222 = vpop.f32.mrb[0].mxu0
  %v1223 = vadd.f32 %v228, %v1222
  %v1224 = vpop.f32.mrb[0].mxu0
  %v1225 = vpop.f32.mrb[0].mxu0
  %v1226 = vpop.f32.mrb[0].mxu0
  %1227 = vdwg.mxu0
  %v1228 = vadd.f32 %v1132, %v1178
  %v1229 = vadd.f32 %v1134, %v1223
  %v1230 = vxor.u32 %v1228, 2147483648
  %v1231 = vmul.f32 %v1230, 1.442695
  %v1232 = vpow.pop %v1231
  %v1233 = vadd.f32 %v1232, 1.0
  %v1234 = vrcp.pop %v1233
  %v1235 = vmul.f32 1.0, %v1234
  %v1236 = vtanh.pop %v1228
  %v1237 = vmul.f32 %v1235, %v1011
  %1239 = vrot.lane.b32.xlu0 %v1236, 64
  %v1240 = vpop.permute.xlu0 %1239
  %v1242 = vmul.f32 %v1235, %v1240
  %1244 = vrot.lane.b32.xlu0 %v1242, 32
  %v1245 = vpop.permute.xlu0 %1244
  %v1247 = vadd.f32 %v1237, %v1245
  %v1248 = vtanh.pop %v1247
  %1250 = vrot.lane.b32.xlu0 %v1248, 64
  %v1251 = vpop.permute.xlu0 %1250
  %v1253 = vmul.f32 %v1235, %v1251
  %v1254 = vxor.u32 %v1229, 2147483648
  %v1255 = vmul.f32 %v1254, 1.442695
  %v1256 = vpow.pop %v1255
  %v1257 = vadd.f32 %v1256, 1.0
  %v1258 = vrcp.pop %v1257
  %v1259 = vmul.f32 1.0, %v1258
  %v1260 = vtanh.pop %v1229
  %v1261 = vmul.f32 %v1259, %v1035
  %1263 = vrot.lane.b32.xlu0 %v1260, 64
  %v1264 = vpop.permute.xlu0 %1263
  %v1266 = vmul.f32 %v1259, %v1264
  %1268 = vrot.lane.b32.xlu0 %v1266, 32
  %v1269 = vpop.permute.xlu0 %1268
  %v1271 = vadd.f32 %v1261, %v1269
  %v1272 = vtanh.pop %v1271
  %1274 = vrot.lane.b32.xlu0 %v1272, 64
  %v1275 = vpop.permute.xlu0 %1274
  %v1277 = vmul.f32 %v1259, %v1275
  %v1278 = vpack.c.bf16 %v1253, %v1253
  %v1281 = vunpack.c.l.s4 1966171168
  %v1282 = vunpack.c.0.s8 %v1281
  %v1283 = vlaneseq
  %v1284 = vshrl.u32 %v1283, 7
  %v1285 = vsub.s32 %v1282, %v1284
  %v1286 = vrot.slane %v1278, %v1285
  %v1288 = vunpack.c.l.s4 1966171168
  %v1289 = vunpack.c.0.s8 %v1288
  %v1290 = vlaneseq
  %v1291 = vshrl.u32 %v1290, 7
  %v1292 = vsub.s32 %v1289, %v1291
  %v1293 = vrot.slane %v1286, %v1292
  %1294 = vrot.lane.b32.xlu0 %v1293, 32
  %v1295 = vpop.permute.xlu0 %1294
  %s1297 = scalar_lea.vmem %s5, 4
  %1298 = vst.msk [vmem:[%s1297] sm:$0x1] %vm352, %v1295
  %v1299 = vpack.c.bf16 %v1277, %v1277
  %v1302 = vunpack.c.l.s4 1966171168
  %v1303 = vunpack.c.0.s8 %v1302
  %v1304 = vlaneseq
  %v1305 = vshrl.u32 %v1304, 7
  %v1306 = vsub.s32 %v1303, %v1305
  %v1307 = vrot.slane %v1299, %v1306
  %v1309 = vunpack.c.l.s4 1966171168
  %v1310 = vunpack.c.0.s8 %v1309
  %v1311 = vlaneseq
  %v1312 = vshrl.u32 %v1311, 7
  %v1313 = vsub.s32 %v1310, %v1312
  %v1314 = vrot.slane %v1307, %v1313
  %1315 = vrot.lane.b32.xlu0 %v1314, 32
  %v1316 = vpop.permute.xlu0 %1315
  %s1318 = scalar_lea.vmem %s50, 3
  %1319 = vst.msk [vmem:[%s1318] sm:$0x1] %vm352, %v1316
  %1321 = vrot.lane.b32.xlu0 %v1253, 32
  %v1322 = vpop.permute.xlu0 %1321
  %1325 = vrot.lane.b32.xlu0 %v1277, 64
  %v1326 = vpop.permute.xlu0 %1325
  %v1328 = vsel %vm383, %v1322, %v1326
  %v1329 = vpack.c.bf16 %v1328, %v1328
  %v1331 = vsel %vm120, %v1329, 0
  %1333 = vmatprep.subr.bf16.mxu0 %v105
  %1334 = vmatpush1.bf16.msra.mxu0 %v104
  %1335 = vmatprep.subr.bf16.mxu0 %v107
  %1336 = vmatpush1.bf16.msra.mxu0 %v106
  %1337 = vmatprep.subr.bf16.mxu0 %v109
  %1338 = vmatpush1.bf16.msra.mxu0 %v108
  %1339 = vmatprep.subr.bf16.mxu0 %v111
  %1340 = vmatpush1.bf16.msra.mxu0 %v110
  %1341 = vmatprep.subr.bf16.mxu0 0
  %1342 = vmatpush1.bf16.msra.mxu0 0
  %1343 = vmatprep.subr.bf16.mxu0 0
  %1344 = vmatpush1.bf16.msra.mxu0 0
  %1345 = vmatprep.subr.bf16.mxu0 0
  %1346 = vmatpush1.bf16.msra.mxu0 0
  %1347 = vmatprep.subr.bf16.mxu0 0
  %1348 = vmatpush1.bf16.msra.mxu0 0
  %1349 = vmatprep.subr.bf16.mxu0 0
  %1350 = vmatpush1.bf16.msra.mxu0 0
  %1351 = vmatprep.subr.bf16.mxu0 0
  %1352 = vmatpush1.bf16.msra.mxu0 0
  %1353 = vmatprep.subr.bf16.mxu0 0
  %1354 = vmatpush1.bf16.msra.mxu0 0
  %1355 = vmatprep.subr.bf16.mxu0 0
  %1356 = vmatpush1.bf16.msra.mxu0 0
  %1357 = vmatprep.subr.bf16.mxu0 0
  %1358 = vmatpush1.bf16.msra.mxu0 0
  %1359 = vmatprep.subr.bf16.mxu0 0
  %1360 = vmatpush1.bf16.msra.mxu0 0
  %1361 = vmatprep.subr.bf16.mxu0 0
  %1362 = vmatpush1.bf16.msra.mxu0 0
  %1363 = vmatprep.subr.bf16.mxu0 0
  %1364 = vmatpush1.bf16.msra.mxu0 0
  %1365 = vmatprep.mubr.bf16.mxu0 0
  %1366 = vmatmul.mubr.bf16.gmra.mrb[0].mxu0 %v1331
  %v1367 = vpop.f32.mrb[0].mxu0
  %v1368 = vadd.f32 0.0, %v1367
  %v1369 = vpop.f32.mrb[0].mxu0
  %v1370 = vadd.f32 0.0, %v1369
  %v1371 = vpop.f32.mrb[0].mxu0
  %v1372 = vpop.f32.mrb[0].mxu0
  %1373 = vdwg.mxu0
  %s1374 = scalar_lea.vmem %s0, 5
  %v1375 = vld [vmem:[%s1374] sm:$0x1]
  %v1377 = vsel %vm178, %v1375, 0
  %1379 = vmatprep.subr.bf16.mxu0 0
  %1380 = vmatpush1.bf16.msra.mxu0 %v176
  %1381 = vmatprep.subr.bf16.mxu0 0
  %1382 = vmatpush1.bf16.msra.mxu0 0
  %1383 = vmatprep.subr.bf16.mxu0 0
  %1384 = vmatpush1.bf16.msra.mxu0 0
  %1385 = vmatprep.subr.bf16.mxu0 0
  %1386 = vmatpush1.bf16.msra.mxu0 0
  %1387 = vmatprep.subr.bf16.mxu0 0
  %1388 = vmatpush1.bf16.msra.mxu0 0
  %1389 = vmatprep.subr.bf16.mxu0 0
  %1390 = vmatpush1.bf16.msra.mxu0 0
  %1391 = vmatprep.subr.bf16.mxu0 0
  %1392 = vmatpush1.bf16.msra.mxu0 0
  %1393 = vmatprep.subr.bf16.mxu0 0
  %1394 = vmatpush1.bf16.msra.mxu0 0
  %1395 = vmatprep.subr.bf16.mxu0 0
  %1396 = vmatpush1.bf16.msra.mxu0 0
  %1397 = vmatprep.subr.bf16.mxu0 0
  %1398 = vmatpush1.bf16.msra.mxu0 0
  %1399 = vmatprep.subr.bf16.mxu0 0
  %1400 = vmatpush1.bf16.msra.mxu0 0
  %1401 = vmatprep.subr.bf16.mxu0 0
  %1402 = vmatpush1.bf16.msra.mxu0 0
  %1403 = vmatprep.subr.bf16.mxu0 0
  %1404 = vmatpush1.bf16.msra.mxu0 0
  %1405 = vmatprep.subr.bf16.mxu0 0
  %1406 = vmatpush1.bf16.msra.mxu0 0
  %1407 = vmatprep.subr.bf16.mxu0 0
  %1408 = vmatpush1.bf16.msra.mxu0 0
  %1409 = vmatprep.subr.bf16.mxu0 0
  %1410 = vmatpush1.bf16.msra.mxu0 0
  %1411 = vmatprep.mubr.bf16.mxu0 0
  %1412 = vmatmul.mubr.bf16.gmra.mrb[0].mxu0 %v1377
  %v1413 = vpop.f32.mrb[0].mxu0
  %v1414 = vadd.f32 %v170, %v1413
  %v1415 = vpop.f32.mrb[0].mxu0
  %v1416 = vpop.f32.mrb[0].mxu0
  %v1417 = vpop.f32.mrb[0].mxu0
  %1418 = vdwg.mxu0
  %s1419 = scalar_lea.vmem %s43, 2
  %v1420 = vld [vmem:[%s1419] sm:$0x1]
  %v1422 = vsel %vm178, %v1420, 0
  %1424 = vmatprep.subr.bf16.mxu0 0
  %1425 = vmatpush1.bf16.msra.mxu0 %v234
  %1426 = vmatprep.subr.bf16.mxu0 0
  %1427 = vmatpush1.bf16.msra.mxu0 0
  %1428 = vmatprep.subr.bf16.mxu0 0
  %1429 = vmatpush1.bf16.msra.mxu0 0
  %1430 = vmatprep.subr.bf16.mxu0 0
  %1431 = vmatpush1.bf16.msra.mxu0 0
  %1432 = vmatprep.subr.bf16.mxu0 0
  %1433 = vmatpush1.bf16.msra.mxu0 0
  %1434 = vmatprep.subr.bf16.mxu0 0
  %1435 = vmatpush1.bf16.msra.mxu0 0
  %1436 = vmatprep.subr.bf16.mxu0 0
  %1437 = vmatpush1.bf16.msra.mxu0 0
  %1438 = vmatprep.subr.bf16.mxu0 0
  %1439 = vmatpush1.bf16.msra.mxu0 0
  %1440 = vmatprep.subr.bf16.mxu0 0
  %1441 = vmatpush1.bf16.msra.mxu0 0
  %1442 = vmatprep.subr.bf16.mxu0 0
  %1443 = vmatpush1.bf16.msra.mxu0 0
  %1444 = vmatprep.subr.bf16.mxu0 0
  %1445 = vmatpush1.bf16.msra.mxu0 0
  %1446 = vmatprep.subr.bf16.mxu0 0
  %1447 = vmatpush1.bf16.msra.mxu0 0
  %1448 = vmatprep.subr.bf16.mxu0 0
  %1449 = vmatpush1.bf16.msra.mxu0 0
  %1450 = vmatprep.subr.bf16.mxu0 0
  %1451 = vmatpush1.bf16.msra.mxu0 0
  %1452 = vmatprep.subr.bf16.mxu0 0
  %1453 = vmatpush1.bf16.msra.mxu0 0
  %1454 = vmatprep.subr.bf16.mxu0 0
  %1455 = vmatpush1.bf16.msra.mxu0 0
  %1456 = vmatprep.mubr.bf16.mxu0 0
  %1457 = vmatmul.mubr.bf16.gmra.mrb[0].mxu0 %v1422
  %v1458 = vpop.f32.mrb[0].mxu0
  %v1459 = vadd.f32 %v228, %v1458
  %v1460 = vpop.f32.mrb[0].mxu0
  %v1461 = vpop.f32.mrb[0].mxu0
  %v1462 = vpop.f32.mrb[0].mxu0
  %1463 = vdwg.mxu0
  %v1464 = vadd.f32 %v1368, %v1414
  %v1465 = vadd.f32 %v1370, %v1459
  %v1466 = vxor.u32 %v1464, 2147483648
  %v1467 = vmul.f32 %v1466, 1.442695
  %v1468 = vpow.pop %v1467
  %v1469 = vadd.f32 %v1468, 1.0
  %v1470 = vrcp.pop %v1469
  %v1471 = vmul.f32 1.0, %v1470
  %v1472 = vtanh.pop %v1464
  %v1473 = vmul.f32 %v1471, %v1247
  %1475 = vrot.lane.b32.xlu0 %v1472, 64
  %v1476 = vpop.permute.xlu0 %1475
  %v1478 = vmul.f32 %v1471, %v1476
  %1480 = vrot.lane.b32.xlu0 %v1478, 32
  %v1481 = vpop.permute.xlu0 %1480
  %v1483 = vadd.f32 %v1473, %v1481
  %v1484 = vtanh.pop %v1483
  %1486 = vrot.lane.b32.xlu0 %v1484, 64
  %v1487 = vpop.permute.xlu0 %1486
  %v1489 = vmul.f32 %v1471, %v1487
  %v1490 = vxor.u32 %v1465, 2147483648
  %v1491 = vmul.f32 %v1490, 1.442695
  %v1492 = vpow.pop %v1491
  %v1493 = vadd.f32 %v1492, 1.0
  %v1494 = vrcp.pop %v1493
  %v1495 = vmul.f32 1.0, %v1494
  %v1496 = vtanh.pop %v1465
  %v1497 = vmul.f32 %v1495, %v1271
  %1499 = vrot.lane.b32.xlu0 %v1496, 64
  %v1500 = vpop.permute.xlu0 %1499
  %v1502 = vmul.f32 %v1495, %v1500
  %1504 = vrot.lane.b32.xlu0 %v1502, 32
  %v1505 = vpop.permute.xlu0 %1504
  %v1507 = vadd.f32 %v1497, %v1505
  %v1508 = vtanh.pop %v1507
  %1510 = vrot.lane.b32.xlu0 %v1508, 64
  %v1511 = vpop.permute.xlu0 %1510
  %v1513 = vmul.f32 %v1495, %v1511
  %v1514 = vpack.c.bf16 %v1489, %v1489
  %v1517 = vunpack.c.l.s4 1966171168
  %v1518 = vunpack.c.0.s8 %v1517
  %v1519 = vlaneseq
  %v1520 = vshrl.u32 %v1519, 7
  %v1521 = vsub.s32 %v1518, %v1520
  %v1522 = vrot.slane %v1514, %v1521
  %v1524 = vunpack.c.l.s4 1966171168
  %v1525 = vunpack.c.0.s8 %v1524
  %v1526 = vlaneseq
  %v1527 = vshrl.u32 %v1526, 7
  %v1528 = vsub.s32 %v1525, %v1527
  %v1529 = vrot.slane %v1522, %v1528
  %1530 = vrot.lane.b32.xlu0 %v1529, 32
  %v1531 = vpop.permute.xlu0 %1530
  %s1533 = scalar_lea.vmem %s5, 5
  %1534 = vst.msk [vmem:[%s1533] sm:$0x1] %vm352, %v1531
  %v1535 = vpack.c.bf16 %v1513, %v1513
  %v1538 = vunpack.c.l.s4 1966171168
  %v1539 = vunpack.c.0.s8 %v1538
  %v1540 = vlaneseq
  %v1541 = vshrl.u32 %v1540, 7
  %v1542 = vsub.s32 %v1539, %v1541
  %v1543 = vrot.slane %v1535, %v1542
  %v1545 = vunpack.c.l.s4 1966171168
  %v1546 = vunpack.c.0.s8 %v1545
  %v1547 = vlaneseq
  %v1548 = vshrl.u32 %v1547, 7
  %v1549 = vsub.s32 %v1546, %v1548
  %v1550 = vrot.slane %v1543, %v1549
  %1551 = vrot.lane.b32.xlu0 %v1550, 32
  %v1552 = vpop.permute.xlu0 %1551
  %s1554 = scalar_lea.vmem %s50, 2
  %1555 = vst.msk [vmem:[%s1554] sm:$0x1] %vm352, %v1552
  %1557 = vrot.lane.b32.xlu0 %v1489, 32
  %v1558 = vpop.permute.xlu0 %1557
  %1561 = vrot.lane.b32.xlu0 %v1513, 64
  %v1562 = vpop.permute.xlu0 %1561
  %v1564 = vsel %vm383, %v1558, %v1562
  %v1565 = vpack.c.bf16 %v1564, %v1564
  %v1567 = vsel %vm120, %v1565, 0
  %1569 = vmatprep.subr.bf16.mxu0 %v105
  %1570 = vmatpush1.bf16.msra.mxu0 %v104
  %1571 = vmatprep.subr.bf16.mxu0 %v107
  %1572 = vmatpush1.bf16.msra.mxu0 %v106
  %1573 = vmatprep.subr.bf16.mxu0 %v109
  %1574 = vmatpush1.bf16.msra.mxu0 %v108
  %1575 = vmatprep.subr.bf16.mxu0 %v111
  %1576 = vmatpush1.bf16.msra.mxu0 %v110
  %1577 = vmatprep.subr.bf16.mxu0 0
  %1578 = vmatpush1.bf16.msra.mxu0 0
  %1579 = vmatprep.subr.bf16.mxu0 0
  %1580 = vmatpush1.bf16.msra.mxu0 0
  %1581 = vmatprep.subr.bf16.mxu0 0
  %1582 = vmatpush1.bf16.msra.mxu0 0
  %1583 = vmatprep.subr.bf16.mxu0 0
  %1584 = vmatpush1.bf16.msra.mxu0 0
  %1585 = vmatprep.subr.bf16.mxu0 0
  %1586 = vmatpush1.bf16.msra.mxu0 0
  %1587 = vmatprep.subr.bf16.mxu0 0
  %1588 = vmatpush1.bf16.msra.mxu0 0
  %1589 = vmatprep.subr.bf16.mxu0 0
  %1590 = vmatpush1.bf16.msra.mxu0 0
  %1591 = vmatprep.subr.bf16.mxu0 0
  %1592 = vmatpush1.bf16.msra.mxu0 0
  %1593 = vmatprep.subr.bf16.mxu0 0
  %1594 = vmatpush1.bf16.msra.mxu0 0
  %1595 = vmatprep.subr.bf16.mxu0 0
  %1596 = vmatpush1.bf16.msra.mxu0 0
  %1597 = vmatprep.subr.bf16.mxu0 0
  %1598 = vmatpush1.bf16.msra.mxu0 0
  %1599 = vmatprep.subr.bf16.mxu0 0
  %1600 = vmatpush1.bf16.msra.mxu0 0
  %1601 = vmatprep.mubr.bf16.mxu0 0
  %1602 = vmatmul.mubr.bf16.gmra.mrb[0].mxu0 %v1567
  %v1603 = vpop.f32.mrb[0].mxu0
  %v1604 = vadd.f32 0.0, %v1603
  %v1605 = vpop.f32.mrb[0].mxu0
  %v1606 = vadd.f32 0.0, %v1605
  %v1607 = vpop.f32.mrb[0].mxu0
  %v1608 = vpop.f32.mrb[0].mxu0
  %1609 = vdwg.mxu0
  %s1610 = scalar_lea.vmem %s0, 6
  %v1611 = vld [vmem:[%s1610] sm:$0x1]
  %v1613 = vsel %vm178, %v1611, 0
  %1615 = vmatprep.subr.bf16.mxu0 0
  %1616 = vmatpush1.bf16.msra.mxu0 %v176
  %1617 = vmatprep.subr.bf16.mxu0 0
  %1618 = vmatpush1.bf16.msra.mxu0 0
  %1619 = vmatprep.subr.bf16.mxu0 0
  %1620 = vmatpush1.bf16.msra.mxu0 0
  %1621 = vmatprep.subr.bf16.mxu0 0
  %1622 = vmatpush1.bf16.msra.mxu0 0
  %1623 = vmatprep.subr.bf16.mxu0 0
  %1624 = vmatpush1.bf16.msra.mxu0 0
  %1625 = vmatprep.subr.bf16.mxu0 0
  %1626 = vmatpush1.bf16.msra.mxu0 0
  %1627 = vmatprep.subr.bf16.mxu0 0
  %1628 = vmatpush1.bf16.msra.mxu0 0
  %1629 = vmatprep.subr.bf16.mxu0 0
  %1630 = vmatpush1.bf16.msra.mxu0 0
  %1631 = vmatprep.subr.bf16.mxu0 0
  %1632 = vmatpush1.bf16.msra.mxu0 0
  %1633 = vmatprep.subr.bf16.mxu0 0
  %1634 = vmatpush1.bf16.msra.mxu0 0
  %1635 = vmatprep.subr.bf16.mxu0 0
  %1636 = vmatpush1.bf16.msra.mxu0 0
  %1637 = vmatprep.subr.bf16.mxu0 0
  %1638 = vmatpush1.bf16.msra.mxu0 0
  %1639 = vmatprep.subr.bf16.mxu0 0
  %1640 = vmatpush1.bf16.msra.mxu0 0
  %1641 = vmatprep.subr.bf16.mxu0 0
  %1642 = vmatpush1.bf16.msra.mxu0 0
  %1643 = vmatprep.subr.bf16.mxu0 0
  %1644 = vmatpush1.bf16.msra.mxu0 0
  %1645 = vmatprep.subr.bf16.mxu0 0
  %1646 = vmatpush1.bf16.msra.mxu0 0
  %1647 = vmatprep.mubr.bf16.mxu0 0
  %1648 = vmatmul.mubr.bf16.gmra.mrb[0].mxu0 %v1613
  %v1649 = vpop.f32.mrb[0].mxu0
  %v1650 = vadd.f32 %v170, %v1649
  %v1651 = vpop.f32.mrb[0].mxu0
  %v1652 = vpop.f32.mrb[0].mxu0
  %v1653 = vpop.f32.mrb[0].mxu0
  %1654 = vdwg.mxu0
  %s1655 = scalar_lea.vmem %s43, 1
  %v1656 = vld [vmem:[%s1655] sm:$0x1]
  %v1658 = vsel %vm178, %v1656, 0
  %1660 = vmatprep.subr.bf16.mxu0 0
  %1661 = vmatpush1.bf16.msra.mxu0 %v234
  %1662 = vmatprep.subr.bf16.mxu0 0
  %1663 = vmatpush1.bf16.msra.mxu0 0
  %1664 = vmatprep.subr.bf16.mxu0 0
  %1665 = vmatpush1.bf16.msra.mxu0 0
  %1666 = vmatprep.subr.bf16.mxu0 0
  %1667 = vmatpush1.bf16.msra.mxu0 0
  %1668 = vmatprep.subr.bf16.mxu0 0
  %1669 = vmatpush1.bf16.msra.mxu0 0
  %1670 = vmatprep.subr.bf16.mxu0 0
  %1671 = vmatpush1.bf16.msra.mxu0 0
  %1672 = vmatprep.subr.bf16.mxu0 0
  %1673 = vmatpush1.bf16.msra.mxu0 0
  %1674 = vmatprep.subr.bf16.mxu0 0
  %1675 = vmatpush1.bf16.msra.mxu0 0
  %1676 = vmatprep.subr.bf16.mxu0 0
  %1677 = vmatpush1.bf16.msra.mxu0 0
  %1678 = vmatprep.subr.bf16.mxu0 0
  %1679 = vmatpush1.bf16.msra.mxu0 0
  %1680 = vmatprep.subr.bf16.mxu0 0
  %1681 = vmatpush1.bf16.msra.mxu0 0
  %1682 = vmatprep.subr.bf16.mxu0 0
  %1683 = vmatpush1.bf16.msra.mxu0 0
  %1684 = vmatprep.subr.bf16.mxu0 0
  %1685 = vmatpush1.bf16.msra.mxu0 0
  %1686 = vmatprep.subr.bf16.mxu0 0
  %1687 = vmatpush1.bf16.msra.mxu0 0
  %1688 = vmatprep.subr.bf16.mxu0 0
  %1689 = vmatpush1.bf16.msra.mxu0 0
  %1690 = vmatprep.subr.bf16.mxu0 0
  %1691 = vmatpush1.bf16.msra.mxu0 0
  %1692 = vmatprep.mubr.bf16.mxu0 0
  %1693 = vmatmul.mubr.bf16.gmra.mrb[0].mxu0 %v1658
  %v1694 = vpop.f32.mrb[0].mxu0
  %v1695 = vadd.f32 %v228, %v1694
  %v1696 = vpop.f32.mrb[0].mxu0
  %v1697 = vpop.f32.mrb[0].mxu0
  %v1698 = vpop.f32.mrb[0].mxu0
  %1699 = vdwg.mxu0
  %v1700 = vadd.f32 %v1604, %v1650
  %v1701 = vadd.f32 %v1606, %v1695
  %v1702 = vxor.u32 %v1700, 2147483648
  %v1703 = vmul.f32 %v1702, 1.442695
  %v1704 = vpow.pop %v1703
  %v1705 = vadd.f32 %v1704, 1.0
  %v1706 = vrcp.pop %v1705
  %v1707 = vmul.f32 1.0, %v1706
  %v1708 = vtanh.pop %v1700
  %v1709 = vmul.f32 %v1707, %v1483
  %1711 = vrot.lane.b32.xlu0 %v1708, 64
  %v1712 = vpop.permute.xlu0 %1711
  %v1714 = vmul.f32 %v1707, %v1712
  %1716 = vrot.lane.b32.xlu0 %v1714, 32
  %v1717 = vpop.permute.xlu0 %1716
  %v1719 = vadd.f32 %v1709, %v1717
  %v1720 = vtanh.pop %v1719
  %1722 = vrot.lane.b32.xlu0 %v1720, 64
  %v1723 = vpop.permute.xlu0 %1722
  %v1725 = vmul.f32 %v1707, %v1723
  %v1726 = vxor.u32 %v1701, 2147483648
  %v1727 = vmul.f32 %v1726, 1.442695
  %v1728 = vpow.pop %v1727
  %v1729 = vadd.f32 %v1728, 1.0
  %v1730 = vrcp.pop %v1729
  %v1731 = vmul.f32 1.0, %v1730
  %v1732 = vtanh.pop %v1701
  %v1733 = vmul.f32 %v1731, %v1507
  %1735 = vrot.lane.b32.xlu0 %v1732, 64
  %v1736 = vpop.permute.xlu0 %1735
  %v1738 = vmul.f32 %v1731, %v1736
  %1740 = vrot.lane.b32.xlu0 %v1738, 32
  %v1741 = vpop.permute.xlu0 %1740
  %v1743 = vadd.f32 %v1733, %v1741
  %v1744 = vtanh.pop %v1743
  %1746 = vrot.lane.b32.xlu0 %v1744, 64
  %v1747 = vpop.permute.xlu0 %1746
  %v1749 = vmul.f32 %v1731, %v1747
  %v1750 = vpack.c.bf16 %v1725, %v1725
  %v1753 = vunpack.c.l.s4 1966171168
  %v1754 = vunpack.c.0.s8 %v1753
  %v1755 = vlaneseq
  %v1756 = vshrl.u32 %v1755, 7
  %v1757 = vsub.s32 %v1754, %v1756
  %v1758 = vrot.slane %v1750, %v1757
  %v1760 = vunpack.c.l.s4 1966171168
  %v1761 = vunpack.c.0.s8 %v1760
  %v1762 = vlaneseq
  %v1763 = vshrl.u32 %v1762, 7
  %v1764 = vsub.s32 %v1761, %v1763
  %v1765 = vrot.slane %v1758, %v1764
  %1766 = vrot.lane.b32.xlu0 %v1765, 32
  %v1767 = vpop.permute.xlu0 %1766
  %s1769 = scalar_lea.vmem %s5, 6
  %1770 = vst.msk [vmem:[%s1769] sm:$0x1] %vm352, %v1767
  %v1771 = vpack.c.bf16 %v1749, %v1749
  %v1774 = vunpack.c.l.s4 1966171168
  %v1775 = vunpack.c.0.s8 %v1774
  %v1776 = vlaneseq
  %v1777 = vshrl.u32 %v1776, 7
  %v1778 = vsub.s32 %v1775, %v1777
  %v1779 = vrot.slane %v1771, %v1778
  %v1781 = vunpack.c.l.s4 1966171168
  %v1782 = vunpack.c.0.s8 %v1781
  %v1783 = vlaneseq
  %v1784 = vshrl.u32 %v1783, 7
  %v1785 = vsub.s32 %v1782, %v1784
  %v1786 = vrot.slane %v1779, %v1785
  %1787 = vrot.lane.b32.xlu0 %v1786, 32
  %v1788 = vpop.permute.xlu0 %1787
  %s1790 = scalar_lea.vmem %s50, 1
  %1791 = vst.msk [vmem:[%s1790] sm:$0x1] %vm352, %v1788
  %1793 = vrot.lane.b32.xlu0 %v1725, 32
  %v1794 = vpop.permute.xlu0 %1793
  %1797 = vrot.lane.b32.xlu0 %v1749, 64
  %v1798 = vpop.permute.xlu0 %1797
  %v1800 = vsel %vm383, %v1794, %v1798
  %v1801 = vpack.c.bf16 %v1800, %v1800
  %v1803 = vsel %vm120, %v1801, 0
  %1805 = vmatprep.subr.bf16.mxu0 %v105
  %1806 = vmatpush1.bf16.msra.mxu0 %v104
  %1807 = vmatprep.subr.bf16.mxu0 %v107
  %1808 = vmatpush1.bf16.msra.mxu0 %v106
  %1809 = vmatprep.subr.bf16.mxu0 %v109
  %1810 = vmatpush1.bf16.msra.mxu0 %v108
  %1811 = vmatprep.subr.bf16.mxu0 %v111
  %1812 = vmatpush1.bf16.msra.mxu0 %v110
  %1813 = vmatprep.subr.bf16.mxu0 0
  %1814 = vmatpush1.bf16.msra.mxu0 0
  %1815 = vmatprep.subr.bf16.mxu0 0
  %1816 = vmatpush1.bf16.msra.mxu0 0
  %1817 = vmatprep.subr.bf16.mxu0 0
  %1818 = vmatpush1.bf16.msra.mxu0 0
  %1819 = vmatprep.subr.bf16.mxu0 0
  %1820 = vmatpush1.bf16.msra.mxu0 0
  %1821 = vmatprep.subr.bf16.mxu0 0
  %1822 = vmatpush1.bf16.msra.mxu0 0
  %1823 = vmatprep.subr.bf16.mxu0 0
  %1824 = vmatpush1.bf16.msra.mxu0 0
  %1825 = vmatprep.subr.bf16.mxu0 0
  %1826 = vmatpush1.bf16.msra.mxu0 0
  %1827 = vmatprep.subr.bf16.mxu0 0
  %1828 = vmatpush1.bf16.msra.mxu0 0
  %1829 = vmatprep.subr.bf16.mxu0 0
  %1830 = vmatpush1.bf16.msra.mxu0 0
  %1831 = vmatprep.subr.bf16.mxu0 0
  %1832 = vmatpush1.bf16.msra.mxu0 0
  %1833 = vmatprep.subr.bf16.mxu0 0
  %1834 = vmatpush1.bf16.msra.mxu0 0
  %1835 = vmatprep.subr.bf16.mxu0 0
  %1836 = vmatpush1.bf16.msra.mxu0 0
  %1837 = vmatprep.mubr.bf16.mxu0 0
  %1838 = vmatmul.mubr.bf16.gmra.mrb[0].mxu0 %v1803
  %v1839 = vpop.f32.mrb[0].mxu0
  %v1840 = vadd.f32 0.0, %v1839
  %v1841 = vpop.f32.mrb[0].mxu0
  %v1842 = vadd.f32 0.0, %v1841
  %v1843 = vpop.f32.mrb[0].mxu0
  %v1844 = vpop.f32.mrb[0].mxu0
  %1845 = vdwg.mxu0
  %s1846 = scalar_lea.vmem %s0, 7
  %v1847 = vld [vmem:[%s1846] sm:$0x1]
  %v1849 = vsel %vm178, %v1847, 0
  %1851 = vmatprep.subr.bf16.mxu0 0
  %1852 = vmatpush1.bf16.msra.mxu0 %v176
  %1853 = vmatprep.subr.bf16.mxu0 0
  %1854 = vmatpush1.bf16.msra.mxu0 0
  %1855 = vmatprep.subr.bf16.mxu0 0
  %1856 = vmatpush1.bf16.msra.mxu0 0
  %1857 = vmatprep.subr.bf16.mxu0 0
  %1858 = vmatpush1.bf16.msra.mxu0 0
  %1859 = vmatprep.subr.bf16.mxu0 0
  %1860 = vmatpush1.bf16.msra.mxu0 0
  %1861 = vmatprep.subr.bf16.mxu0 0
  %1862 = vmatpush1.bf16.msra.mxu0 0
  %1863 = vmatprep.subr.bf16.mxu0 0
  %1864 = vmatpush1.bf16.msra.mxu0 0
  %1865 = vmatprep.subr.bf16.mxu0 0
  %1866 = vmatpush1.bf16.msra.mxu0 0
  %1867 = vmatprep.subr.bf16.mxu0 0
  %1868 = vmatpush1.bf16.msra.mxu0 0
  %1869 = vmatprep.subr.bf16.mxu0 0
  %1870 = vmatpush1.bf16.msra.mxu0 0
  %1871 = vmatprep.subr.bf16.mxu0 0
  %1872 = vmatpush1.bf16.msra.mxu0 0
  %1873 = vmatprep.subr.bf16.mxu0 0
  %1874 = vmatpush1.bf16.msra.mxu0 0
  %1875 = vmatprep.subr.bf16.mxu0 0
  %1876 = vmatpush1.bf16.msra.mxu0 0
  %1877 = vmatprep.subr.bf16.mxu0 0
  %1878 = vmatpush1.bf16.msra.mxu0 0
  %1879 = vmatprep.subr.bf16.mxu0 0
  %1880 = vmatpush1.bf16.msra.mxu0 0
  %1881 = vmatprep.subr.bf16.mxu0 0
  %1882 = vmatpush1.bf16.msra.mxu0 0
  %1883 = vmatprep.mubr.bf16.mxu0 0
  %1884 = vmatmul.mubr.bf16.gmra.mrb[0].mxu0 %v1849
  %v1885 = vpop.f32.mrb[0].mxu0
  %v1886 = vadd.f32 %v170, %v1885
  %v1887 = vpop.f32.mrb[0].mxu0
  %v1888 = vpop.f32.mrb[0].mxu0
  %v1889 = vpop.f32.mrb[0].mxu0
  %1890 = vdwg.mxu0
  %v1891 = vld [vmem:[%s43] sm:$0x1]
  %v1893 = vsel %vm178, %v1891, 0
  %1895 = vmatprep.subr.bf16.mxu0 0
  %1896 = vmatpush1.bf16.msra.mxu0 %v234
  %1897 = vmatprep.subr.bf16.mxu0 0
  %1898 = vmatpush1.bf16.msra.mxu0 0
  %1899 = vmatprep.subr.bf16.mxu0 0
  %1900 = vmatpush1.bf16.msra.mxu0 0
  %1901 = vmatprep.subr.bf16.mxu0 0
  %1902 = vmatpush1.bf16.msra.mxu0 0
  %1903 = vmatprep.subr.bf16.mxu0 0
  %1904 = vmatpush1.bf16.msra.mxu0 0
  %1905 = vmatprep.subr.bf16.mxu0 0
  %1906 = vmatpush1.bf16.msra.mxu0 0
  %1907 = vmatprep.subr.bf16.mxu0 0
  %1908 = vmatpush1.bf16.msra.mxu0 0
  %1909 = vmatprep.subr.bf16.mxu0 0
  %1910 = vmatpush1.bf16.msra.mxu0 0
  %1911 = vmatprep.subr.bf16.mxu0 0
  %1912 = vmatpush1.bf16.msra.mxu0 0
  %1913 = vmatprep.subr.bf16.mxu0 0
  %1914 = vmatpush1.bf16.msra.mxu0 0
  %1915 = vmatprep.subr.bf16.mxu0 0
  %1916 = vmatpush1.bf16.msra.mxu0 0
  %1917 = vmatprep.subr.bf16.mxu0 0
  %1918 = vmatpush1.bf16.msra.mxu0 0
  %1919 = vmatprep.subr.bf16.mxu0 0
  %1920 = vmatpush1.bf16.msra.mxu0 0
  %1921 = vmatprep.subr.bf16.mxu0 0
  %1922 = vmatpush1.bf16.msra.mxu0 0
  %1923 = vmatprep.subr.bf16.mxu0 0
  %1924 = vmatpush1.bf16.msra.mxu0 0
  %1925 = vmatprep.subr.bf16.mxu0 0
  %1926 = vmatpush1.bf16.msra.mxu0 0
  %1927 = vmatprep.mubr.bf16.mxu0 0
  %1928 = vmatmul.mubr.bf16.gmra.mrb[0].mxu0 %v1893
  %v1929 = vpop.f32.mrb[0].mxu0
  %v1930 = vadd.f32 %v228, %v1929
  %v1931 = vpop.f32.mrb[0].mxu0
  %v1932 = vpop.f32.mrb[0].mxu0
  %v1933 = vpop.f32.mrb[0].mxu0
  %1934 = vdwg.mxu0
  %v1935 = vadd.f32 %v1840, %v1886
  %v1936 = vadd.f32 %v1842, %v1930
  %v1937 = vxor.u32 %v1935, 2147483648
  %v1938 = vmul.f32 %v1937, 1.442695
  %v1939 = vpow.pop %v1938
  %v1940 = vadd.f32 %v1939, 1.0
  %v1941 = vrcp.pop %v1940
  %v1942 = vmul.f32 1.0, %v1941
  %v1943 = vtanh.pop %v1935
  %v1944 = vmul.f32 %v1942, %v1719
  %1946 = vrot.lane.b32.xlu0 %v1943, 64
  %v1947 = vpop.permute.xlu0 %1946
  %v1949 = vmul.f32 %v1942, %v1947
  %1951 = vrot.lane.b32.xlu0 %v1949, 32
  %v1952 = vpop.permute.xlu0 %1951
  %v1954 = vadd.f32 %v1944, %v1952
  %v1955 = vtanh.pop %v1954
  %1957 = vrot.lane.b32.xlu0 %v1955, 64
  %v1958 = vpop.permute.xlu0 %1957
  %v1960 = vmul.f32 %v1942, %v1958
  %v1961 = vxor.u32 %v1936, 2147483648
  %v1962 = vmul.f32 %v1961, 1.442695
  %v1963 = vpow.pop %v1962
  %v1964 = vadd.f32 %v1963, 1.0
  %v1965 = vrcp.pop %v1964
  %v1966 = vmul.f32 1.0, %v1965
  %v1967 = vtanh.pop %v1936
  %v1968 = vmul.f32 %v1966, %v1743
  %1970 = vrot.lane.b32.xlu0 %v1967, 64
  %v1971 = vpop.permute.xlu0 %1970
  %v1973 = vmul.f32 %v1966, %v1971
  %1975 = vrot.lane.b32.xlu0 %v1973, 32
  %v1976 = vpop.permute.xlu0 %1975
  %v1978 = vadd.f32 %v1968, %v1976
  %v1979 = vtanh.pop %v1978
  %1981 = vrot.lane.b32.xlu0 %v1979, 64
  %v1982 = vpop.permute.xlu0 %1981
  %v1984 = vmul.f32 %v1966, %v1982
  %v1985 = vpack.c.bf16 %v1960, %v1960
  %v1988 = vunpack.c.l.s4 1966171168
  %v1989 = vunpack.c.0.s8 %v1988
  %v1990 = vlaneseq
  %v1991 = vshrl.u32 %v1990, 7
  %v1992 = vsub.s32 %v1989, %v1991
  %v1993 = vrot.slane %v1985, %v1992
  %v1995 = vunpack.c.l.s4 1966171168
  %v1996 = vunpack.c.0.s8 %v1995
  %v1997 = vlaneseq
  %v1998 = vshrl.u32 %v1997, 7
  %v1999 = vsub.s32 %v1996, %v1998
  %v2000 = vrot.slane %v1993, %v1999
  %2001 = vrot.lane.b32.xlu0 %v2000, 32
  %v2002 = vpop.permute.xlu0 %2001
  %s2004 = scalar_lea.vmem %s5, 7
  %2005 = vst.msk [vmem:[%s2004] sm:$0x1] %vm352, %v2002
  %v2006 = vpack.c.bf16 %v1984, %v1984
  %v2009 = vunpack.c.l.s4 1966171168
  %v2010 = vunpack.c.0.s8 %v2009
  %v2011 = vlaneseq
  %v2012 = vshrl.u32 %v2011, 7
  %v2013 = vsub.s32 %v2010, %v2012
  %v2014 = vrot.slane %v2006, %v2013
  %v2016 = vunpack.c.l.s4 1966171168
  %v2017 = vunpack.c.0.s8 %v2016
  %v2018 = vlaneseq
  %v2019 = vshrl.u32 %v2018, 7
  %v2020 = vsub.s32 %v2017, %v2019
  %v2021 = vrot.slane %v2014, %v2020
  %2022 = vrot.lane.b32.xlu0 %v2021, 32
  %v2023 = vpop.permute.xlu0 %2022
  %2025 = vst.msk [vmem:[%s50] sm:$0x1] %vm352, %v2023
  %2027 = vrot.lane.b32.xlu0 %v1960, 32
  %v2028 = vpop.permute.xlu0 %2027
  %2031 = vrot.lane.b32.xlu0 %v1984, 64
  %v2032 = vpop.permute.xlu0 %2031
  %v2034 = vsel %vm383, %v2028, %v2032
  %vm2035 = vcmask 517120
  %2036 = vst.msk [vmem:[#allocation2] sm:$0x3] %vm2035, %v2034
  %2038 = vrot.lane.b32.xlu0 %v1954, 96
  %v2039 = vpop.permute.xlu0 %2038
  %v2041 = vsel %vm383, %v2039, %v1978
  %2042 = vst.msk [vmem:[#allocation3] sm:$0x3] %vm2035, %v2041
  %s2043 = ssub.s32 0, 0
  %s2044 = smul.u32 8, %s2043
  %p2045 = scmp.lt.s32.totalorder %s2044, 7
  %s2046 = scalar_select %p2045, %s2044, 7
  %s2047 = scalar_lea.vmem %s6, %s2046
  // Predicated region
  $region26: #{blstm_forward.2} parent=0 // pred_check
    _
  $region27: #{blstm_forward.2} parent=0 // pred_check_branch
    %2049 = sbr.rel (0) target = $region29
  $region28: #{blstm_forward.2} parent=0 // pred_region
    _
  $region29: #{blstm_forward.2} parent=0 // pred_fallthru
    _
  // Predicated region
  $region30: #{blstm_forward.2} parent=0 // pred_check
    _
  $region31: #{blstm_forward.2} parent=0 // pred_check_branch
    %2051 = sbr.rel (0) target = $region33
  $region32: #{blstm_forward.2} parent=0 // pred_region
    %s2052 = ssub.s32 0, 0
    %s2053 = smul.u32 8, %s2052
  $region33: #{blstm_forward.2} parent=0 // pred_fallthru
    _
  // Predicated region
  $region34: #{blstm_forward.2} parent=0 // pred_check
    _
  $region35: #{blstm_forward.2} parent=0 // pred_check_branch
    %2055 = sbr.rel (0) target = $region37
  $region36: #{blstm_forward.2} parent=0 // pred_region
    _
  $region37: #{blstm_forward.2} parent=0 // pred_fallthru
    _
  // Predicated region
  $region38: #{blstm_forward.2} parent=0 // pred_check
    _
  $region39: #{blstm_forward.2} parent=0 // pred_check_branch
    %2057 = sbr.rel (0) target = $region41
  $region40: #{blstm_forward.2} parent=0 // pred_region
    %s2058 = ssub.s32 0, 0
    %s2059 = smul.u32 8, %s2058
    %p2060 = scmp.lt.s32.totalorder %s2059, 7
    %s2061 = scalar_select %p2060, %s2059, 7
    %s2062 = scalar_lea.vmem %s6, %s2061
  $region41: #{blstm_forward.2} parent=0 // pred_fallthru
    _

</llo_original>
